<compile_context>
chip_gen: v6e
topology: v6e:2x2x1
jax: 0.10.0
libtpu: 0.0.40
codegen_flags: <defaults>
</compile_context>

<pallas_src>
import functools

import jax
import jax.numpy as jnp
from jax.experimental import pallas as pl
from jax.experimental.pallas import tpu as pltpu

VP = 128        # lane-dense padded width for GRU logits / classifier+loss slab
SUBLANE = 8     # f32 sublane tile


# ----------------------------------------------------------------------------
# Single fused kernel: encoder MLP -> node-sum -> encoder_output -> VQ ->
# decoder_input -> classifier head -> teacher-forced GRU decoder.
# ----------------------------------------------------------------------------
def _vqvae_kernel(atoms_ref, tin_ref,
                  aemb_ref, aembb_ref,
                  encw_ref, encb_ref,
                  eow_ref, eob_ref,
                  cb_ref,
                  dinw_ref, dinb_ref,
                  c1w_ref, c1b_ref, c2w_ref, c2b_ref,
                  semb_ref,
                  wih_ref, whh_ref, bih_ref, bhh_ref,
                  wout_ref, bout_ref,
                  logits_ref, aux_ref,
                  h_scr,
                  *, true_b, num_cls):
    f32 = jnp.float32
    BNp = atoms_ref.shape[0]
    Va, H = aemb_ref.shape
    A = encw_ref.shape[0]
    L, _, D = eow_ref.shape
    K = cb_ref.shape[1]
    Bp = aux_ref.shape[0]
    N = BNp // Bp
    Vs = semb_ref.shape[0]
    TBp = tin_ref.shape[0]
    T = TBp // Bp

    # ---- encoder: in-kernel one-hot "gather" of atom embeddings (table in VMEM)
    atom_ids = atoms_ref[...]                                        # (BNp, 1) i32
    lane_va = jax.lax.broadcasted_iota(jnp.int32, (BNp, Va), 1)
    node_oh = (lane_va == atom_ids).astype(f32)                      # (BNp, Va)
    h = jnp.dot(node_oh, aemb_ref[...], preferred_element_type=f32) + aembb_ref[...]
    for d in range(A):                                               # static agg_depth
        h = jnp.maximum(
            jnp.dot(h, encw_ref[d], preferred_element_type=f32) + encb_ref[d], 0.0)

    # ---- sum over nodes via an in-kernel selection matrix (MXU, no reshape) ----
    row = jax.lax.broadcasted_iota(jnp.int32, (Bp, BNp), 0)
    col = jax.lax.broadcasted_iota(jnp.int32, (Bp, BNp), 1)
    sel = ((col >= row * N) & (col < (row + 1) * N)).astype(f32)     # (Bp, BNp)
    agg = jnp.dot(sel, h, preferred_element_type=f32)                # (Bp, H)

    # ---- vector quantization, per-latent (leading-dim indexed stacked weights) --
    e = cb_ref[...]                                                  # (D, K)
    e2 = jnp.sum(e * e, axis=0, keepdims=True)                       # (1, K)
    rowmask = (jax.lax.broadcasted_iota(jnp.int32, (Bp, D), 0) < true_b).astype(f32)

    qout = dinb_ref[...]                                             # (1, H) broadcast
    sqacc = jnp.zeros((Bp, D), f32)
    for l in range(L):                                               # static latent_dim
        z_l = jnp.dot(agg, eow_ref[l], preferred_element_type=f32) + eob_ref[l]
        scores = jnp.dot(z_l, e, preferred_element_type=f32)         # (Bp, K)
        z2 = jnp.sum(z_l * z_l, axis=-1, keepdims=True)
        dist = z2 - 2.0 * scores + e2
        kiota = jax.lax.broadcasted_iota(jnp.int32, dist.shape, 1)
        min_d = jnp.min(dist, axis=-1, keepdims=True)
        idx = jnp.min(jnp.where(dist <= min_d, kiota, K), axis=-1, keepdims=True)
        onehot = (kiota == idx).astype(f32)                          # (Bp, K)
        # quantized = onehot @ e^T via dot_general on the K axis (no transpose)
        q_l = jax.lax.dot_general(onehot, e, (((1,), (1,)), ((), ())),
                                  preferred_element_type=f32)        # (Bp, D)
        diff = q_l - z_l
        sqacc = sqacc + diff * diff
        qout = qout + jnp.dot(q_l, dinw_ref[l], preferred_element_type=f32)

    # vq_loss and commitment_loss share this forward value (MSE is symmetric).
    vq_mse = jnp.sum(sqacc * rowmask, keepdims=True) / float(true_b * L * D)  # (1,1)

    # ---- classifier head (Linear-ReLU-Linear), lane-dense padded output ---------
    c1 = jnp.maximum(
        jnp.dot(qout, c1w_ref[...], preferred_element_type=f32) + c1b_ref[...], 0.0)
    cls_pad = jnp.dot(c1, c2w_ref[...], preferred_element_type=f32) + c2b_ref[...]
    lane_c = jax.lax.broadcasted_iota(jnp.int32, (Bp, VP), 1)
    # pack the scalar loss into lane `num_cls` of the aux slab (that column is 0)
    aux_ref[...] = cls_pad + (lane_c == num_cls).astype(f32) * vq_mse

    # ---- teacher-forced GRU decoder ---------------------------------------------
    # in-kernel one-hot "gather" of target embeddings; sentinel -1 -> zero row (SOS)
    tgt_ids = tin_ref[...]                                           # (T*Bp, 1) i32
    lane_vs = jax.lax.broadcasted_iota(jnp.int32, (TBp, Vs), 1)
    x_oh = (lane_vs == tgt_ids).astype(f32)                          # (T*Bp, Vs)
    x_all = jnp.dot(x_oh, semb_ref[...], preferred_element_type=f32) # (T*Bp, H)

    # hoisted per-gate input projections (no lane-offset gate slices later)
    gi_r = jnp.dot(x_all, wih_ref[0], preferred_element_type=f32) + bih_ref[0]
    gi_z = jnp.dot(x_all, wih_ref[1], preferred_element_type=f32) + bih_ref[1]
    gi_n = jnp.dot(x_all, wih_ref[2], preferred_element_type=f32) + bih_ref[2]

    whh_r, whh_z, whh_n = whh_ref[0], whh_ref[1], whh_ref[2]
    bhh_r, bhh_z, bhh_n = bhh_ref[0], bhh_ref[1], bhh_ref[2]

    hstate = qout                                                    # h0 = decoder_input(quantized)
    for t in range(T):                                               # fully unrolled, static T
        lo = t * Bp                                                  # sublane-aligned (Bp==8)
        gh_r = jnp.dot(hstate, whh_r, preferred_element_type=f32) + bhh_r
        gh_z = jnp.dot(hstate, whh_z, preferred_element_type=f32) + bhh_z
        gh_n = jnp.dot(hstate, whh_n, preferred_element_type=f32) + bhh_n
        r = jax.nn.sigmoid(gi_r[lo:lo + Bp, :] + gh_r)
        z = jax.nn.sigmoid(gi_z[lo:lo + Bp, :] + gh_z)
        n = jnp.tanh(gi_n[lo:lo + Bp, :] + r * gh_n)
        hstate = (1.0 - z) * n + z * hstate
        h_scr[lo:lo + Bp, :] = hstate                                # aligned scratch store

    # single lane-dense output matmul from the scratch
    logits_ref[...] = (
        jnp.dot(h_scr[...], wout_ref[...], preferred_element_type=f32)
        + bout_ref[...]).astype(logits_ref.dtype)


def _fullspec(x):
    nd = x.ndim
    return pl.BlockSpec(x.shape, lambda *_: (0,) * nd)


def pallas_vqvae_fused(params, atoms_col, tin_col, *, true_b, Bp, T):
    H = params["cls_w1"].shape[0]
    operands = (atoms_col, tin_col,
                params["atom_embed"], params["atom_embed_b"],
                params["enc_w"], params["enc_b"],
                params["enc_out_w"], params["enc_out_b"],
                params["codebook"],
                params["dec_in_w"], params["dec_in_b"],
                params["cls_w1"], params["cls_b1"],
                params["cls_w2p"], params["cls_b2p"],
                params["selfies_embed"],
                params["gru_wih"], params["gru_whh"],
                params["gru_bih"], params["gru_bhh"],
                params["gru_wout_p"], params["gru_bout_p"])
    return pl.pallas_call(
        functools.partial(_vqvae_kernel, true_b=true_b, num_cls=2),
        out_shape=(
            jax.ShapeDtypeStruct((T * Bp, VP), jnp.float32),   # GRU logits (time-major, padded)
            jax.ShapeDtypeStruct((Bp, VP), jnp.float32),       # cls logits + packed VQ MSE
        ),
        grid=(1,),
        in_specs=[_fullspec(a) for a in operands],
        out_specs=(
            pl.BlockSpec((T * Bp, VP), lambda i: (0, 0)),
            pl.BlockSpec((Bp, VP), lambda i: (0, 0)),
        ),
        scratch_shapes=[pltpu.VMEM((T * Bp, H), jnp.float32)],
        compiler_params=pltpu.CompilerParams(dimension_semantics=("arbitrary",)),
    )(*operands)


# ----------------------------------------------------------------------------
# Plain-JAX glue (tiny losses / int plumbing) — runs fused under jit.
# ----------------------------------------------------------------------------
def masked_ce(logits_btv, targets_bt, mask_bt):
    logp = jax.nn.log_softmax(logits_btv, axis=-1)
    nll = -jnp.take_along_axis(logp, targets_bt[..., None], axis=-1)[..., 0]
    m = mask_bt.astype(jnp.float32)
    return jnp.sum(nll * m) / jnp.maximum(jnp.sum(m), 1.0)


def ce(logits, labels):
    logp = jax.nn.log_softmax(logits, axis=-1)
    return -jnp.mean(jnp.take_along_axis(logp, labels[:, None], axis=-1)[:, 0])


def init_params(key, cfg):
    H = cfg["hidden_dim"]
    L = cfg["latent_dim"]
    K = cfg["num_embed"]
    D = 2 * K                          # embedding_dim = 2 * num_embed
    Va = cfg["atom_vocab"]
    Vs = cfg["selfies_vocab"]
    A = cfg["agg_depth"]
    C = 2
    keys = jax.random.split(key, 12)

    def w(k, shape, fan_in):
        return jax.random.normal(k, shape, jnp.float32) / jnp.sqrt(float(fan_in))

    cls_w2 = w(keys[10], (H, C), H)
    gru_wout = w(keys[8], (H, Vs), H)

    return {
        "atom_embed": w(keys[0], (Va, H), Va),
        "atom_embed_b": jnp.zeros((1, H), jnp.float32),
        "enc_w": w(keys[1], (A, H, H), H),
        "enc_b": jnp.zeros((A, 1, H), jnp.float32),
        # encoder_output stacked per latent slot (leading-dim indexing in-kernel)
        "enc_out_w": w(keys[2], (L, H, D), H),
        "enc_out_b": jnp.zeros((L, 1, D), jnp.float32),
        "codebook": w(keys[3], (D, K), D),          # embeddings: (embedding_dim, num_embed)
        "dec_in_w": w(keys[4], (L, D, H), L * D),
        "dec_in_b": jnp.zeros((1, H), jnp.float32),
        "selfies_embed": w(keys[5], (Vs, H), Vs),
        # per-gate stacked GRU weights: index 0/1/2 = r/z/n
        "gru_wih": w(keys[6], (3, H, H), H),
        "gru_whh": w(keys[7], (3, H, H), H),
        "gru_bih": jnp.zeros((3, 1, H), jnp.float32),
        "gru_bhh": jnp.zeros((3, 1, H), jnp.float32),
        # lane-dense padded output / classifier weights, precomputed ONCE here
        "gru_wout_p": jnp.zeros((H, VP), jnp.float32).at[:, :Vs].set(gru_wout),
        "gru_bout_p": jnp.zeros((1, VP), jnp.float32),
        "cls_w1": w(keys[9], (H, H), H),
        "cls_b1": jnp.zeros((1, H), jnp.float32),
        "cls_w2p": jnp.zeros((H, VP), jnp.float32).at[:, :C].set(cls_w2),
        "cls_b2p": jnp.zeros((1, VP), jnp.float32),
    }


def vqvae_forward(params, cfg, atoms, selfies_data, targets, mask, labels):
    B, N = atoms.shape
    T = targets.shape[1]
    Vs = cfg["selfies_vocab"]
    C = 2
    Bp = max(SUBLANE, ((B + SUBLANE - 1) // SUBLANE) * SUBLANE)   # sublane-padded batch

    # ---- tiny int32 index plumbing (sentinel -1 => zero embedding / SOS) --------
    atoms_pad = jnp.full((Bp, N), -1, jnp.int32).at[:B, :].set(atoms.astype(jnp.int32))
    atoms_col = atoms_pad.reshape(Bp * N, 1)
    tgt_pad = jnp.full((Bp, T), -1, jnp.int32).at[:B, :].set(targets.astype(jnp.int32))
    tin = jnp.concatenate([jnp.full((Bp, 1), -1, jnp.int32), tgt_pad[:, :-1]], axis=1)
    tin_col = jnp.transpose(tin, (1, 0)).reshape(T * Bp, 1)       # time-major rows

    # ---- single fused Pallas kernel ---------------------------------------------
    logits_pad, aux = pallas_vqvae_fused(params, atoms_col, tin_col,
                                         true_b=B, Bp=Bp, T=T)

    selfies_output = jnp.transpose(
        logits_pad.reshape(T, Bp, VP)[:, :B, :Vs], (1, 0, 2))     # (B, T, Vs)
    cls_logits = aux[:B, :C]                                      # (B, 2)
    vqc_loss = aux[0, C]                                          # packed scalar MSE
    # Forward values of vq_loss and commitment_loss are identical (MSE symmetric);
    # sg/detach only change gradients, not the forward pass.
    vq_loss = vqc_loss
    commitment_loss = vqc_loss

    reconstruction_loss = masked_ce(selfies_output, targets, mask)
    prediction_loss = ce(cls_logits, labels)

    # Reference total_loss does NOT include prediction_loss (pred_coef unused).
    total_loss = (cfg["recon_coef"] * reconstruction_loss
                  + cfg["vq_coef"] * vq_loss
                  + cfg["commit_coef"] * commitment_loss)

    stats = {
        "total_loss": total_loss,
        "recon_loss": reconstruction_loss,
        "vq_loss": vq_loss,
        "commit_loss": commitment_loss,
        "prediction_loss": prediction_loss,
    }
    return total_loss, stats, selfies_output, cls_logits, selfies_data, labels


if __name__ == "__main__":
    cfg = dict(latent_dim=2, hidden_dim=32, num_embed=8, atom_vocab=12,
               selfies_vocab=16, agg_depth=2, rnn_depth=1,
               vq_coef=1.0, commit_coef=0.25, pred_coef=1.0, recon_coef=1.0)

    key = jax.random.PRNGKey(0)
    pkey, akey, tkey, mkey, lkey = jax.random.split(key, 5)
    params = init_params(pkey, cfg)

    B, N, T = 4, 6, 8
    atoms = jax.random.randint(akey, (B, N), 0, cfg["atom_vocab"], dtype=jnp.int32)
    targets = jax.random.randint(tkey, (B, T), 0, cfg["selfies_vocab"], dtype=jnp.int32)
    mask = (jax.random.uniform(mkey, (B, T)) > 0.2).astype(jnp.int32)
    labels = jax.random.randint(lkey, (B,), 0, 2, dtype=jnp.int32)
    selfies_data = targets

    fwd = jax.jit(lambda p, a, sd, t, m, lb: vqvae_forward(p, cfg, a, sd, t, m, lb))

    total_loss, stats, selfies_out, logits, sd_out, lab_out = fwd(
        params, atoms, selfies_data, targets, mask, labels)
    jax.block_until_ready((total_loss, stats, selfies_out, logits))

    # Host-side conversion only after everything is computed (no traced float()).
    host_stats = {k: float(v) for k, v in stats.items()}
    assert selfies_out.shape == (B, T, cfg["selfies_vocab"])
    assert logits.shape == (B, 2)
    print("KERNEL_OK")
</pallas_src>

<mosaic_0001>
module attributes {stable_mosaic.version = 11 : i64} {
  func.func @_vqvae_kernel(%arg0: i32, %arg1: memref<48x1xi32, #tpu.memory_space<vmem>>, %arg2: memref<64x1xi32, #tpu.memory_space<vmem>>, %arg3: memref<12x32xf32, #tpu.memory_space<vmem>>, %arg4: memref<1x32xf32, #tpu.memory_space<vmem>>, %arg5: memref<2x32x32xf32, #tpu.memory_space<vmem>>, %arg6: memref<2x1x32xf32, #tpu.memory_space<vmem>>, %arg7: memref<2x32x16xf32, #tpu.memory_space<vmem>>, %arg8: memref<2x1x16xf32, #tpu.memory_space<vmem>>, %arg9: memref<16x8xf32, #tpu.memory_space<vmem>>, %arg10: memref<2x16x32xf32, #tpu.memory_space<vmem>>, %arg11: memref<1x32xf32, #tpu.memory_space<vmem>>, %arg12: memref<32x32xf32, #tpu.memory_space<vmem>>, %arg13: memref<1x32xf32, #tpu.memory_space<vmem>>, %arg14: memref<32x128xf32, #tpu.memory_space<vmem>>, %arg15: memref<1x128xf32, #tpu.memory_space<vmem>>, %arg16: memref<16x32xf32, #tpu.memory_space<vmem>>, %arg17: memref<3x32x32xf32, #tpu.memory_space<vmem>>, %arg18: memref<3x32x32xf32, #tpu.memory_space<vmem>>, %arg19: memref<3x1x32xf32, #tpu.memory_space<vmem>>, %arg20: memref<3x1x32xf32, #tpu.memory_space<vmem>>, %arg21: memref<32x128xf32, #tpu.memory_space<vmem>>, %arg22: memref<1x128xf32, #tpu.memory_space<vmem>>, %arg23: memref<64x128xf32, #tpu.memory_space<vmem>>, %arg24: memref<8x128xf32, #tpu.memory_space<vmem>>, %arg25: memref<64x32xf32, #tpu.memory_space<vmem>>) attributes {dimension_semantics = [#tpu.dimension_semantics<arbitrary>], iteration_bounds = array<i64: 1>, scalar_prefetch = 0 : i64, scratch_operands = 1 : i64, tpu.core_type = #tpu.core_type<tc>, window_params = [{pipeline_mode = #tpu.pipeline_mode<synchronous>, transform_indices = @transform_0, window_bounds = array<i64: 48, 1>}, {pipeline_mode = #tpu.pipeline_mode<synchronous>, transform_indices = @transform_1, window_bounds = array<i64: 64, 1>}, {pipeline_mode = #tpu.pipeline_mode<synchronous>, transform_indices = @transform_2, window_bounds = array<i64: 12, 32>}, {pipeline_mode = #tpu.pipeline_mode<synchronous>, transform_indices = @transform_3, window_bounds = array<i64: 1, 32>}, {pipeline_mode = #tpu.pipeline_mode<synchronous>, transform_indices = @transform_4, window_bounds = array<i64: 2, 32, 32>}, {pipeline_mode = #tpu.pipeline_mode<synchronous>, transform_indices = @transform_5, window_bounds = array<i64: 2, 1, 32>}, {pipeline_mode = #tpu.pipeline_mode<synchronous>, transform_indices = @transform_6, window_bounds = array<i64: 2, 32, 16>}, {pipeline_mode = #tpu.pipeline_mode<synchronous>, transform_indices = @transform_7, window_bounds = array<i64: 2, 1, 16>}, {pipeline_mode = #tpu.pipeline_mode<synchronous>, transform_indices = @transform_8, window_bounds = array<i64: 16, 8>}, {pipeline_mode = #tpu.pipeline_mode<synchronous>, transform_indices = @transform_9, window_bounds = array<i64: 2, 16, 32>}, {pipeline_mode = #tpu.pipeline_mode<synchronous>, transform_indices = @transform_10, window_bounds = array<i64: 1, 32>}, {pipeline_mode = #tpu.pipeline_mode<synchronous>, transform_indices = @transform_11, window_bounds = array<i64: 32, 32>}, {pipeline_mode = #tpu.pipeline_mode<synchronous>, transform_indices = @transform_12, window_bounds = array<i64: 1, 32>}, {pipeline_mode = #tpu.pipeline_mode<synchronous>, transform_indices = @transform_13, window_bounds = array<i64: 32, 128>}, {pipeline_mode = #tpu.pipeline_mode<synchronous>, transform_indices = @transform_14, window_bounds = array<i64: 1, 128>}, {pipeline_mode = #tpu.pipeline_mode<synchronous>, transform_indices = @transform_15, window_bounds = array<i64: 16, 32>}, {pipeline_mode = #tpu.pipeline_mode<synchronous>, transform_indices = @transform_16, window_bounds = array<i64: 3, 32, 32>}, {pipeline_mode = #tpu.pipeline_mode<synchronous>, transform_indices = @transform_17, window_bounds = array<i64: 3, 32, 32>}, {pipeline_mode = #tpu.pipeline_mode<synchronous>, transform_indices = @transform_18, window_bounds = array<i64: 3, 1, 32>}, {pipeline_mode = #tpu.pipeline_mode<synchronous>, transform_indices = @transform_19, window_bounds = array<i64: 3, 1, 32>}, {pipeline_mode = #tpu.pipeline_mode<synchronous>, transform_indices = @transform_20, window_bounds = array<i64: 32, 128>}, {pipeline_mode = #tpu.pipeline_mode<synchronous>, transform_indices = @transform_21, window_bounds = array<i64: 1, 128>}, {pipeline_mode = #tpu.pipeline_mode<synchronous>, transform_indices = @transform_22, window_bounds = array<i64: 64, 128>}, {pipeline_mode = #tpu.pipeline_mode<synchronous>, transform_indices = @transform_23, window_bounds = array<i64: 8, 128>}]} {
    %c0 = arith.constant 0 : index
    %c0_0 = arith.constant 0 : index
    %0 = vector.load %arg1[%c0, %c0_0] : memref<48x1xi32, #tpu.memory_space<vmem>>, vector<48x1xi32>
    %1 = tpu.iota {dimensions = array<i32: 1>} : vector<48x12xi32>
    %2 = vector.broadcast %0 : vector<48x1xi32> to vector<48x12xi32>
    %3 = arith.cmpi eq, %1, %2 : vector<48x12xi32>
    %4 = arith.extui %3 : vector<48x12xi1> to vector<48x12xi32>
    %5 = arith.sitofp %4 : vector<48x12xi32> to vector<48x12xf32>
    %c0_1 = arith.constant 0 : index
    %c0_2 = arith.constant 0 : index
    %6 = vector.load %arg3[%c0_1, %c0_2] : memref<12x32xf32, #tpu.memory_space<vmem>>, vector<12x32xf32>
    %cst = arith.constant dense<0.000000e+00> : vector<48x32xf32>
    %7 = tpu.matmul %5, %6, %cst {dimension_numbers = #tpu.dot_dimension_numbers<[1], [0], [0], [1], [0, 0, 1, 1], [], []>} : vector<48x12xf32>, vector<12x32xf32>, vector<48x32xf32> -> vector<48x32xf32>
    %c0_3 = arith.constant 0 : index
    %c0_4 = arith.constant 0 : index
    %8 = vector.load %arg4[%c0_3, %c0_4] : memref<1x32xf32, #tpu.memory_space<vmem>>, vector<1x32xf32>
    %9 = vector.broadcast %8 : vector<1x32xf32> to vector<48x32xf32>
    %10 = arith.addf %7, %9 : vector<48x32xf32>
    %c0_5 = arith.constant 0 : index
    %c0_6 = arith.constant 0 : index
    %c0_7 = arith.constant 0 : index
    %11 = vector.load %arg5[%c0_5, %c0_6, %c0_7] : memref<2x32x32xf32, #tpu.memory_space<vmem>>, vector<1x32x32xf32>
    %12 = vector.shape_cast %11 : vector<1x32x32xf32> to vector<32x32xf32>
    %cst_8 = arith.constant dense<0.000000e+00> : vector<48x32xf32>
    %13 = tpu.matmul %10, %12, %cst_8 {dimension_numbers = #tpu.dot_dimension_numbers<[1], [0], [0], [1], [0, 0, 1, 1], [], []>} : vector<48x32xf32>, vector<32x32xf32>, vector<48x32xf32> -> vector<48x32xf32>
    %c0_9 = arith.constant 0 : index
    %c0_10 = arith.constant 0 : index
    %c0_11 = arith.constant 0 : index
    %14 = vector.load %arg6[%c0_9, %c0_10, %c0_11] : memref<2x1x32xf32, #tpu.memory_space<vmem>>, vector<1x1x32xf32>
    %15 = vector.shape_cast %14 : vector<1x1x32xf32> to vector<1x32xf32>
    %16 = vector.broadcast %15 : vector<1x32xf32> to vector<48x32xf32>
    %17 = arith.addf %13, %16 : vector<48x32xf32>
    %cst_12 = arith.constant 0.000000e+00 : f32
    %18 = vector.broadcast %cst_12 : f32 to vector<48x32xf32>
    %19 = arith.maximumf %17, %18 : vector<48x32xf32>
    %c1 = arith.constant 1 : index
    %c0_13 = arith.constant 0 : index
    %c0_14 = arith.constant 0 : index
    %20 = vector.load %arg5[%c1, %c0_13, %c0_14] : memref<2x32x32xf32, #tpu.memory_space<vmem>>, vector<1x32x32xf32>
    %21 = vector.shape_cast %20 : vector<1x32x32xf32> to vector<32x32xf32>
    %cst_15 = arith.constant dense<0.000000e+00> : vector<48x32xf32>
    %22 = tpu.matmul %19, %21, %cst_15 {dimension_numbers = #tpu.dot_dimension_numbers<[1], [0], [0], [1], [0, 0, 1, 1], [], []>} : vector<48x32xf32>, vector<32x32xf32>, vector<48x32xf32> -> vector<48x32xf32>
    %c1_16 = arith.constant 1 : index
    %c0_17 = arith.constant 0 : index
    %c0_18 = arith.constant 0 : index
    %23 = vector.load %arg6[%c1_16, %c0_17, %c0_18] : memref<2x1x32xf32, #tpu.memory_space<vmem>>, vector<1x1x32xf32>
    %24 = vector.shape_cast %23 : vector<1x1x32xf32> to vector<1x32xf32>
    %25 = vector.broadcast %24 : vector<1x32xf32> to vector<48x32xf32>
    %26 = arith.addf %22, %25 : vector<48x32xf32>
    %cst_19 = arith.constant 0.000000e+00 : f32
    %27 = vector.broadcast %cst_19 : f32 to vector<48x32xf32>
    %28 = arith.maximumf %26, %27 : vector<48x32xf32>
    %29 = tpu.iota {dimensions = array<i32: 0>} : vector<8x48xi32>
    %30 = tpu.iota {dimensions = array<i32: 1>} : vector<8x48xi32>
    %c6_i32 = arith.constant 6 : i32
    %31 = vector.broadcast %c6_i32 : i32 to vector<8x48xi32>
    %32 = arith.muli %29, %31 : vector<8x48xi32>
    %33 = arith.cmpi sge, %30, %32 : vector<8x48xi32>
    %c1_i32 = arith.constant 1 : i32
    %34 = vector.broadcast %c1_i32 : i32 to vector<8x48xi32>
    %35 = arith.addi %29, %34 : vector<8x48xi32>
    %c6_i32_20 = arith.constant 6 : i32
    %36 = vector.broadcast %c6_i32_20 : i32 to vector<8x48xi32>
    %37 = arith.muli %35, %36 : vector<8x48xi32>
    %38 = arith.cmpi slt, %30, %37 : vector<8x48xi32>
    %39 = arith.andi %33, %38 : vector<8x48xi1>
    %40 = arith.extui %39 : vector<8x48xi1> to vector<8x48xi32>
    %41 = arith.sitofp %40 : vector<8x48xi32> to vector<8x48xf32>
    %cst_21 = arith.constant dense<0.000000e+00> : vector<8x32xf32>
    %42 = tpu.matmul %41, %28, %cst_21 {dimension_numbers = #tpu.dot_dimension_numbers<[1], [0], [0], [1], [0, 0, 1, 1], [], []>} : vector<8x48xf32>, vector<48x32xf32>, vector<8x32xf32> -> vector<8x32xf32>
    %c0_22 = arith.constant 0 : index
    %c0_23 = arith.constant 0 : index
    %43 = vector.load %arg9[%c0_22, %c0_23] : memref<16x8xf32, #tpu.memory_space<vmem>>, vector<16x8xf32>
    %44 = arith.mulf %43, %43 : vector<16x8xf32>
    %cst_24 = arith.constant dense<0.000000e+00> : vector<8xf32>
    %45 = vector.multi_reduction <add>, %44, %cst_24 [0] : vector<16x8xf32> to vector<8xf32>
    %46 = vector.shape_cast %45 : vector<8xf32> to vector<1x8xf32>
    %47 = tpu.iota {dimensions = array<i32: 0>} : vector<8x16xi32>
    %c4_i32 = arith.constant 4 : i32
    %48 = vector.broadcast %c4_i32 : i32 to vector<8x16xi32>
    %49 = arith.cmpi slt, %47, %48 : vector<8x16xi32>
    %50 = arith.extui %49 : vector<8x16xi1> to vector<8x16xi32>
    %51 = arith.sitofp %50 : vector<8x16xi32> to vector<8x16xf32>
    %c0_25 = arith.constant 0 : index
    %c0_26 = arith.constant 0 : index
    %52 = vector.load %arg11[%c0_25, %c0_26] : memref<1x32xf32, #tpu.memory_space<vmem>>, vector<1x32xf32>
    %cst_27 = arith.constant 0.000000e+00 : f32
    %53 = vector.broadcast %cst_27 : f32 to vector<8x16xf32>
    %c0_28 = arith.constant 0 : index
    %c0_29 = arith.constant 0 : index
    %c0_30 = arith.constant 0 : index
    %54 = vector.load %arg7[%c0_28, %c0_29, %c0_30] : memref<2x32x16xf32, #tpu.memory_space<vmem>>, vector<1x32x16xf32>
    %55 = vector.shape_cast %54 : vector<1x32x16xf32> to vector<32x16xf32>
    %cst_31 = arith.constant dense<0.000000e+00> : vector<8x16xf32>
    %56 = tpu.matmul %42, %55, %cst_31 {dimension_numbers = #tpu.dot_dimension_numbers<[1], [0], [0], [1], [0, 0, 1, 1], [], []>} : vector<8x32xf32>, vector<32x16xf32>, vector<8x16xf32> -> vector<8x16xf32>
    %c0_32 = arith.constant 0 : index
    %c0_33 = arith.constant 0 : index
    %c0_34 = arith.constant 0 : index
    %57 = vector.load %arg8[%c0_32, %c0_33, %c0_34] : memref<2x1x16xf32, #tpu.memory_space<vmem>>, vector<1x1x16xf32>
    %58 = vector.shape_cast %57 : vector<1x1x16xf32> to vector<1x16xf32>
    %59 = vector.broadcast %58 : vector<1x16xf32> to vector<8x16xf32>
    %60 = arith.addf %56, %59 : vector<8x16xf32>
    %cst_35 = arith.constant dense<0.000000e+00> : vector<8x8xf32>
    %61 = tpu.matmul %60, %43, %cst_35 {dimension_numbers = #tpu.dot_dimension_numbers<[1], [0], [0], [1], [0, 0, 1, 1], [], []>} : vector<8x16xf32>, vector<16x8xf32>, vector<8x8xf32> -> vector<8x8xf32>
    %62 = arith.mulf %60, %60 : vector<8x16xf32>
    %cst_36 = arith.constant dense<0.000000e+00> : vector<8xf32>
    %63 = vector.multi_reduction <add>, %62, %cst_36 [1] : vector<8x16xf32> to vector<8xf32>
    %64 = vector.shape_cast %63 : vector<8xf32> to vector<8x1xf32>
    %cst_37 = arith.constant 2.000000e+00 : f32
    %65 = vector.broadcast %cst_37 : f32 to vector<8x8xf32>
    %66 = arith.mulf %65, %61 : vector<8x8xf32>
    %67 = vector.broadcast %64 : vector<8x1xf32> to vector<8x8xf32>
    %68 = arith.subf %67, %66 : vector<8x8xf32>
    %69 = vector.broadcast %46 : vector<1x8xf32> to vector<8x8xf32>
    %70 = arith.addf %68, %69 : vector<8x8xf32>
    %71 = tpu.iota {dimensions = array<i32: 1>} : vector<8x8xi32>
    %cst_38 = arith.constant dense<0x7F800000> : vector<8xf32>
    %72 = vector.multi_reduction <minimumf>, %70, %cst_38 [1] : vector<8x8xf32> to vector<8xf32>
    %73 = vector.shape_cast %72 : vector<8xf32> to vector<8x1xf32>
    %74 = vector.broadcast %73 : vector<8x1xf32> to vector<8x8xf32>
    %75 = arith.cmpf ole, %70, %74 : vector<8x8xf32>
    %c8_i32 = arith.constant 8 : i32
    %76 = vector.broadcast %c8_i32 : i32 to vector<8x8xi32>
    %77 = arith.select %75, %71, %76 : vector<8x8xi1>, vector<8x8xi32>
    %cst_39 = arith.constant dense<2147483647> : vector<8xi32>
    %78 = vector.multi_reduction <minsi>, %77, %cst_39 [1] : vector<8x8xi32> to vector<8xi32>
    %79 = vector.shape_cast %78 : vector<8xi32> to vector<8x1xi32>
    %80 = vector.broadcast %79 : vector<8x1xi32> to vector<8x8xi32>
    %81 = arith.cmpi eq, %71, %80 : vector<8x8xi32>
    %82 = arith.extui %81 : vector<8x8xi1> to vector<8x8xi32>
    %83 = arith.sitofp %82 : vector<8x8xi32> to vector<8x8xf32>
    %cst_40 = arith.constant dense<0.000000e+00> : vector<8x16xf32>
    %84 = tpu.matmul %83, %43, %cst_40 {dimension_numbers = #tpu.dot_dimension_numbers<[1], [1], [0], [0], [0, 0, 1, 0], [], []>} : vector<8x8xf32>, vector<16x8xf32>, vector<8x16xf32> -> vector<8x16xf32>
    %85 = arith.subf %84, %60 : vector<8x16xf32>
    %86 = arith.mulf %85, %85 : vector<8x16xf32>
    %87 = arith.addf %53, %86 : vector<8x16xf32>
    %c0_41 = arith.constant 0 : index
    %c0_42 = arith.constant 0 : index
    %c0_43 = arith.constant 0 : index
    %88 = vector.load %arg10[%c0_41, %c0_42, %c0_43] : memref<2x16x32xf32, #tpu.memory_space<vmem>>, vector<1x16x32xf32>
    %89 = vector.shape_cast %88 : vector<1x16x32xf32> to vector<16x32xf32>
    %cst_44 = arith.constant dense<0.000000e+00> : vector<8x32xf32>
    %90 = tpu.matmul %84, %89, %cst_44 {dimension_numbers = #tpu.dot_dimension_numbers<[1], [0], [0], [1], [0, 0, 1, 1], [], []>} : vector<8x16xf32>, vector<16x32xf32>, vector<8x32xf32> -> vector<8x32xf32>
    %91 = vector.broadcast %52 : vector<1x32xf32> to vector<8x32xf32>
    %92 = arith.addf %91, %90 : vector<8x32xf32>
    %c1_45 = arith.constant 1 : index
    %c0_46 = arith.constant 0 : index
    %c0_47 = arith.constant 0 : index
    %93 = vector.load %arg7[%c1_45, %c0_46, %c0_47] : memref<2x32x16xf32, #tpu.memory_space<vmem>>, vector<1x32x16xf32>
    %94 = vector.shape_cast %93 : vector<1x32x16xf32> to vector<32x16xf32>
    %cst_48 = arith.constant dense<0.000000e+00> : vector<8x16xf32>
    %95 = tpu.matmul %42, %94, %cst_48 {dimension_numbers = #tpu.dot_dimension_numbers<[1], [0], [0], [1], [0, 0, 1, 1], [], []>} : vector<8x32xf32>, vector<32x16xf32>, vector<8x16xf32> -> vector<8x16xf32>
    %c1_49 = arith.constant 1 : index
    %c0_50 = arith.constant 0 : index
    %c0_51 = arith.constant 0 : index
    %96 = vector.load %arg8[%c1_49, %c0_50, %c0_51] : memref<2x1x16xf32, #tpu.memory_space<vmem>>, vector<1x1x16xf32>
    %97 = vector.shape_cast %96 : vector<1x1x16xf32> to vector<1x16xf32>
    %98 = vector.broadcast %97 : vector<1x16xf32> to vector<8x16xf32>
    %99 = arith.addf %95, %98 : vector<8x16xf32>
    %cst_52 = arith.constant dense<0.000000e+00> : vector<8x8xf32>
    %100 = tpu.matmul %99, %43, %cst_52 {dimension_numbers = #tpu.dot_dimension_numbers<[1], [0], [0], [1], [0, 0, 1, 1], [], []>} : vector<8x16xf32>, vector<16x8xf32>, vector<8x8xf32> -> vector<8x8xf32>
    %101 = arith.mulf %99, %99 : vector<8x16xf32>
    %cst_53 = arith.constant dense<0.000000e+00> : vector<8xf32>
    %102 = vector.multi_reduction <add>, %101, %cst_53 [1] : vector<8x16xf32> to vector<8xf32>
    %103 = vector.shape_cast %102 : vector<8xf32> to vector<8x1xf32>
    %cst_54 = arith.constant 2.000000e+00 : f32
    %104 = vector.broadcast %cst_54 : f32 to vector<8x8xf32>
    %105 = arith.mulf %104, %100 : vector<8x8xf32>
    %106 = vector.broadcast %103 : vector<8x1xf32> to vector<8x8xf32>
    %107 = arith.subf %106, %105 : vector<8x8xf32>
    %108 = vector.broadcast %46 : vector<1x8xf32> to vector<8x8xf32>
    %109 = arith.addf %107, %108 : vector<8x8xf32>
    %110 = tpu.iota {dimensions = array<i32: 1>} : vector<8x8xi32>
    %cst_55 = arith.constant dense<0x7F800000> : vector<8xf32>
    %111 = vector.multi_reduction <minimumf>, %109, %cst_55 [1] : vector<8x8xf32> to vector<8xf32>
    %112 = vector.shape_cast %111 : vector<8xf32> to vector<8x1xf32>
    %113 = vector.broadcast %112 : vector<8x1xf32> to vector<8x8xf32>
    %114 = arith.cmpf ole, %109, %113 : vector<8x8xf32>
    %c8_i32_56 = arith.constant 8 : i32
    %115 = vector.broadcast %c8_i32_56 : i32 to vector<8x8xi32>
    %116 = arith.select %114, %110, %115 : vector<8x8xi1>, vector<8x8xi32>
    %cst_57 = arith.constant dense<2147483647> : vector<8xi32>
    %117 = vector.multi_reduction <minsi>, %116, %cst_57 [1] : vector<8x8xi32> to vector<8xi32>
    %118 = vector.shape_cast %117 : vector<8xi32> to vector<8x1xi32>
    %119 = vector.broadcast %118 : vector<8x1xi32> to vector<8x8xi32>
    %120 = arith.cmpi eq, %110, %119 : vector<8x8xi32>
    %121 = arith.extui %120 : vector<8x8xi1> to vector<8x8xi32>
    %122 = arith.sitofp %121 : vector<8x8xi32> to vector<8x8xf32>
    %cst_58 = arith.constant dense<0.000000e+00> : vector<8x16xf32>
    %123 = tpu.matmul %122, %43, %cst_58 {dimension_numbers = #tpu.dot_dimension_numbers<[1], [1], [0], [0], [0, 0, 1, 0], [], []>} : vector<8x8xf32>, vector<16x8xf32>, vector<8x16xf32> -> vector<8x16xf32>
    %124 = arith.subf %123, %99 : vector<8x16xf32>
    %125 = arith.mulf %124, %124 : vector<8x16xf32>
    %126 = arith.addf %87, %125 : vector<8x16xf32>
    %c1_59 = arith.constant 1 : index
    %c0_60 = arith.constant 0 : index
    %c0_61 = arith.constant 0 : index
    %127 = vector.load %arg10[%c1_59, %c0_60, %c0_61] : memref<2x16x32xf32, #tpu.memory_space<vmem>>, vector<1x16x32xf32>
    %128 = vector.shape_cast %127 : vector<1x16x32xf32> to vector<16x32xf32>
    %cst_62 = arith.constant dense<0.000000e+00> : vector<8x32xf32>
    %129 = tpu.matmul %123, %128, %cst_62 {dimension_numbers = #tpu.dot_dimension_numbers<[1], [0], [0], [1], [0, 0, 1, 1], [], []>} : vector<8x16xf32>, vector<16x32xf32>, vector<8x32xf32> -> vector<8x32xf32>
    %130 = arith.addf %92, %129 : vector<8x32xf32>
    %131 = arith.mulf %126, %51 : vector<8x16xf32>
    %132 = vector.shape_cast %131 : vector<8x16xf32> to vector<1x8x16xf32>
    %cst_63 = arith.constant dense<0.000000e+00> : vector<1xf32>
    %133 = vector.multi_reduction <add>, %132, %cst_63 [1, 2] : vector<1x8x16xf32> to vector<1xf32>
    %134 = vector.shape_cast %133 : vector<1xf32> to vector<1x1x1xf32>
    %135 = vector.extract %134[0, 0, 0] : f32 from vector<1x1x1xf32>
    %136 = vector.broadcast %135 : f32 to vector<1x1xf32>
    %cst_64 = arith.constant 1.280000e+02 : f32
    %137 = vector.broadcast %cst_64 : f32 to vector<1x1xf32>
    %138 = arith.divf %136, %137 : vector<1x1xf32>
    %c0_65 = arith.constant 0 : index
    %c0_66 = arith.constant 0 : index
    %139 = vector.load %arg12[%c0_65, %c0_66] : memref<32x32xf32, #tpu.memory_space<vmem>>, vector<32x32xf32>
    %cst_67 = arith.constant dense<0.000000e+00> : vector<8x32xf32>
    %140 = tpu.matmul %130, %139, %cst_67 {dimension_numbers = #tpu.dot_dimension_numbers<[1], [0], [0], [1], [0, 0, 1, 1], [], []>} : vector<8x32xf32>, vector<32x32xf32>, vector<8x32xf32> -> vector<8x32xf32>
    %c0_68 = arith.constant 0 : index
    %c0_69 = arith.constant 0 : index
    %141 = vector.load %arg13[%c0_68, %c0_69] : memref<1x32xf32, #tpu.memory_space<vmem>>, vector<1x32xf32>
    %142 = vector.broadcast %141 : vector<1x32xf32> to vector<8x32xf32>
    %143 = arith.addf %140, %142 : vector<8x32xf32>
    %cst_70 = arith.constant 0.000000e+00 : f32
    %144 = vector.broadcast %cst_70 : f32 to vector<8x32xf32>
    %145 = arith.maximumf %143, %144 : vector<8x32xf32>
    %c0_71 = arith.constant 0 : index
    %c0_72 = arith.constant 0 : index
    %146 = vector.load %arg14[%c0_71, %c0_72] : memref<32x128xf32, #tpu.memory_space<vmem>>, vector<32x128xf32>
    %cst_73 = arith.constant dense<0.000000e+00> : vector<8x128xf32>
    %147 = tpu.matmul %145, %146, %cst_73 {dimension_numbers = #tpu.dot_dimension_numbers<[1], [0], [0], [1], [0, 0, 1, 1], [], []>} : vector<8x32xf32>, vector<32x128xf32>, vector<8x128xf32> -> vector<8x128xf32>
    %c0_74 = arith.constant 0 : index
    %c0_75 = arith.constant 0 : index
    %148 = vector.load %arg15[%c0_74, %c0_75] : memref<1x128xf32, #tpu.memory_space<vmem>>, vector<1x128xf32>
    %149 = vector.broadcast %148 : vector<1x128xf32> to vector<8x128xf32>
    %150 = arith.addf %147, %149 : vector<8x128xf32>
    %151 = tpu.iota {dimensions = array<i32: 1>} : vector<8x128xi32>
    %c2_i32 = arith.constant 2 : i32
    %152 = vector.broadcast %c2_i32 : i32 to vector<8x128xi32>
    %153 = arith.cmpi eq, %151, %152 : vector<8x128xi32>
    %154 = arith.extui %153 : vector<8x128xi1> to vector<8x128xi32>
    %155 = arith.sitofp %154 : vector<8x128xi32> to vector<8x128xf32>
    %156 = vector.broadcast %138 : vector<1x1xf32> to vector<8x128xf32>
    %157 = arith.mulf %155, %156 : vector<8x128xf32>
    %158 = arith.addf %150, %157 : vector<8x128xf32>
    %c0_76 = arith.constant 0 : index
    %c0_77 = arith.constant 0 : index
    %159 = vector.load %arg24[%c0_76, %c0_77] : memref<8x128xf32, #tpu.memory_space<vmem>>, vector<8x128xf32>
    tpu.vector_store %arg24[%c0_76, %c0_77], %158 {strides = array<i32>} : memref<8x128xf32, #tpu.memory_space<vmem>>, vector<8x128xf32>,
    %c0_78 = arith.constant 0 : index
    %c0_79 = arith.constant 0 : index
    %160 = vector.load %arg2[%c0_78, %c0_79] : memref<64x1xi32, #tpu.memory_space<vmem>>, vector<64x1xi32>
    %161 = tpu.iota {dimensions = array<i32: 1>} : vector<64x16xi32>
    %162 = vector.broadcast %160 : vector<64x1xi32> to vector<64x16xi32>
    %163 = arith.cmpi eq, %161, %162 : vector<64x16xi32>
    %164 = arith.extui %163 : vector<64x16xi1> to vector<64x16xi32>
    %165 = arith.sitofp %164 : vector<64x16xi32> to vector<64x16xf32>
    %c0_80 = arith.constant 0 : index
    %c0_81 = arith.constant 0 : index
    %166 = vector.load %arg16[%c0_80, %c0_81] : memref<16x32xf32, #tpu.memory_space<vmem>>, vector<16x32xf32>
    %cst_82 = arith.constant dense<0.000000e+00> : vector<64x32xf32>
    %167 = tpu.matmul %165, %166, %cst_82 {dimension_numbers = #tpu.dot_dimension_numbers<[1], [0], [0], [1], [0, 0, 1, 1], [], []>} : vector<64x16xf32>, vector<16x32xf32>, vector<64x32xf32> -> vector<64x32xf32>
    %c0_83 = arith.constant 0 : index
    %c0_84 = arith.constant 0 : index
    %c0_85 = arith.constant 0 : index
    %168 = vector.load %arg17[%c0_83, %c0_84, %c0_85] : memref<3x32x32xf32, #tpu.memory_space<vmem>>, vector<1x32x32xf32>
    %169 = vector.shape_cast %168 : vector<1x32x32xf32> to vector<32x32xf32>
    %cst_86 = arith.constant dense<0.000000e+00> : vector<64x32xf32>
    %170 = tpu.matmul %167, %169, %cst_86 {dimension_numbers = #tpu.dot_dimension_numbers<[1], [0], [0], [1], [0, 0, 1, 1], [], []>} : vector<64x32xf32>, vector<32x32xf32>, vector<64x32xf32> -> vector<64x32xf32>
    %c0_87 = arith.constant 0 : index
    %c0_88 = arith.constant 0 : index
    %c0_89 = arith.constant 0 : index
    %171 = vector.load %arg19[%c0_87, %c0_88, %c0_89] : memref<3x1x32xf32, #tpu.memory_space<vmem>>, vector<1x1x32xf32>
    %172 = vector.shape_cast %171 : vector<1x1x32xf32> to vector<1x32xf32>
    %173 = vector.broadcast %172 : vector<1x32xf32> to vector<64x32xf32>
    %174 = arith.addf %170, %173 : vector<64x32xf32>
    %c1_90 = arith.constant 1 : index
    %c0_91 = arith.constant 0 : index
    %c0_92 = arith.constant 0 : index
    %175 = vector.load %arg17[%c1_90, %c0_91, %c0_92] : memref<3x32x32xf32, #tpu.memory_space<vmem>>, vector<1x32x32xf32>
    %176 = vector.shape_cast %175 : vector<1x32x32xf32> to vector<32x32xf32>
    %cst_93 = arith.constant dense<0.000000e+00> : vector<64x32xf32>
    %177 = tpu.matmul %167, %176, %cst_93 {dimension_numbers = #tpu.dot_dimension_numbers<[1], [0], [0], [1], [0, 0, 1, 1], [], []>} : vector<64x32xf32>, vector<32x32xf32>, vector<64x32xf32> -> vector<64x32xf32>
    %c1_94 = arith.constant 1 : index
    %c0_95 = arith.constant 0 : index
    %c0_96 = arith.constant 0 : index
    %178 = vector.load %arg19[%c1_94, %c0_95, %c0_96] : memref<3x1x32xf32, #tpu.memory_space<vmem>>, vector<1x1x32xf32>
    %179 = vector.shape_cast %178 : vector<1x1x32xf32> to vector<1x32xf32>
    %180 = vector.broadcast %179 : vector<1x32xf32> to vector<64x32xf32>
    %181 = arith.addf %177, %180 : vector<64x32xf32>
    %c2 = arith.constant 2 : index
    %c0_97 = arith.constant 0 : index
    %c0_98 = arith.constant 0 : index
    %182 = vector.load %arg17[%c2, %c0_97, %c0_98] : memref<3x32x32xf32, #tpu.memory_space<vmem>>, vector<1x32x32xf32>
    %183 = vector.shape_cast %182 : vector<1x32x32xf32> to vector<32x32xf32>
    %cst_99 = arith.constant dense<0.000000e+00> : vector<64x32xf32>
    %184 = tpu.matmul %167, %183, %cst_99 {dimension_numbers = #tpu.dot_dimension_numbers<[1], [0], [0], [1], [0, 0, 1, 1], [], []>} : vector<64x32xf32>, vector<32x32xf32>, vector<64x32xf32> -> vector<64x32xf32>
    %c2_100 = arith.constant 2 : index
    %c0_101 = arith.constant 0 : index
    %c0_102 = arith.constant 0 : index
    %185 = vector.load %arg19[%c2_100, %c0_101, %c0_102] : memref<3x1x32xf32, #tpu.memory_space<vmem>>, vector<1x1x32xf32>
    %186 = vector.shape_cast %185 : vector<1x1x32xf32> to vector<1x32xf32>
    %187 = vector.broadcast %186 : vector<1x32xf32> to vector<64x32xf32>
    %188 = arith.addf %184, %187 : vector<64x32xf32>
    %c0_103 = arith.constant 0 : index
    %c0_104 = arith.constant 0 : index
    %c0_105 = arith.constant 0 : index
    %189 = vector.load %arg18[%c0_103, %c0_104, %c0_105] : memref<3x32x32xf32, #tpu.memory_space<vmem>>, vector<1x32x32xf32>
    %190 = vector.shape_cast %189 : vector<1x32x32xf32> to vector<32x32xf32>
    %c1_106 = arith.constant 1 : index
    %c0_107 = arith.constant 0 : index
    %c0_108 = arith.constant 0 : index
    %191 = vector.load %arg18[%c1_106, %c0_107, %c0_108] : memref<3x32x32xf32, #tpu.memory_space<vmem>>, vector<1x32x32xf32>
    %192 = vector.shape_cast %191 : vector<1x32x32xf32> to vector<32x32xf32>
    %c2_109 = arith.constant 2 : index
    %c0_110 = arith.constant 0 : index
    %c0_111 = arith.constant 0 : index
    %193 = vector.load %arg18[%c2_109, %c0_110, %c0_111] : memref<3x32x32xf32, #tpu.memory_space<vmem>>, vector<1x32x32xf32>
    %194 = vector.shape_cast %193 : vector<1x32x32xf32> to vector<32x32xf32>
    %c0_112 = arith.constant 0 : index
    %c0_113 = arith.constant 0 : index
    %c0_114 = arith.constant 0 : index
    %195 = vector.load %arg20[%c0_112, %c0_113, %c0_114] : memref<3x1x32xf32, #tpu.memory_space<vmem>>, vector<1x1x32xf32>
    %196 = vector.shape_cast %195 : vector<1x1x32xf32> to vector<1x32xf32>
    %c1_115 = arith.constant 1 : index
    %c0_116 = arith.constant 0 : index
    %c0_117 = arith.constant 0 : index
    %197 = vector.load %arg20[%c1_115, %c0_116, %c0_117] : memref<3x1x32xf32, #tpu.memory_space<vmem>>, vector<1x1x32xf32>
    %198 = vector.shape_cast %197 : vector<1x1x32xf32> to vector<1x32xf32>
    %c2_118 = arith.constant 2 : index
    %c0_119 = arith.constant 0 : index
    %c0_120 = arith.constant 0 : index
    %199 = vector.load %arg20[%c2_118, %c0_119, %c0_120] : memref<3x1x32xf32, #tpu.memory_space<vmem>>, vector<1x1x32xf32>
    %200 = vector.shape_cast %199 : vector<1x1x32xf32> to vector<1x32xf32>
    %cst_121 = arith.constant dense<0.000000e+00> : vector<8x32xf32>
    %201 = tpu.matmul %130, %190, %cst_121 {dimension_numbers = #tpu.dot_dimension_numbers<[1], [0], [0], [1], [0, 0, 1, 1], [], []>} : vector<8x32xf32>, vector<32x32xf32>, vector<8x32xf32> -> vector<8x32xf32>
    %202 = vector.broadcast %196 : vector<1x32xf32> to vector<8x32xf32>
    %203 = arith.addf %201, %202 : vector<8x32xf32>
    %cst_122 = arith.constant dense<0.000000e+00> : vector<8x32xf32>
    %204 = tpu.matmul %130, %192, %cst_122 {dimension_numbers = #tpu.dot_dimension_numbers<[1], [0], [0], [1], [0, 0, 1, 1], [], []>} : vector<8x32xf32>, vector<32x32xf32>, vector<8x32xf32> -> vector<8x32xf32>
    %205 = vector.broadcast %198 : vector<1x32xf32> to vector<8x32xf32>
    %206 = arith.addf %204, %205 : vector<8x32xf32>
    %cst_123 = arith.constant dense<0.000000e+00> : vector<8x32xf32>
    %207 = tpu.matmul %130, %194, %cst_123 {dimension_numbers = #tpu.dot_dimension_numbers<[1], [0], [0], [1], [0, 0, 1, 1], [], []>} : vector<8x32xf32>, vector<32x32xf32>, vector<8x32xf32> -> vector<8x32xf32>
    %208 = vector.broadcast %200 : vector<1x32xf32> to vector<8x32xf32>
    %209 = arith.addf %207, %208 : vector<8x32xf32>
    %210 = vector.extract_strided_slice %174 {offsets = [0, 0], sizes = [8, 32], strides = [1, 1]} : vector<64x32xf32> to vector<8x32xf32>
    %211 = arith.addf %210, %203 : vector<8x32xf32>
    %212 = arith.negf %211 : vector<8x32xf32>
    %213 = math.exp %212 : vector<8x32xf32>
    %cst_124 = arith.constant 1.000000e+00 : f32
    %214 = vector.broadcast %cst_124 : f32 to vector<8x32xf32>
    %215 = arith.addf %214, %213 : vector<8x32xf32>
    %216 = arith.divf %214, %215 : vector<8x32xf32>
    %217 = vector.extract_strided_slice %181 {offsets = [0, 0], sizes = [8, 32], strides = [1, 1]} : vector<64x32xf32> to vector<8x32xf32>
    %218 = arith.addf %217, %206 : vector<8x32xf32>
    %219 = arith.negf %218 : vector<8x32xf32>
    %220 = math.exp %219 : vector<8x32xf32>
    %cst_125 = arith.constant 1.000000e+00 : f32
    %221 = vector.broadcast %cst_125 : f32 to vector<8x32xf32>
    %222 = arith.addf %221, %220 : vector<8x32xf32>
    %223 = arith.divf %221, %222 : vector<8x32xf32>
    %224 = vector.extract_strided_slice %188 {offsets = [0, 0], sizes = [8, 32], strides = [1, 1]} : vector<64x32xf32> to vector<8x32xf32>
    %225 = arith.mulf %216, %209 : vector<8x32xf32>
    %226 = arith.addf %224, %225 : vector<8x32xf32>
    %227 = math.tanh %226 : vector<8x32xf32>
    %cst_126 = arith.constant 1.000000e+00 : f32
    %228 = vector.broadcast %cst_126 : f32 to vector<8x32xf32>
    %229 = arith.subf %228, %223 : vector<8x32xf32>
    %230 = arith.mulf %229, %227 : vector<8x32xf32>
    %231 = arith.mulf %223, %130 : vector<8x32xf32>
    %232 = arith.addf %230, %231 : vector<8x32xf32>
    %c0_127 = arith.constant 0 : index
    %c0_128 = arith.constant 0 : index
    %233 = vector.load %arg25[%c0_127, %c0_128] : memref<64x32xf32, #tpu.memory_space<vmem>>, vector<8x32xf32>
    tpu.vector_store %arg25[%c0_127, %c0_128], %232 {strides = array<i32>} : memref<64x32xf32, #tpu.memory_space<vmem>>, vector<8x32xf32>,
    %cst_129 = arith.constant dense<0.000000e+00> : vector<8x32xf32>
    %234 = tpu.matmul %232, %190, %cst_129 {dimension_numbers = #tpu.dot_dimension_numbers<[1], [0], [0], [1], [0, 0, 1, 1], [], []>} : vector<8x32xf32>, vector<32x32xf32>, vector<8x32xf32> -> vector<8x32xf32>
    %235 = vector.broadcast %196 : vector<1x32xf32> to vector<8x32xf32>
    %236 = arith.addf %234, %235 : vector<8x32xf32>
    %cst_130 = arith.constant dense<0.000000e+00> : vector<8x32xf32>
    %237 = tpu.matmul %232, %192, %cst_130 {dimension_numbers = #tpu.dot_dimension_numbers<[1], [0], [0], [1], [0, 0, 1, 1], [], []>} : vector<8x32xf32>, vector<32x32xf32>, vector<8x32xf32> -> vector<8x32xf32>
    %238 = vector.broadcast %198 : vector<1x32xf32> to vector<8x32xf32>
    %239 = arith.addf %237, %238 : vector<8x32xf32>
    %cst_131 = arith.constant dense<0.000000e+00> : vector<8x32xf32>
    %240 = tpu.matmul %232, %194, %cst_131 {dimension_numbers = #tpu.dot_dimension_numbers<[1], [0], [0], [1], [0, 0, 1, 1], [], []>} : vector<8x32xf32>, vector<32x32xf32>, vector<8x32xf32> -> vector<8x32xf32>
    %241 = vector.broadcast %200 : vector<1x32xf32> to vector<8x32xf32>
    %242 = arith.addf %240, %241 : vector<8x32xf32>
    %243 = vector.extract_strided_slice %174 {offsets = [8, 0], sizes = [8, 32], strides = [1, 1]} : vector<64x32xf32> to vector<8x32xf32>
    %244 = arith.addf %243, %236 : vector<8x32xf32>
    %245 = arith.negf %244 : vector<8x32xf32>
    %246 = math.exp %245 : vector<8x32xf32>
    %cst_132 = arith.constant 1.000000e+00 : f32
    %247 = vector.broadcast %cst_132 : f32 to vector<8x32xf32>
    %248 = arith.addf %247, %246 : vector<8x32xf32>
    %249 = arith.divf %247, %248 : vector<8x32xf32>
    %250 = vector.extract_strided_slice %181 {offsets = [8, 0], sizes = [8, 32], strides = [1, 1]} : vector<64x32xf32> to vector<8x32xf32>
    %251 = arith.addf %250, %239 : vector<8x32xf32>
    %252 = arith.negf %251 : vector<8x32xf32>
    %253 = math.exp %252 : vector<8x32xf32>
    %cst_133 = arith.constant 1.000000e+00 : f32
    %254 = vector.broadcast %cst_133 : f32 to vector<8x32xf32>
    %255 = arith.addf %254, %253 : vector<8x32xf32>
    %256 = arith.divf %254, %255 : vector<8x32xf32>
    %257 = vector.extract_strided_slice %188 {offsets = [8, 0], sizes = [8, 32], strides = [1, 1]} : vector<64x32xf32> to vector<8x32xf32>
    %258 = arith.mulf %249, %242 : vector<8x32xf32>
    %259 = arith.addf %257, %258 : vector<8x32xf32>
    %260 = math.tanh %259 : vector<8x32xf32>
    %cst_134 = arith.constant 1.000000e+00 : f32
    %261 = vector.broadcast %cst_134 : f32 to vector<8x32xf32>
    %262 = arith.subf %261, %256 : vector<8x32xf32>
    %263 = arith.mulf %262, %260 : vector<8x32xf32>
    %264 = arith.mulf %256, %232 : vector<8x32xf32>
    %265 = arith.addf %263, %264 : vector<8x32xf32>
    %c8 = arith.constant 8 : index
    %c0_135 = arith.constant 0 : index
    %266 = vector.load %arg25[%c8, %c0_135] : memref<64x32xf32, #tpu.memory_space<vmem>>, vector<8x32xf32>
    tpu.vector_store %arg25[%c8, %c0_135], %265 {strides = array<i32>} : memref<64x32xf32, #tpu.memory_space<vmem>>, vector<8x32xf32>,
    %cst_136 = arith.constant dense<0.000000e+00> : vector<8x32xf32>
    %267 = tpu.matmul %265, %190, %cst_136 {dimension_numbers = #tpu.dot_dimension_numbers<[1], [0], [0], [1], [0, 0, 1, 1], [], []>} : vector<8x32xf32>, vector<32x32xf32>, vector<8x32xf32> -> vector<8x32xf32>
    %268 = vector.broadcast %196 : vector<1x32xf32> to vector<8x32xf32>
    %269 = arith.addf %267, %268 : vector<8x32xf32>
    %cst_137 = arith.constant dense<0.000000e+00> : vector<8x32xf32>
    %270 = tpu.matmul %265, %192, %cst_137 {dimension_numbers = #tpu.dot_dimension_numbers<[1], [0], [0], [1], [0, 0, 1, 1], [], []>} : vector<8x32xf32>, vector<32x32xf32>, vector<8x32xf32> -> vector<8x32xf32>
    %271 = vector.broadcast %198 : vector<1x32xf32> to vector<8x32xf32>
    %272 = arith.addf %270, %271 : vector<8x32xf32>
    %cst_138 = arith.constant dense<0.000000e+00> : vector<8x32xf32>
    %273 = tpu.matmul %265, %194, %cst_138 {dimension_numbers = #tpu.dot_dimension_numbers<[1], [0], [0], [1], [0, 0, 1, 1], [], []>} : vector<8x32xf32>, vector<32x32xf32>, vector<8x32xf32> -> vector<8x32xf32>
    %274 = vector.broadcast %200 : vector<1x32xf32> to vector<8x32xf32>
    %275 = arith.addf %273, %274 : vector<8x32xf32>
    %276 = vector.extract_strided_slice %174 {offsets = [16, 0], sizes = [8, 32], strides = [1, 1]} : vector<64x32xf32> to vector<8x32xf32>
    %277 = arith.addf %276, %269 : vector<8x32xf32>
    %278 = arith.negf %277 : vector<8x32xf32>
    %279 = math.exp %278 : vector<8x32xf32>
    %cst_139 = arith.constant 1.000000e+00 : f32
    %280 = vector.broadcast %cst_139 : f32 to vector<8x32xf32>
    %281 = arith.addf %280, %279 : vector<8x32xf32>
    %282 = arith.divf %280, %281 : vector<8x32xf32>
    %283 = vector.extract_strided_slice %181 {offsets = [16, 0], sizes = [8, 32], strides = [1, 1]} : vector<64x32xf32> to vector<8x32xf32>
    %284 = arith.addf %283, %272 : vector<8x32xf32>
    %285 = arith.negf %284 : vector<8x32xf32>
    %286 = math.exp %285 : vector<8x32xf32>
    %cst_140 = arith.constant 1.000000e+00 : f32
    %287 = vector.broadcast %cst_140 : f32 to vector<8x32xf32>
    %288 = arith.addf %287, %286 : vector<8x32xf32>
    %289 = arith.divf %287, %288 : vector<8x32xf32>
    %290 = vector.extract_strided_slice %188 {offsets = [16, 0], sizes = [8, 32], strides = [1, 1]} : vector<64x32xf32> to vector<8x32xf32>
    %291 = arith.mulf %282, %275 : vector<8x32xf32>
    %292 = arith.addf %290, %291 : vector<8x32xf32>
    %293 = math.tanh %292 : vector<8x32xf32>
    %cst_141 = arith.constant 1.000000e+00 : f32
    %294 = vector.broadcast %cst_141 : f32 to vector<8x32xf32>
    %295 = arith.subf %294, %289 : vector<8x32xf32>
    %296 = arith.mulf %295, %293 : vector<8x32xf32>
    %297 = arith.mulf %289, %265 : vector<8x32xf32>
    %298 = arith.addf %296, %297 : vector<8x32xf32>
    %c16 = arith.constant 16 : index
    %c0_142 = arith.constant 0 : index
    %299 = vector.load %arg25[%c16, %c0_142] : memref<64x32xf32, #tpu.memory_space<vmem>>, vector<8x32xf32>
    tpu.vector_store %arg25[%c16, %c0_142], %298 {strides = array<i32>} : memref<64x32xf32, #tpu.memory_space<vmem>>, vector<8x32xf32>,
    %cst_143 = arith.constant dense<0.000000e+00> : vector<8x32xf32>
    %300 = tpu.matmul %298, %190, %cst_143 {dimension_numbers = #tpu.dot_dimension_numbers<[1], [0], [0], [1], [0, 0, 1, 1], [], []>} : vector<8x32xf32>, vector<32x32xf32>, vector<8x32xf32> -> vector<8x32xf32>
    %301 = vector.broadcast %196 : vector<1x32xf32> to vector<8x32xf32>
    %302 = arith.addf %300, %301 : vector<8x32xf32>
    %cst_144 = arith.constant dense<0.000000e+00> : vector<8x32xf32>
    %303 = tpu.matmul %298, %192, %cst_144 {dimension_numbers = #tpu.dot_dimension_numbers<[1], [0], [0], [1], [0, 0, 1, 1], [], []>} : vector<8x32xf32>, vector<32x32xf32>, vector<8x32xf32> -> vector<8x32xf32>
    %304 = vector.broadcast %198 : vector<1x32xf32> to vector<8x32xf32>
    %305 = arith.addf %303, %304 : vector<8x32xf32>
    %cst_145 = arith.constant dense<0.000000e+00> : vector<8x32xf32>
    %306 = tpu.matmul %298, %194, %cst_145 {dimension_numbers = #tpu.dot_dimension_numbers<[1], [0], [0], [1], [0, 0, 1, 1], [], []>} : vector<8x32xf32>, vector<32x32xf32>, vector<8x32xf32> -> vector<8x32xf32>
    %307 = vector.broadcast %200 : vector<1x32xf32> to vector<8x32xf32>
    %308 = arith.addf %306, %307 : vector<8x32xf32>
    %309 = vector.extract_strided_slice %174 {offsets = [24, 0], sizes = [8, 32], strides = [1, 1]} : vector<64x32xf32> to vector<8x32xf32>
    %310 = arith.addf %309, %302 : vector<8x32xf32>
    %311 = arith.negf %310 : vector<8x32xf32>
    %312 = math.exp %311 : vector<8x32xf32>
    %cst_146 = arith.constant 1.000000e+00 : f32
    %313 = vector.broadcast %cst_146 : f32 to vector<8x32xf32>
    %314 = arith.addf %313, %312 : vector<8x32xf32>
    %315 = arith.divf %313, %314 : vector<8x32xf32>
    %316 = vector.extract_strided_slice %181 {offsets = [24, 0], sizes = [8, 32], strides = [1, 1]} : vector<64x32xf32> to vector<8x32xf32>
    %317 = arith.addf %316, %305 : vector<8x32xf32>
    %318 = arith.negf %317 : vector<8x32xf32>
    %319 = math.exp %318 : vector<8x32xf32>
    %cst_147 = arith.constant 1.000000e+00 : f32
    %320 = vector.broadcast %cst_147 : f32 to vector<8x32xf32>
    %321 = arith.addf %320, %319 : vector<8x32xf32>
    %322 = arith.divf %320, %321 : vector<8x32xf32>
    %323 = vector.extract_strided_slice %188 {offsets = [24, 0], sizes = [8, 32], strides = [1, 1]} : vector<64x32xf32> to vector<8x32xf32>
    %324 = arith.mulf %315, %308 : vector<8x32xf32>
    %325 = arith.addf %323, %324 : vector<8x32xf32>
    %326 = math.tanh %325 : vector<8x32xf32>
    %cst_148 = arith.constant 1.000000e+00 : f32
    %327 = vector.broadcast %cst_148 : f32 to vector<8x32xf32>
    %328 = arith.subf %327, %322 : vector<8x32xf32>
    %329 = arith.mulf %328, %326 : vector<8x32xf32>
    %330 = arith.mulf %322, %298 : vector<8x32xf32>
    %331 = arith.addf %329, %330 : vector<8x32xf32>
    %c24 = arith.constant 24 : index
    %c0_149 = arith.constant 0 : index
    %332 = vector.load %arg25[%c24, %c0_149] : memref<64x32xf32, #tpu.memory_space<vmem>>, vector<8x32xf32>
    tpu.vector_store %arg25[%c24, %c0_149], %331 {strides = array<i32>} : memref<64x32xf32, #tpu.memory_space<vmem>>, vector<8x32xf32>,
    %cst_150 = arith.constant dense<0.000000e+00> : vector<8x32xf32>
    %333 = tpu.matmul %331, %190, %cst_150 {dimension_numbers = #tpu.dot_dimension_numbers<[1], [0], [0], [1], [0, 0, 1, 1], [], []>} : vector<8x32xf32>, vector<32x32xf32>, vector<8x32xf32> -> vector<8x32xf32>
    %334 = vector.broadcast %196 : vector<1x32xf32> to vector<8x32xf32>
    %335 = arith.addf %333, %334 : vector<8x32xf32>
    %cst_151 = arith.constant dense<0.000000e+00> : vector<8x32xf32>
    %336 = tpu.matmul %331, %192, %cst_151 {dimension_numbers = #tpu.dot_dimension_numbers<[1], [0], [0], [1], [0, 0, 1, 1], [], []>} : vector<8x32xf32>, vector<32x32xf32>, vector<8x32xf32> -> vector<8x32xf32>
    %337 = vector.broadcast %198 : vector<1x32xf32> to vector<8x32xf32>
    %338 = arith.addf %336, %337 : vector<8x32xf32>
    %cst_152 = arith.constant dense<0.000000e+00> : vector<8x32xf32>
    %339 = tpu.matmul %331, %194, %cst_152 {dimension_numbers = #tpu.dot_dimension_numbers<[1], [0], [0], [1], [0, 0, 1, 1], [], []>} : vector<8x32xf32>, vector<32x32xf32>, vector<8x32xf32> -> vector<8x32xf32>
    %340 = vector.broadcast %200 : vector<1x32xf32> to vector<8x32xf32>
    %341 = arith.addf %339, %340 : vector<8x32xf32>
    %342 = vector.extract_strided_slice %174 {offsets = [32, 0], sizes = [8, 32], strides = [1, 1]} : vector<64x32xf32> to vector<8x32xf32>
    %343 = arith.addf %342, %335 : vector<8x32xf32>
    %344 = arith.negf %343 : vector<8x32xf32>
    %345 = math.exp %344 : vector<8x32xf32>
    %cst_153 = arith.constant 1.000000e+00 : f32
    %346 = vector.broadcast %cst_153 : f32 to vector<8x32xf32>
    %347 = arith.addf %346, %345 : vector<8x32xf32>
    %348 = arith.divf %346, %347 : vector<8x32xf32>
    %349 = vector.extract_strided_slice %181 {offsets = [32, 0], sizes = [8, 32], strides = [1, 1]} : vector<64x32xf32> to vector<8x32xf32>
    %350 = arith.addf %349, %338 : vector<8x32xf32>
    %351 = arith.negf %350 : vector<8x32xf32>
    %352 = math.exp %351 : vector<8x32xf32>
    %cst_154 = arith.constant 1.000000e+00 : f32
    %353 = vector.broadcast %cst_154 : f32 to vector<8x32xf32>
    %354 = arith.addf %353, %352 : vector<8x32xf32>
    %355 = arith.divf %353, %354 : vector<8x32xf32>
    %356 = vector.extract_strided_slice %188 {offsets = [32, 0], sizes = [8, 32], strides = [1, 1]} : vector<64x32xf32> to vector<8x32xf32>
    %357 = arith.mulf %348, %341 : vector<8x32xf32>
    %358 = arith.addf %356, %357 : vector<8x32xf32>
    %359 = math.tanh %358 : vector<8x32xf32>
    %cst_155 = arith.constant 1.000000e+00 : f32
    %360 = vector.broadcast %cst_155 : f32 to vector<8x32xf32>
    %361 = arith.subf %360, %355 : vector<8x32xf32>
    %362 = arith.mulf %361, %359 : vector<8x32xf32>
    %363 = arith.mulf %355, %331 : vector<8x32xf32>
    %364 = arith.addf %362, %363 : vector<8x32xf32>
    %c32 = arith.constant 32 : index
    %c0_156 = arith.constant 0 : index
    %365 = vector.load %arg25[%c32, %c0_156] : memref<64x32xf32, #tpu.memory_space<vmem>>, vector<8x32xf32>
    tpu.vector_store %arg25[%c32, %c0_156], %364 {strides = array<i32>} : memref<64x32xf32, #tpu.memory_space<vmem>>, vector<8x32xf32>,
    %cst_157 = arith.constant dense<0.000000e+00> : vector<8x32xf32>
    %366 = tpu.matmul %364, %190, %cst_157 {dimension_numbers = #tpu.dot_dimension_numbers<[1], [0], [0], [1], [0, 0, 1, 1], [], []>} : vector<8x32xf32>, vector<32x32xf32>, vector<8x32xf32> -> vector<8x32xf32>
    %367 = vector.broadcast %196 : vector<1x32xf32> to vector<8x32xf32>
    %368 = arith.addf %366, %367 : vector<8x32xf32>
    %cst_158 = arith.constant dense<0.000000e+00> : vector<8x32xf32>
    %369 = tpu.matmul %364, %192, %cst_158 {dimension_numbers = #tpu.dot_dimension_numbers<[1], [0], [0], [1], [0, 0, 1, 1], [], []>} : vector<8x32xf32>, vector<32x32xf32>, vector<8x32xf32> -> vector<8x32xf32>
    %370 = vector.broadcast %198 : vector<1x32xf32> to vector<8x32xf32>
    %371 = arith.addf %369, %370 : vector<8x32xf32>
    %cst_159 = arith.constant dense<0.000000e+00> : vector<8x32xf32>
    %372 = tpu.matmul %364, %194, %cst_159 {dimension_numbers = #tpu.dot_dimension_numbers<[1], [0], [0], [1], [0, 0, 1, 1], [], []>} : vector<8x32xf32>, vector<32x32xf32>, vector<8x32xf32> -> vector<8x32xf32>
    %373 = vector.broadcast %200 : vector<1x32xf32> to vector<8x32xf32>
    %374 = arith.addf %372, %373 : vector<8x32xf32>
    %375 = vector.extract_strided_slice %174 {offsets = [40, 0], sizes = [8, 32], strides = [1, 1]} : vector<64x32xf32> to vector<8x32xf32>
    %376 = arith.addf %375, %368 : vector<8x32xf32>
    %377 = arith.negf %376 : vector<8x32xf32>
    %378 = math.exp %377 : vector<8x32xf32>
    %cst_160 = arith.constant 1.000000e+00 : f32
    %379 = vector.broadcast %cst_160 : f32 to vector<8x32xf32>
    %380 = arith.addf %379, %378 : vector<8x32xf32>
    %381 = arith.divf %379, %380 : vector<8x32xf32>
    %382 = vector.extract_strided_slice %181 {offsets = [40, 0], sizes = [8, 32], strides = [1, 1]} : vector<64x32xf32> to vector<8x32xf32>
    %383 = arith.addf %382, %371 : vector<8x32xf32>
    %384 = arith.negf %383 : vector<8x32xf32>
    %385 = math.exp %384 : vector<8x32xf32>
    %cst_161 = arith.constant 1.000000e+00 : f32
    %386 = vector.broadcast %cst_161 : f32 to vector<8x32xf32>
    %387 = arith.addf %386, %385 : vector<8x32xf32>
    %388 = arith.divf %386, %387 : vector<8x32xf32>
    %389 = vector.extract_strided_slice %188 {offsets = [40, 0], sizes = [8, 32], strides = [1, 1]} : vector<64x32xf32> to vector<8x32xf32>
    %390 = arith.mulf %381, %374 : vector<8x32xf32>
    %391 = arith.addf %389, %390 : vector<8x32xf32>
    %392 = math.tanh %391 : vector<8x32xf32>
    %cst_162 = arith.constant 1.000000e+00 : f32
    %393 = vector.broadcast %cst_162 : f32 to vector<8x32xf32>
    %394 = arith.subf %393, %388 : vector<8x32xf32>
    %395 = arith.mulf %394, %392 : vector<8x32xf32>
    %396 = arith.mulf %388, %364 : vector<8x32xf32>
    %397 = arith.addf %395, %396 : vector<8x32xf32>
    %c40 = arith.constant 40 : index
    %c0_163 = arith.constant 0 : index
    %398 = vector.load %arg25[%c40, %c0_163] : memref<64x32xf32, #tpu.memory_space<vmem>>, vector<8x32xf32>
    tpu.vector_store %arg25[%c40, %c0_163], %397 {strides = array<i32>} : memref<64x32xf32, #tpu.memory_space<vmem>>, vector<8x32xf32>,
    %cst_164 = arith.constant dense<0.000000e+00> : vector<8x32xf32>
    %399 = tpu.matmul %397, %190, %cst_164 {dimension_numbers = #tpu.dot_dimension_numbers<[1], [0], [0], [1], [0, 0, 1, 1], [], []>} : vector<8x32xf32>, vector<32x32xf32>, vector<8x32xf32> -> vector<8x32xf32>
    %400 = vector.broadcast %196 : vector<1x32xf32> to vector<8x32xf32>
    %401 = arith.addf %399, %400 : vector<8x32xf32>
    %cst_165 = arith.constant dense<0.000000e+00> : vector<8x32xf32>
    %402 = tpu.matmul %397, %192, %cst_165 {dimension_numbers = #tpu.dot_dimension_numbers<[1], [0], [0], [1], [0, 0, 1, 1], [], []>} : vector<8x32xf32>, vector<32x32xf32>, vector<8x32xf32> -> vector<8x32xf32>
    %403 = vector.broadcast %198 : vector<1x32xf32> to vector<8x32xf32>
    %404 = arith.addf %402, %403 : vector<8x32xf32>
    %cst_166 = arith.constant dense<0.000000e+00> : vector<8x32xf32>
    %405 = tpu.matmul %397, %194, %cst_166 {dimension_numbers = #tpu.dot_dimension_numbers<[1], [0], [0], [1], [0, 0, 1, 1], [], []>} : vector<8x32xf32>, vector<32x32xf32>, vector<8x32xf32> -> vector<8x32xf32>
    %406 = vector.broadcast %200 : vector<1x32xf32> to vector<8x32xf32>
    %407 = arith.addf %405, %406 : vector<8x32xf32>
    %408 = vector.extract_strided_slice %174 {offsets = [48, 0], sizes = [8, 32], strides = [1, 1]} : vector<64x32xf32> to vector<8x32xf32>
    %409 = arith.addf %408, %401 : vector<8x32xf32>
    %410 = arith.negf %409 : vector<8x32xf32>
    %411 = math.exp %410 : vector<8x32xf32>
    %cst_167 = arith.constant 1.000000e+00 : f32
    %412 = vector.broadcast %cst_167 : f32 to vector<8x32xf32>
    %413 = arith.addf %412, %411 : vector<8x32xf32>
    %414 = arith.divf %412, %413 : vector<8x32xf32>
    %415 = vector.extract_strided_slice %181 {offsets = [48, 0], sizes = [8, 32], strides = [1, 1]} : vector<64x32xf32> to vector<8x32xf32>
    %416 = arith.addf %415, %404 : vector<8x32xf32>
    %417 = arith.negf %416 : vector<8x32xf32>
    %418 = math.exp %417 : vector<8x32xf32>
    %cst_168 = arith.constant 1.000000e+00 : f32
    %419 = vector.broadcast %cst_168 : f32 to vector<8x32xf32>
    %420 = arith.addf %419, %418 : vector<8x32xf32>
    %421 = arith.divf %419, %420 : vector<8x32xf32>
    %422 = vector.extract_strided_slice %188 {offsets = [48, 0], sizes = [8, 32], strides = [1, 1]} : vector<64x32xf32> to vector<8x32xf32>
    %423 = arith.mulf %414, %407 : vector<8x32xf32>
    %424 = arith.addf %422, %423 : vector<8x32xf32>
    %425 = math.tanh %424 : vector<8x32xf32>
    %cst_169 = arith.constant 1.000000e+00 : f32
    %426 = vector.broadcast %cst_169 : f32 to vector<8x32xf32>
    %427 = arith.subf %426, %421 : vector<8x32xf32>
    %428 = arith.mulf %427, %425 : vector<8x32xf32>
    %429 = arith.mulf %421, %397 : vector<8x32xf32>
    %430 = arith.addf %428, %429 : vector<8x32xf32>
    %c48 = arith.constant 48 : index
    %c0_170 = arith.constant 0 : index
    %431 = vector.load %arg25[%c48, %c0_170] : memref<64x32xf32, #tpu.memory_space<vmem>>, vector<8x32xf32>
    tpu.vector_store %arg25[%c48, %c0_170], %430 {strides = array<i32>} : memref<64x32xf32, #tpu.memory_space<vmem>>, vector<8x32xf32>,
    %cst_171 = arith.constant dense<0.000000e+00> : vector<8x32xf32>
    %432 = tpu.matmul %430, %190, %cst_171 {dimension_numbers = #tpu.dot_dimension_numbers<[1], [0], [0], [1], [0, 0, 1, 1], [], []>} : vector<8x32xf32>, vector<32x32xf32>, vector<8x32xf32> -> vector<8x32xf32>
    %433 = vector.broadcast %196 : vector<1x32xf32> to vector<8x32xf32>
    %434 = arith.addf %432, %433 : vector<8x32xf32>
    %cst_172 = arith.constant dense<0.000000e+00> : vector<8x32xf32>
    %435 = tpu.matmul %430, %192, %cst_172 {dimension_numbers = #tpu.dot_dimension_numbers<[1], [0], [0], [1], [0, 0, 1, 1], [], []>} : vector<8x32xf32>, vector<32x32xf32>, vector<8x32xf32> -> vector<8x32xf32>
    %436 = vector.broadcast %198 : vector<1x32xf32> to vector<8x32xf32>
    %437 = arith.addf %435, %436 : vector<8x32xf32>
    %cst_173 = arith.constant dense<0.000000e+00> : vector<8x32xf32>
    %438 = tpu.matmul %430, %194, %cst_173 {dimension_numbers = #tpu.dot_dimension_numbers<[1], [0], [0], [1], [0, 0, 1, 1], [], []>} : vector<8x32xf32>, vector<32x32xf32>, vector<8x32xf32> -> vector<8x32xf32>
    %439 = vector.broadcast %200 : vector<1x32xf32> to vector<8x32xf32>
    %440 = arith.addf %438, %439 : vector<8x32xf32>
    %441 = vector.extract_strided_slice %174 {offsets = [56, 0], sizes = [8, 32], strides = [1, 1]} : vector<64x32xf32> to vector<8x32xf32>
    %442 = arith.addf %441, %434 : vector<8x32xf32>
    %443 = arith.negf %442 : vector<8x32xf32>
    %444 = math.exp %443 : vector<8x32xf32>
    %cst_174 = arith.constant 1.000000e+00 : f32
    %445 = vector.broadcast %cst_174 : f32 to vector<8x32xf32>
    %446 = arith.addf %445, %444 : vector<8x32xf32>
    %447 = arith.divf %445, %446 : vector<8x32xf32>
    %448 = vector.extract_strided_slice %181 {offsets = [56, 0], sizes = [8, 32], strides = [1, 1]} : vector<64x32xf32> to vector<8x32xf32>
    %449 = arith.addf %448, %437 : vector<8x32xf32>
    %450 = arith.negf %449 : vector<8x32xf32>
    %451 = math.exp %450 : vector<8x32xf32>
    %cst_175 = arith.constant 1.000000e+00 : f32
    %452 = vector.broadcast %cst_175 : f32 to vector<8x32xf32>
    %453 = arith.addf %452, %451 : vector<8x32xf32>
    %454 = arith.divf %452, %453 : vector<8x32xf32>
    %455 = vector.extract_strided_slice %188 {offsets = [56, 0], sizes = [8, 32], strides = [1, 1]} : vector<64x32xf32> to vector<8x32xf32>
    %456 = arith.mulf %447, %440 : vector<8x32xf32>
    %457 = arith.addf %455, %456 : vector<8x32xf32>
    %458 = math.tanh %457 : vector<8x32xf32>
    %cst_176 = arith.constant 1.000000e+00 : f32
    %459 = vector.broadcast %cst_176 : f32 to vector<8x32xf32>
    %460 = arith.subf %459, %454 : vector<8x32xf32>
    %461 = arith.mulf %460, %458 : vector<8x32xf32>
    %462 = arith.mulf %454, %430 : vector<8x32xf32>
    %463 = arith.addf %461, %462 : vector<8x32xf32>
    %c56 = arith.constant 56 : index
    %c0_177 = arith.constant 0 : index
    %464 = vector.load %arg25[%c56, %c0_177] : memref<64x32xf32, #tpu.memory_space<vmem>>, vector<8x32xf32>
    tpu.vector_store %arg25[%c56, %c0_177], %463 {strides = array<i32>} : memref<64x32xf32, #tpu.memory_space<vmem>>, vector<8x32xf32>,
    %c0_178 = arith.constant 0 : index
    %c0_179 = arith.constant 0 : index
    %465 = vector.load %arg25[%c0_178, %c0_179] : memref<64x32xf32, #tpu.memory_space<vmem>>, vector<64x32xf32>
    %c0_180 = arith.constant 0 : index
    %c0_181 = arith.constant 0 : index
    %466 = vector.load %arg21[%c0_180, %c0_181] : memref<32x128xf32, #tpu.memory_space<vmem>>, vector<32x128xf32>
    %cst_182 = arith.constant dense<0.000000e+00> : vector<64x128xf32>
    %467 = tpu.matmul %465, %466, %cst_182 {dimension_numbers = #tpu.dot_dimension_numbers<[1], [0], [0], [1], [0, 0, 1, 1], [], []>} : vector<64x32xf32>, vector<32x128xf32>, vector<64x128xf32> -> vector<64x128xf32>
    %c0_183 = arith.constant 0 : index
    %c0_184 = arith.constant 0 : index
    %468 = vector.load %arg22[%c0_183, %c0_184] : memref<1x128xf32, #tpu.memory_space<vmem>>, vector<1x128xf32>
    %469 = vector.broadcast %468 : vector<1x128xf32> to vector<64x128xf32>
    %470 = arith.addf %467, %469 : vector<64x128xf32>
    %c0_185 = arith.constant 0 : index
    %c0_186 = arith.constant 0 : index
    %471 = vector.load %arg23[%c0_185, %c0_186] : memref<64x128xf32, #tpu.memory_space<vmem>>, vector<64x128xf32>
    tpu.vector_store %arg23[%c0_185, %c0_186], %470 {strides = array<i32>} : memref<64x128xf32, #tpu.memory_space<vmem>>, vector<64x128xf32>,
    return
  }
  func.func @transform_0(%arg0: i32) -> (i32, i32) {
    %c0_i32 = arith.constant 0 : i32
    %c0_i32_0 = arith.constant 0 : i32
    %c0_i32_1 = arith.constant 0 : i32
    return %c0_i32, %c0_i32_0 : i32, i32
  }
  func.func @transform_1(%arg0: i32) -> (i32, i32) {
    %c0_i32 = arith.constant 0 : i32
    %c0_i32_0 = arith.constant 0 : i32
    %c0_i32_1 = arith.constant 0 : i32
    return %c0_i32, %c0_i32_0 : i32, i32
  }
  func.func @transform_2(%arg0: i32) -> (i32, i32) {
    %c0_i32 = arith.constant 0 : i32
    %c0_i32_0 = arith.constant 0 : i32
    %c0_i32_1 = arith.constant 0 : i32
    return %c0_i32, %c0_i32_0 : i32, i32
  }
  func.func @transform_3(%arg0: i32) -> (i32, i32) {
    %c0_i32 = arith.constant 0 : i32
    %c0_i32_0 = arith.constant 0 : i32
    %c0_i32_1 = arith.constant 0 : i32
    return %c0_i32, %c0_i32_0 : i32, i32
  }
  func.func @transform_4(%arg0: i32) -> (i32, i32, i32) {
    %c0_i32 = arith.constant 0 : i32
    %c0_i32_0 = arith.constant 0 : i32
    %c0_i32_1 = arith.constant 0 : i32
    %c0_i32_2 = arith.constant 0 : i32
    return %c0_i32, %c0_i32_0, %c0_i32_1 : i32, i32, i32
  }
  func.func @transform_5(%arg0: i32) -> (i32, i32, i32) {
    %c0_i32 = arith.constant 0 : i32
    %c0_i32_0 = arith.constant 0 : i32
    %c0_i32_1 = arith.constant 0 : i32
    %c0_i32_2 = arith.constant 0 : i32
    return %c0_i32, %c0_i32_0, %c0_i32_1 : i32, i32, i32
  }
  func.func @transform_6(%arg0: i32) -> (i32, i32, i32) {
    %c0_i32 = arith.constant 0 : i32
    %c0_i32_0 = arith.constant 0 : i32
    %c0_i32_1 = arith.constant 0 : i32
    %c0_i32_2 = arith.constant 0 : i32
    return %c0_i32, %c0_i32_0, %c0_i32_1 : i32, i32, i32
  }
  func.func @transform_7(%arg0: i32) -> (i32, i32, i32) {
    %c0_i32 = arith.constant 0 : i32
    %c0_i32_0 = arith.constant 0 : i32
    %c0_i32_1 = arith.constant 0 : i32
    %c0_i32_2 = arith.constant 0 : i32
    return %c0_i32, %c0_i32_0, %c0_i32_1 : i32, i32, i32
  }
  func.func @transform_8(%arg0: i32) -> (i32, i32) {
    %c0_i32 = arith.constant 0 : i32
    %c0_i32_0 = arith.constant 0 : i32
    %c0_i32_1 = arith.constant 0 : i32
    return %c0_i32, %c0_i32_0 : i32, i32
  }
  func.func @transform_9(%arg0: i32) -> (i32, i32, i32) {
    %c0_i32 = arith.constant 0 : i32
    %c0_i32_0 = arith.constant 0 : i32
    %c0_i32_1 = arith.constant 0 : i32
    %c0_i32_2 = arith.constant 0 : i32
    return %c0_i32, %c0_i32_0, %c0_i32_1 : i32, i32, i32
  }
  func.func @transform_10(%arg0: i32) -> (i32, i32) {
    %c0_i32 = arith.constant 0 : i32
    %c0_i32_0 = arith.constant 0 : i32
    %c0_i32_1 = arith.constant 0 : i32
    return %c0_i32, %c0_i32_0 : i32, i32
  }
  func.func @transform_11(%arg0: i32) -> (i32, i32) {
    %c0_i32 = arith.constant 0 : i32
    %c0_i32_0 = arith.constant 0 : i32
    %c0_i32_1 = arith.constant 0 : i32
    return %c0_i32, %c0_i32_0 : i32, i32
  }
  func.func @transform_12(%arg0: i32) -> (i32, i32) {
    %c0_i32 = arith.constant 0 : i32
    %c0_i32_0 = arith.constant 0 : i32
    %c0_i32_1 = arith.constant 0 : i32
    return %c0_i32, %c0_i32_0 : i32, i32
  }
  func.func @transform_13(%arg0: i32) -> (i32, i32) {
    %c0_i32 = arith.constant 0 : i32
    %c0_i32_0 = arith.constant 0 : i32
    %c0_i32_1 = arith.constant 0 : i32
    return %c0_i32, %c0_i32_0 : i32, i32
  }
  func.func @transform_14(%arg0: i32) -> (i32, i32) {
    %c0_i32 = arith.constant 0 : i32
    %c0_i32_0 = arith.constant 0 : i32
    %c0_i32_1 = arith.constant 0 : i32
    return %c0_i32, %c0_i32_0 : i32, i32
  }
  func.func @transform_15(%arg0: i32) -> (i32, i32) {
    %c0_i32 = arith.constant 0 : i32
    %c0_i32_0 = arith.constant 0 : i32
    %c0_i32_1 = arith.constant 0 : i32
    return %c0_i32, %c0_i32_0 : i32, i32
  }
  func.func @transform_16(%arg0: i32) -> (i32, i32, i32) {
    %c0_i32 = arith.constant 0 : i32
    %c0_i32_0 = arith.constant 0 : i32
    %c0_i32_1 = arith.constant 0 : i32
    %c0_i32_2 = arith.constant 0 : i32
    return %c0_i32, %c0_i32_0, %c0_i32_1 : i32, i32, i32
  }
  func.func @transform_17(%arg0: i32) -> (i32, i32, i32) {
    %c0_i32 = arith.constant 0 : i32
    %c0_i32_0 = arith.constant 0 : i32
    %c0_i32_1 = arith.constant 0 : i32
    %c0_i32_2 = arith.constant 0 : i32
    return %c0_i32, %c0_i32_0, %c0_i32_1 : i32, i32, i32
  }
  func.func @transform_18(%arg0: i32) -> (i32, i32, i32) {
    %c0_i32 = arith.constant 0 : i32
    %c0_i32_0 = arith.constant 0 : i32
    %c0_i32_1 = arith.constant 0 : i32
    %c0_i32_2 = arith.constant 0 : i32
    return %c0_i32, %c0_i32_0, %c0_i32_1 : i32, i32, i32
  }
  func.func @transform_19(%arg0: i32) -> (i32, i32, i32) {
    %c0_i32 = arith.constant 0 : i32
    %c0_i32_0 = arith.constant 0 : i32
    %c0_i32_1 = arith.constant 0 : i32
    %c0_i32_2 = arith.constant 0 : i32
    return %c0_i32, %c0_i32_0, %c0_i32_1 : i32, i32, i32
  }
  func.func @transform_20(%arg0: i32) -> (i32, i32) {
    %c0_i32 = arith.constant 0 : i32
    %c0_i32_0 = arith.constant 0 : i32
    %c0_i32_1 = arith.constant 0 : i32
    return %c0_i32, %c0_i32_0 : i32, i32
  }
  func.func @transform_21(%arg0: i32) -> (i32, i32) {
    %c0_i32 = arith.constant 0 : i32
    %c0_i32_0 = arith.constant 0 : i32
    %c0_i32_1 = arith.constant 0 : i32
    return %c0_i32, %c0_i32_0 : i32, i32
  }
  func.func @transform_22(%arg0: i32) -> (i32, i32) {
    %c0_i32 = arith.constant 0 : i32
    %c0_i32_0 = arith.constant 0 : i32
    %c0_i32_1 = arith.constant 0 : i32
    return %c0_i32, %c0_i32_0 : i32, i32
  }
  func.func @transform_23(%arg0: i32) -> (i32, i32) {
    %c0_i32 = arith.constant 0 : i32
    %c0_i32_0 = arith.constant 0 : i32
    %c0_i32_1 = arith.constant 0 : i32
    return %c0_i32, %c0_i32_0 : i32, i32
  }
}

</mosaic_0001>

<llo_original>
// kernel: _lambda_.1
$region0: #{_lambda_.1}
  #allocation0 [shape = 'u32[]', space=smem, size = 0x4, offset = 0x4, fixed_abs, tag = 'smem constant byte address 0x4 - core index']
  #allocation1 [shape = 'u32[144,128]{1,0:T(1,128)}', space=vmem, size = 0x12000, scoped, tag = 'internal scratch']
  #allocation2 [shape = 'f32[64,32]{1,0:T(8,128)}', space=vmem, size = 0x8000, scoped, tag = 'scratch operand']
  %s0 = inlined_call_operand.vmem [shape: s32[48,1], index: 0, kind: input, shape index: {}]
  %s1 = inlined_call_operand.vmem [shape: s32[64,1], index: 1, kind: input, shape index: {}]
  %s2 = inlined_call_operand.vmem [shape: f32[12,32], index: 2, kind: input, shape index: {}]
  %s3 = inlined_call_operand.vmem [shape: f32[1,32], index: 3, kind: input, shape index: {}]
  %s4 = inlined_call_operand.vmem [shape: f32[2,32,32], index: 4, kind: input, shape index: {}]
  %s5 = inlined_call_operand.vmem [shape: f32[2,1,32], index: 5, kind: input, shape index: {}]
  %s6 = inlined_call_operand.vmem [shape: f32[2,32,16], index: 6, kind: input, shape index: {}]
  %s7 = inlined_call_operand.hbm [shape: f32[2,1,16], index: 7, kind: input, shape index: {}]
  %s8 = inlined_call_operand.vmem [shape: f32[16,8], index: 8, kind: input, shape index: {}]
  %s9 = inlined_call_operand.hbm [shape: f32[2,16,32], index: 9, kind: input, shape index: {}]
  %s10 = inlined_call_operand.vmem [shape: f32[1,32], index: 10, kind: input, shape index: {}]
  %s11 = inlined_call_operand.hbm [shape: f32[32,32], index: 11, kind: input, shape index: {}]
  %s12 = inlined_call_operand.vmem [shape: f32[1,32], index: 12, kind: input, shape index: {}]
  %s13 = inlined_call_operand.hbm [shape: f32[32,128], index: 13, kind: input, shape index: {}]
  %s14 = inlined_call_operand.vmem [shape: f32[1,128], index: 14, kind: input, shape index: {}]
  %s15 = inlined_call_operand.hbm [shape: f32[16,32], index: 15, kind: input, shape index: {}]
  %s16 = inlined_call_operand.vmem [shape: f32[3,32,32], index: 16, kind: input, shape index: {}]
  %s17 = inlined_call_operand.vmem [shape: f32[3,32,32], index: 17, kind: input, shape index: {}]
  %s18 = inlined_call_operand.vmem [shape: f32[3,1,32], index: 18, kind: input, shape index: {}]
  %s19 = inlined_call_operand.hbm [shape: f32[3,1,32], index: 19, kind: input, shape index: {}]
  %s20 = inlined_call_operand.hbm [shape: f32[32,128], index: 20, kind: input, shape index: {}]
  %s21 = inlined_call_operand.hbm [shape: f32[1,128], index: 21, kind: input, shape index: {}]
  %s22 = inlined_call_operand.vmem [shape: f32[64,128], index: 22, kind: output, shape index: {0}]
  %s23 = inlined_call_operand.vmem [shape: f32[8,128], index: 23, kind: output, shape index: {1}]
  %24 = xla_tuple %s22, %s23
  %s25 = sld [smem:[#allocation0]]
  $region138: #{_lambda_.1} parent=0
    _
  %s27 = ssub.s32 1, %s25
  %s28 = scalar_select 0, %s27, %s25
  $region1: #{_lambda_.1} parent=0
    #allocation3 [shape = 'u8[1024]{0}', space=vmem, size = 0x400, scoped, tag = 'input window, operand 7, single buffered']
    #allocation4 [shape = 's32[1]{0}', space=sflag, size = 0x4, scoped, tag = 'scoped memory for _lambda_.1']
    #allocation5 [shape = 'u8[16384]{0}', space=vmem, size = 0x4000, scoped, tag = 'input window, operand 9, single buffered']
    #allocation6 [shape = 's32[1]{0}', space=sflag, size = 0x4, scoped, tag = 'scoped memory for _lambda_.1']
    #allocation7 [shape = 'u8[16384]{0}', space=vmem, size = 0x4000, scoped, tag = 'input window, operand 11, single buffered']
    #allocation8 [shape = 'u8[16384]{0}', space=vmem, size = 0x4000, scoped, tag = 'input window, operand 13, single buffered']
    #allocation9 [shape = 's32[1]{0}', space=sflag, size = 0x4, scoped, tag = 'scoped memory for _lambda_.1']
    #allocation10 [shape = 'u8[8192]{0}', space=vmem, size = 0x2000, scoped, tag = 'input window, operand 15, single buffered']
    #allocation11 [shape = 'u8[1536]{0}', space=vmem, size = 0x800, scoped, tag = 'input window, operand 19, single buffered']
    #allocation12 [shape = 's32[1]{0}', space=sflag, size = 0x4, scoped, tag = 'scoped memory for _lambda_.1']
    #allocation13 [shape = 'u8[16384]{0}', space=vmem, size = 0x4000, scoped, tag = 'input window, operand 20, single buffered']
    #allocation14 [shape = 'u8[512]{0}', space=vmem, size = 0x400, scoped, tag = 'input window, operand 21, single buffered']
    #allocation15 [shape = 's32[1]{0}', space=sflag, size = 0x4, scoped, tag = 'scoped memory for _lambda_.1']
    %29 = vsyncpa [#allocation4], 0
    %30 = vsyncpa [#allocation6], 0
    %31 = vsyncpa [#allocation9], 0
    %32 = vsyncpa [#allocation12], 0
    %33 = vsyncpa [#allocation15], 0
    // Predicated region
    $region2: #{_lambda_.1} parent=1 // pred_check
      _
    $region3: #{_lambda_.1} parent=1 // pred_check_branch
      %35 = sbr.rel (0) target = $region5
    $region4: #{_lambda_.1} parent=1 // pred_region
      _
    $region5: #{_lambda_.1} parent=1 // pred_fallthru
      _
    // Predicated region
    $region6: #{_lambda_.1} parent=1 // pred_check
      _
    $region7: #{_lambda_.1} parent=1 // pred_check_branch
      %37 = sbr.rel (0) target = $region9
    $region8: #{_lambda_.1} parent=1 // pred_region
      _
    $region9: #{_lambda_.1} parent=1 // pred_fallthru
      _
    // Predicated region
    $region10: #{_lambda_.1} parent=1 // pred_check
      _
    $region11: #{_lambda_.1} parent=1 // pred_check_branch
      %39 = sbr.rel (0) target = $region13
    $region12: #{_lambda_.1} parent=1 // pred_region
      _
    $region13: #{_lambda_.1} parent=1 // pred_fallthru
      _
    // Predicated region
    $region14: #{_lambda_.1} parent=1 // pred_check
      _
    $region15: #{_lambda_.1} parent=1 // pred_check_branch
      %41 = sbr.rel (0) target = $region17
    $region16: #{_lambda_.1} parent=1 // pred_region
      _
    $region17: #{_lambda_.1} parent=1 // pred_fallthru
      _
    // Predicated region
    $region18: #{_lambda_.1} parent=1 // pred_check
      _
    $region19: #{_lambda_.1} parent=1 // pred_check_branch
      %43 = sbr.rel (0) target = $region21
    $region20: #{_lambda_.1} parent=1 // pred_region
      _
    $region21: #{_lambda_.1} parent=1 // pred_fallthru
      _
    // Predicated region
    $region22: #{_lambda_.1} parent=1 // pred_check
      _
    $region23: #{_lambda_.1} parent=1 // pred_check_branch
      %45 = sbr.rel (0) target = $region25
    $region24: #{_lambda_.1} parent=1 // pred_region
      _
    $region25: #{_lambda_.1} parent=1 // pred_fallthru
      _
    // Predicated region
    $region26: #{_lambda_.1} parent=1 // pred_check
      _
    $region27: #{_lambda_.1} parent=1 // pred_check_branch
      %47 = sbr.rel (0) target = $region29
    $region28: #{_lambda_.1} parent=1 // pred_region
      _
    $region29: #{_lambda_.1} parent=1 // pred_fallthru
      _
    // Predicated region
    $region30: #{_lambda_.1} parent=1 // pred_check
      _
    $region31: #{_lambda_.1} parent=1 // pred_check_branch
      %49 = sbr.rel (0) target = $region33
    $region32: #{_lambda_.1} parent=1 // pred_region
      %s51 = ssub.s32 32, 32
      %52 = vsyncadd [#allocation4], %s51
      %s53 = sshll.u32 [#allocation3], 4
      %s54 = int_to_ptr.vmem [resolvable:$true] %s53
      %59 = dma.hbm_to_vmem [thread:$0]  %s7, 32, %s54, [#allocation4], 16, 16, 1
    $region33: #{_lambda_.1} parent=1 // pred_fallthru
      _
    // Predicated region
    $region34: #{_lambda_.1} parent=1 // pred_check
      _
    $region35: #{_lambda_.1} parent=1 // pred_check_branch
      %61 = sbr.rel (0) target = $region37
    $region36: #{_lambda_.1} parent=1 // pred_region
      _
    $region37: #{_lambda_.1} parent=1 // pred_fallthru
      _
    // Predicated region
    $region38: #{_lambda_.1} parent=1 // pred_check
      _
    $region39: #{_lambda_.1} parent=1 // pred_check_branch
      %63 = sbr.rel (0) target = $region41
    $region40: #{_lambda_.1} parent=1 // pred_region
      %s65 = ssub.s32 512, 512
      %66 = vsyncadd [#allocation6], %s65
      %s67 = sshll.u32 [#allocation5], 4
      %s68 = int_to_ptr.vmem [resolvable:$true] %s67
      %73 = dma.hbm_to_vmem [thread:$0]  %s9, 512, %s68, [#allocation6], 128, 128, 8
    $region41: #{_lambda_.1} parent=1 // pred_fallthru
      _
    // Predicated region
    $region42: #{_lambda_.1} parent=1 // pred_check
      _
    $region43: #{_lambda_.1} parent=1 // pred_check_branch
      %75 = sbr.rel (0) target = $region45
    $region44: #{_lambda_.1} parent=1 // pred_region
      _
    $region45: #{_lambda_.1} parent=1 // pred_fallthru
      _
    // Predicated region
    $region46: #{_lambda_.1} parent=1 // pred_check
      _
    $region47: #{_lambda_.1} parent=1 // pred_check_branch
      %77 = sbr.rel (0) target = $region49
    $region48: #{_lambda_.1} parent=1 // pred_region
      %s79 = ssub.s32 512, 512
      %80 = vsyncadd [#allocation6], %s79
      %s81 = sshll.u32 [#allocation7], 4
      %s82 = int_to_ptr.vmem [resolvable:$true] %s81
      %87 = dma.hbm_to_vmem [thread:$0]  %s11, 512, %s82, [#allocation6], 128, 128, 8
    $region49: #{_lambda_.1} parent=1 // pred_fallthru
      _
    // Predicated region
    $region50: #{_lambda_.1} parent=1 // pred_check
      _
    $region51: #{_lambda_.1} parent=1 // pred_check_branch
      %89 = sbr.rel (0) target = $region53
    $region52: #{_lambda_.1} parent=1 // pred_region
      _
    $region53: #{_lambda_.1} parent=1 // pred_fallthru
      _
    // Predicated region
    $region54: #{_lambda_.1} parent=1 // pred_check
      _
    $region55: #{_lambda_.1} parent=1 // pred_check_branch
      %91 = sbr.rel (0) target = $region57
    $region56: #{_lambda_.1} parent=1 // pred_region
      %s93 = ssub.s32 512, 512
      %94 = vsyncadd [#allocation9], %s93
      %s95 = sshll.u32 [#allocation8], 4
      %s96 = int_to_ptr.vmem [resolvable:$true] %s95
      %101 = dma.hbm_to_vmem [thread:$0]  %s13, 512, %s96, [#allocation9], 128, 128, 8
    $region57: #{_lambda_.1} parent=1 // pred_fallthru
      _
    // Predicated region
    $region58: #{_lambda_.1} parent=1 // pred_check
      _
    $region59: #{_lambda_.1} parent=1 // pred_check_branch
      %103 = sbr.rel (0) target = $region61
    $region60: #{_lambda_.1} parent=1 // pred_region
      _
    $region61: #{_lambda_.1} parent=1 // pred_fallthru
      _
    // Predicated region
    $region62: #{_lambda_.1} parent=1 // pred_check
      _
    $region63: #{_lambda_.1} parent=1 // pred_check_branch
      %105 = sbr.rel (0) target = $region65
    $region64: #{_lambda_.1} parent=1 // pred_region
      %s107 = ssub.s32 256, 256
      %108 = vsyncadd [#allocation9], %s107
      %s109 = sshll.u32 [#allocation10], 4
      %s110 = int_to_ptr.vmem [resolvable:$true] %s109
      %115 = dma.hbm_to_vmem [thread:$0]  %s15, 256, %s110, [#allocation9], 128, 128, 8
    $region65: #{_lambda_.1} parent=1 // pred_fallthru
      _
    // Predicated region
    $region66: #{_lambda_.1} parent=1 // pred_check
      _
    $region67: #{_lambda_.1} parent=1 // pred_check_branch
      %117 = sbr.rel (0) target = $region69
    $region68: #{_lambda_.1} parent=1 // pred_region
      _
    $region69: #{_lambda_.1} parent=1 // pred_fallthru
      _
    // Predicated region
    $region70: #{_lambda_.1} parent=1 // pred_check
      _
    $region71: #{_lambda_.1} parent=1 // pred_check_branch
      %119 = sbr.rel (0) target = $region73
    $region72: #{_lambda_.1} parent=1 // pred_region
      _
    $region73: #{_lambda_.1} parent=1 // pred_fallthru
      _
    // Predicated region
    $region74: #{_lambda_.1} parent=1 // pred_check
      _
    $region75: #{_lambda_.1} parent=1 // pred_check_branch
      %121 = sbr.rel (0) target = $region77
    $region76: #{_lambda_.1} parent=1 // pred_region
      _
    $region77: #{_lambda_.1} parent=1 // pred_fallthru
      _
    // Predicated region
    $region78: #{_lambda_.1} parent=1 // pred_check
      _
    $region79: #{_lambda_.1} parent=1 // pred_check_branch
      %123 = sbr.rel (0) target = $region81
    $region80: #{_lambda_.1} parent=1 // pred_region
      %s125 = ssub.s32 48, 48
      %126 = vsyncadd [#allocation12], %s125
      %s127 = sshll.u32 [#allocation11], 4
      %s128 = int_to_ptr.vmem [resolvable:$true] %s127
      %133 = dma.hbm_to_vmem [thread:$0]  %s19, 48, %s128, [#allocation12], 16, 16, 1
    $region81: #{_lambda_.1} parent=1 // pred_fallthru
      _
    // Predicated region
    $region82: #{_lambda_.1} parent=1 // pred_check
      _
    $region83: #{_lambda_.1} parent=1 // pred_check_branch
      %135 = sbr.rel (0) target = $region85
    $region84: #{_lambda_.1} parent=1 // pred_region
      %s137 = ssub.s32 512, 512
      %138 = vsyncadd [#allocation12], %s137
      %s139 = sshll.u32 [#allocation13], 4
      %s140 = int_to_ptr.vmem [resolvable:$true] %s139
      %145 = dma.hbm_to_vmem [thread:$0]  %s20, 512, %s140, [#allocation12], 128, 128, 8
    $region85: #{_lambda_.1} parent=1 // pred_fallthru
      _
    // Predicated region
    $region86: #{_lambda_.1} parent=1 // pred_check
      _
    $region87: #{_lambda_.1} parent=1 // pred_check_branch
      %147 = sbr.rel (0) target = $region89
    $region88: #{_lambda_.1} parent=1 // pred_region
      %s149 = ssub.s32 16, 16
      %150 = vsyncadd [#allocation15], %s149
      %s152 = sshll.u32 [#allocation14], 4
      %s153 = int_to_ptr.vmem [resolvable:$true] %s152
      %155 = dma.hbm_to_vmem [thread:$0]  %s21, 16, %s153, [#allocation15]
    $region89: #{_lambda_.1} parent=1 // pred_fallthru
      _
    // Predicated region
    $region90: #{_lambda_.1} parent=1 // pred_check
      _
    $region91: #{_lambda_.1} parent=1 // pred_check_branch
      %157 = sbr.rel (0) target = $region93
    $region92: #{_lambda_.1} parent=1 // pred_region
      %158 = dma.done [#allocation4], 32
    $region93: #{_lambda_.1} parent=1 // pred_fallthru
      _
    // Predicated region
    $region94: #{_lambda_.1} parent=1 // pred_check
      _
    $region95: #{_lambda_.1} parent=1 // pred_check_branch
      %160 = sbr.rel (0) target = $region97
    $region96: #{_lambda_.1} parent=1 // pred_region
      %161 = dma.done [#allocation6], 512
    $region97: #{_lambda_.1} parent=1 // pred_fallthru
      _
    // Predicated region
    $region98: #{_lambda_.1} parent=1 // pred_check
      _
    $region99: #{_lambda_.1} parent=1 // pred_check_branch
      %163 = sbr.rel (0) target = $region101
    $region100: #{_lambda_.1} parent=1 // pred_region
      %164 = dma.done [#allocation6], 512
    $region101: #{_lambda_.1} parent=1 // pred_fallthru
      _
    // Predicated region
    $region102: #{_lambda_.1} parent=1 // pred_check
      _
    $region103: #{_lambda_.1} parent=1 // pred_check_branch
      %166 = sbr.rel (0) target = $region105
    $region104: #{_lambda_.1} parent=1 // pred_region
      %167 = dma.done [#allocation9], 512
    $region105: #{_lambda_.1} parent=1 // pred_fallthru
      _
    // Predicated region
    $region106: #{_lambda_.1} parent=1 // pred_check
      _
    $region107: #{_lambda_.1} parent=1 // pred_check_branch
      %169 = sbr.rel (0) target = $region109
    $region108: #{_lambda_.1} parent=1 // pred_region
      %170 = dma.done [#allocation9], 256
    $region109: #{_lambda_.1} parent=1 // pred_fallthru
      _
    // Predicated region
    $region110: #{_lambda_.1} parent=1 // pred_check
      _
    $region111: #{_lambda_.1} parent=1 // pred_check_branch
      %172 = sbr.rel (0) target = $region113
    $region112: #{_lambda_.1} parent=1 // pred_region
      %173 = dma.done [#allocation12], 48
    $region113: #{_lambda_.1} parent=1 // pred_fallthru
      _
    // Predicated region
    $region114: #{_lambda_.1} parent=1 // pred_check
      _
    $region115: #{_lambda_.1} parent=1 // pred_check_branch
      %175 = sbr.rel (0) target = $region117
    $region116: #{_lambda_.1} parent=1 // pred_region
      %176 = dma.done [#allocation12], 512
    $region117: #{_lambda_.1} parent=1 // pred_fallthru
      _
    // Predicated region
    $region118: #{_lambda_.1} parent=1 // pred_check
      _
    $region119: #{_lambda_.1} parent=1 // pred_check_branch
      %178 = sbr.rel (0) target = $region121
    $region120: #{_lambda_.1} parent=1 // pred_region
      %179 = dma.done [#allocation15], 16
    $region121: #{_lambda_.1} parent=1 // pred_fallthru
      _
    %v180 = vld [vmem:[%s0] sm:$0xff]
    %v181 = vld [vmem:[%s0 + $0x8] sm:$0xff]
    %v182 = vld [vmem:[%s0 + $0x10] sm:$0xff]
    %v183 = vld [vmem:[%s0 + $0x18] sm:$0xff]
    %v184 = vld [vmem:[%s0 + $0x20] sm:$0xff]
    %v185 = vld [vmem:[%s0 + $0x28] sm:$0xff]
    %v186 = vlaneseq
    %v187 = vand.u32 %v186, 127
    %188 = vset.pattern.permute.xlu0 0
    %189 = vperm.xlu0 %188, %v180
    %v190 = vpop.permute.xlu0 %189
    %191 = vset.pattern.permute.xlu0 0
    %192 = vperm.xlu0 %191, %v181
    %v193 = vpop.permute.xlu0 %192
    %194 = vset.pattern.permute.xlu0 0
    %195 = vperm.xlu0 %194, %v182
    %v196 = vpop.permute.xlu0 %195
    %197 = vset.pattern.permute.xlu0 0
    %198 = vperm.xlu0 %197, %v183
    %v199 = vpop.permute.xlu0 %198
    %200 = vset.pattern.permute.xlu0 0
    %201 = vperm.xlu0 %200, %v184
    %v202 = vpop.permute.xlu0 %201
    %203 = vset.pattern.permute.xlu0 0
    %204 = vperm.xlu0 %203, %v185
    %v205 = vpop.permute.xlu0 %204
    %vm206 = vcmp.eq.s32.totalorder %v187, %v190
    %vm207 = vcmp.eq.s32.totalorder %v187, %v193
    %vm208 = vcmp.eq.s32.totalorder %v187, %v196
    %vm209 = vcmp.eq.s32.totalorder %v187, %v199
    %vm210 = vcmp.eq.s32.totalorder %v187, %v202
    %vm211 = vcmp.eq.s32.totalorder %v187, %v205
    %v212 = vsel %vm206, 1, 0
    %v213 = vsel %vm207, 1, 0
    %v214 = vsel %vm208, 1, 0
    %v215 = vsel %vm209, 1, 0
    %v216 = vsel %vm210, 1, 0
    %v217 = vsel %vm211, 1, 0
    %v218 = vcvt.s32.f32 %v212
    %v219 = vcvt.s32.f32 %v213
    %v220 = vcvt.s32.f32 %v214
    %v221 = vcvt.s32.f32 %v215
    %v222 = vcvt.s32.f32 %v216
    %v223 = vcvt.s32.f32 %v217
    %v224 = vld [vmem:[%s2] sm:$0xff]
    %v225 = vld [vmem:[%s2 + $0x8] sm:$0xf]
    %v226 = vld [vmem:[%s3] sm:$0x1]
    %v228 = vlaneseq
    %v229 = vshrl.u32 %v228, 7
    %v230 = vsub.s32 0, %v229
    %v231 = vrot.slane %v226, %v230
    %vm233 = vcmask 97280
    %v235 = vsel %vm233, %v218, 0
    %v238 = vsel %vm233, %v219, 0
    %v241 = vsel %vm233, %v220, 0
    %v244 = vsel %vm233, %v221, 0
    %v247 = vsel %vm233, %v222, 0
    %v250 = vsel %vm233, %v223, 0
    %vm252 = vcmask 1043456
    %v254 = vsel %vm252, %v225, 0
    %256 = vmatprep.subr.mxu0 0.0
    %257 = vmatpush1.msra.mxu0 0.0
    %258 = vmatprep.subr.mxu0 0.0
    %259 = vmatpush1.msra.mxu0 0.0
    %260 = vmatprep.subr.mxu0 0.0
    %261 = vmatpush1.msra.mxu0 0.0
    %262 = vmatprep.subr.mxu0 0.0
    %263 = vmatpush1.msra.mxu0 0.0
    %264 = vmatprep.subr.mxu0 0.0
    %265 = vmatpush1.msra.mxu0 0.0
    %266 = vmatprep.subr.mxu0 0.0
    %267 = vmatpush1.msra.mxu0 0.0
    %268 = vmatprep.subr.mxu0 0.0
    %269 = vmatpush1.msra.mxu0 0.0
    %270 = vmatprep.subr.mxu0 0.0
    %271 = vmatpush1.msra.mxu0 0.0
    %272 = vmatprep.subr.mxu0 0.0
    %273 = vmatpush1.msra.mxu0 0.0
    %274 = vmatprep.subr.mxu0 0.0
    %275 = vmatpush1.msra.mxu0 0.0
    %276 = vmatprep.subr.mxu0 0.0
    %277 = vmatpush1.msra.mxu0 0.0
    %278 = vmatprep.subr.mxu0 0.0
    %279 = vmatpush1.msra.mxu0 0.0
    %280 = vmatprep.subr.mxu0 0.0
    %281 = vmatpush1.msra.mxu0 0.0
    %282 = vmatprep.subr.mxu0 0.0
    %283 = vmatpush1.msra.mxu0 0.0
    %284 = vmatprep.subr.mxu0 0.0
    %285 = vmatpush1.msra.mxu0 %v254
    %286 = vmatprep.subr.mxu0 0.0
    %287 = vmatpush1.msra.mxu0 %v224
    %288 = vmatprep.subr.mxu0 0.0
    %289 = vmatpush2.msra.mxu0 0.0
    %290 = vmatprep.subr.mxu0 0.0
    %291 = vmatpush2.msra.mxu0 0.0
    %292 = vmatprep.subr.mxu0 0.0
    %293 = vmatpush2.msra.mxu0 0.0
    %294 = vmatprep.subr.mxu0 0.0
    %295 = vmatpush2.msra.mxu0 0.0
    %296 = vmatprep.subr.mxu0 0.0
    %297 = vmatpush2.msra.mxu0 0.0
    %298 = vmatprep.subr.mxu0 0.0
    %299 = vmatpush2.msra.mxu0 0.0
    %300 = vmatprep.subr.mxu0 0.0
    %301 = vmatpush2.msra.mxu0 0.0
    %302 = vmatprep.subr.mxu0 0.0
    %303 = vmatpush2.msra.mxu0 0.0
    %304 = vmatprep.subr.mxu0 0.0
    %305 = vmatpush2.msra.mxu0 0.0
    %306 = vmatprep.subr.mxu0 0.0
    %307 = vmatpush2.msra.mxu0 0.0
    %308 = vmatprep.subr.mxu0 0.0
    %309 = vmatpush2.msra.mxu0 0.0
    %310 = vmatprep.subr.mxu0 0.0
    %311 = vmatpush2.msra.mxu0 0.0
    %312 = vmatprep.subr.mxu0 0.0
    %313 = vmatpush2.msra.mxu0 0.0
    %314 = vmatprep.subr.mxu0 0.0
    %315 = vmatpush2.msra.mxu0 0.0
    %316 = vmatprep.subr.mxu0 0.0
    %317 = vmatpush2.msra.mxu0 0.0
    %318 = vmatprep.subr.mxu0 0.0
    %319 = vmatpush2.msra.mxu0 0.0
    %320 = vmatprep.mubr.f32.mxu0 0.0
    %321 = vmatmul.mubr.f32.gmra.mxu0 %v235
    %v322 = vpop.f32.mrf.mxu0
    %v323 = vadd.f32 %v231, %v322
    %v324 = vpop.f32.mrf.mxu0
    %325 = vmatprep.mubr.f32.mxu0 0.0
    %326 = vmatmul.mubr.f32.gmra.mxu0 %v238
    %v327 = vpop.f32.mrf.mxu0
    %v328 = vadd.f32 %v231, %v327
    %v329 = vpop.f32.mrf.mxu0
    %330 = vmatprep.mubr.f32.mxu0 0.0
    %331 = vmatmul.mubr.f32.gmra.mxu0 %v241
    %v332 = vpop.f32.mrf.mxu0
    %v333 = vadd.f32 %v231, %v332
    %v334 = vpop.f32.mrf.mxu0
    %335 = vmatprep.mubr.f32.mxu0 0.0
    %336 = vmatmul.mubr.f32.gmra.mxu0 %v244
    %v337 = vpop.f32.mrf.mxu0
    %v338 = vadd.f32 %v231, %v337
    %v339 = vpop.f32.mrf.mxu0
    %340 = vmatprep.mubr.f32.mxu0 0.0
    %341 = vmatmul.mubr.f32.gmra.mxu0 %v247
    %v342 = vpop.f32.mrf.mxu0
    %v343 = vadd.f32 %v231, %v342
    %v344 = vpop.f32.mrf.mxu0
    %345 = vmatprep.mubr.f32.mxu0 0.0
    %346 = vmatmul.mubr.f32.gmra.mxu0 %v250
    %v347 = vpop.f32.mrf.mxu0
    %v348 = vadd.f32 %v231, %v347
    %v349 = vpop.f32.mrf.mxu0
    %350 = vdwg.mxu0
    %v351 = vld [vmem:[%s4] sm:$0xff]
    %v352 = vld [vmem:[%s4 + $0x8] sm:$0xff]
    %v353 = vld [vmem:[%s4 + $0x10] sm:$0xff]
    %v354 = vld [vmem:[%s4 + $0x18] sm:$0xff]
    %v355 = vld [vmem:[%s5] sm:$0x1]
    %v357 = vlaneseq
    %v358 = vshrl.u32 %v357, 7
    %v359 = vsub.s32 0, %v358
    %v360 = vrot.slane %v355, %v359
    %vm362 = vcmask 261120
    %v364 = vsel %vm362, %v323, 0
    %v367 = vsel %vm362, %v328, 0
    %v370 = vsel %vm362, %v333, 0
    %v373 = vsel %vm362, %v338, 0
    %v376 = vsel %vm362, %v343, 0
    %v379 = vsel %vm362, %v348, 0
    %381 = vmatprep.subr.mxu0 0.0
    %382 = vmatpush1.msra.mxu0 0.0
    %383 = vmatprep.subr.mxu0 0.0
    %384 = vmatpush1.msra.mxu0 0.0
    %385 = vmatprep.subr.mxu0 0.0
    %386 = vmatpush1.msra.mxu0 0.0
    %387 = vmatprep.subr.mxu0 0.0
    %388 = vmatpush1.msra.mxu0 0.0
    %389 = vmatprep.subr.mxu0 0.0
    %390 = vmatpush1.msra.mxu0 0.0
    %391 = vmatprep.subr.mxu0 0.0
    %392 = vmatpush1.msra.mxu0 0.0
    %393 = vmatprep.subr.mxu0 0.0
    %394 = vmatpush1.msra.mxu0 0.0
    %395 = vmatprep.subr.mxu0 0.0
    %396 = vmatpush1.msra.mxu0 0.0
    %397 = vmatprep.subr.mxu0 0.0
    %398 = vmatpush1.msra.mxu0 0.0
    %399 = vmatprep.subr.mxu0 0.0
    %400 = vmatpush1.msra.mxu0 0.0
    %401 = vmatprep.subr.mxu0 0.0
    %402 = vmatpush1.msra.mxu0 0.0
    %403 = vmatprep.subr.mxu0 0.0
    %404 = vmatpush1.msra.mxu0 0.0
    %405 = vmatprep.subr.mxu0 0.0
    %406 = vmatpush1.msra.mxu0 %v354
    %407 = vmatprep.subr.mxu0 0.0
    %408 = vmatpush1.msra.mxu0 %v353
    %409 = vmatprep.subr.mxu0 0.0
    %410 = vmatpush1.msra.mxu0 %v352
    %411 = vmatprep.subr.mxu0 0.0
    %412 = vmatpush1.msra.mxu0 %v351
    %413 = vmatprep.subr.mxu0 0.0
    %414 = vmatpush2.msra.mxu0 0.0
    %415 = vmatprep.subr.mxu0 0.0
    %416 = vmatpush2.msra.mxu0 0.0
    %417 = vmatprep.subr.mxu0 0.0
    %418 = vmatpush2.msra.mxu0 0.0
    %419 = vmatprep.subr.mxu0 0.0
    %420 = vmatpush2.msra.mxu0 0.0
    %421 = vmatprep.subr.mxu0 0.0
    %422 = vmatpush2.msra.mxu0 0.0
    %423 = vmatprep.subr.mxu0 0.0
    %424 = vmatpush2.msra.mxu0 0.0
    %425 = vmatprep.subr.mxu0 0.0
    %426 = vmatpush2.msra.mxu0 0.0
    %427 = vmatprep.subr.mxu0 0.0
    %428 = vmatpush2.msra.mxu0 0.0
    %429 = vmatprep.subr.mxu0 0.0
    %430 = vmatpush2.msra.mxu0 0.0
    %431 = vmatprep.subr.mxu0 0.0
    %432 = vmatpush2.msra.mxu0 0.0
    %433 = vmatprep.subr.mxu0 0.0
    %434 = vmatpush2.msra.mxu0 0.0
    %435 = vmatprep.subr.mxu0 0.0
    %436 = vmatpush2.msra.mxu0 0.0
    %437 = vmatprep.subr.mxu0 0.0
    %438 = vmatpush2.msra.mxu0 0.0
    %439 = vmatprep.subr.mxu0 0.0
    %440 = vmatpush2.msra.mxu0 0.0
    %441 = vmatprep.subr.mxu0 0.0
    %442 = vmatpush2.msra.mxu0 0.0
    %443 = vmatprep.subr.mxu0 0.0
    %444 = vmatpush2.msra.mxu0 0.0
    %445 = vmatprep.mubr.f32.mxu0 0.0
    %446 = vmatmul.mubr.f32.gmra.mxu0 %v364
    %v447 = vpop.f32.mrf.mxu0
    %v448 = vadd.f32 %v360, %v447
    %v449 = vpop.f32.mrf.mxu0
    %450 = vmatprep.mubr.f32.mxu0 0.0
    %451 = vmatmul.mubr.f32.gmra.mxu0 %v367
    %v452 = vpop.f32.mrf.mxu0
    %v453 = vadd.f32 %v360, %v452
    %v454 = vpop.f32.mrf.mxu0
    %455 = vmatprep.mubr.f32.mxu0 0.0
    %456 = vmatmul.mubr.f32.gmra.mxu0 %v370
    %v457 = vpop.f32.mrf.mxu0
    %v458 = vadd.f32 %v360, %v457
    %v459 = vpop.f32.mrf.mxu0
    %460 = vmatprep.mubr.f32.mxu0 0.0
    %461 = vmatmul.mubr.f32.gmra.mxu0 %v373
    %v462 = vpop.f32.mrf.mxu0
    %v463 = vadd.f32 %v360, %v462
    %v464 = vpop.f32.mrf.mxu0
    %465 = vmatprep.mubr.f32.mxu0 0.0
    %466 = vmatmul.mubr.f32.gmra.mxu0 %v376
    %v467 = vpop.f32.mrf.mxu0
    %v468 = vadd.f32 %v360, %v467
    %v469 = vpop.f32.mrf.mxu0
    %470 = vmatprep.mubr.f32.mxu0 0.0
    %471 = vmatmul.mubr.f32.gmra.mxu0 %v379
    %v472 = vpop.f32.mrf.mxu0
    %v473 = vadd.f32 %v360, %v472
    %v474 = vpop.f32.mrf.mxu0
    %475 = vdwg.mxu0
    %v476 = vmax.f32 %v448, 0.0
    %v477 = vmax.f32 %v453, 0.0
    %v478 = vmax.f32 %v458, 0.0
    %v479 = vmax.f32 %v463, 0.0
    %v480 = vmax.f32 %v468, 0.0
    %v481 = vmax.f32 %v473, 0.0
    %s482 = scalar_lea.vmem %s4, 32
    %v483 = vld [vmem:[%s482] sm:$0xff]
    %v484 = vld [vmem:[%s482 + $0x8] sm:$0xff]
    %v485 = vld [vmem:[%s482 + $0x10] sm:$0xff]
    %v486 = vld [vmem:[%s482 + $0x18] sm:$0xff]
    %s487 = scalar_lea.vmem %s5, 1
    %v488 = vld [vmem:[%s487] sm:$0x1]
    %v490 = vlaneseq
    %v491 = vshrl.u32 %v490, 7
    %v492 = vsub.s32 0, %v491
    %v493 = vrot.slane %v488, %v492
    %v496 = vsel %vm362, %v476, 0
    %v499 = vsel %vm362, %v477, 0
    %v502 = vsel %vm362, %v478, 0
    %v505 = vsel %vm362, %v479, 0
    %v508 = vsel %vm362, %v480, 0
    %v511 = vsel %vm362, %v481, 0
    %513 = vmatprep.subr.mxu0 0.0
    %514 = vmatpush1.msra.mxu0 0.0
    %515 = vmatprep.subr.mxu0 0.0
    %516 = vmatpush1.msra.mxu0 0.0
    %517 = vmatprep.subr.mxu0 0.0
    %518 = vmatpush1.msra.mxu0 0.0
    %519 = vmatprep.subr.mxu0 0.0
    %520 = vmatpush1.msra.mxu0 0.0
    %521 = vmatprep.subr.mxu0 0.0
    %522 = vmatpush1.msra.mxu0 0.0
    %523 = vmatprep.subr.mxu0 0.0
    %524 = vmatpush1.msra.mxu0 0.0
    %525 = vmatprep.subr.mxu0 0.0
    %526 = vmatpush1.msra.mxu0 0.0
    %527 = vmatprep.subr.mxu0 0.0
    %528 = vmatpush1.msra.mxu0 0.0
    %529 = vmatprep.subr.mxu0 0.0
    %530 = vmatpush1.msra.mxu0 0.0
    %531 = vmatprep.subr.mxu0 0.0
    %532 = vmatpush1.msra.mxu0 0.0
    %533 = vmatprep.subr.mxu0 0.0
    %534 = vmatpush1.msra.mxu0 0.0
    %535 = vmatprep.subr.mxu0 0.0
    %536 = vmatpush1.msra.mxu0 0.0
    %537 = vmatprep.subr.mxu0 0.0
    %538 = vmatpush1.msra.mxu0 %v486
    %539 = vmatprep.subr.mxu0 0.0
    %540 = vmatpush1.msra.mxu0 %v485
    %541 = vmatprep.subr.mxu0 0.0
    %542 = vmatpush1.msra.mxu0 %v484
    %543 = vmatprep.subr.mxu0 0.0
    %544 = vmatpush1.msra.mxu0 %v483
    %545 = vmatprep.subr.mxu0 0.0
    %546 = vmatpush2.msra.mxu0 0.0
    %547 = vmatprep.subr.mxu0 0.0
    %548 = vmatpush2.msra.mxu0 0.0
    %549 = vmatprep.subr.mxu0 0.0
    %550 = vmatpush2.msra.mxu0 0.0
    %551 = vmatprep.subr.mxu0 0.0
    %552 = vmatpush2.msra.mxu0 0.0
    %553 = vmatprep.subr.mxu0 0.0
    %554 = vmatpush2.msra.mxu0 0.0
    %555 = vmatprep.subr.mxu0 0.0
    %556 = vmatpush2.msra.mxu0 0.0
    %557 = vmatprep.subr.mxu0 0.0
    %558 = vmatpush2.msra.mxu0 0.0
    %559 = vmatprep.subr.mxu0 0.0
    %560 = vmatpush2.msra.mxu0 0.0
    %561 = vmatprep.subr.mxu0 0.0
    %562 = vmatpush2.msra.mxu0 0.0
    %563 = vmatprep.subr.mxu0 0.0
    %564 = vmatpush2.msra.mxu0 0.0
    %565 = vmatprep.subr.mxu0 0.0
    %566 = vmatpush2.msra.mxu0 0.0
    %567 = vmatprep.subr.mxu0 0.0
    %568 = vmatpush2.msra.mxu0 0.0
    %569 = vmatprep.subr.mxu0 0.0
    %570 = vmatpush2.msra.mxu0 0.0
    %571 = vmatprep.subr.mxu0 0.0
    %572 = vmatpush2.msra.mxu0 0.0
    %573 = vmatprep.subr.mxu0 0.0
    %574 = vmatpush2.msra.mxu0 0.0
    %575 = vmatprep.subr.mxu0 0.0
    %576 = vmatpush2.msra.mxu0 0.0
    %577 = vmatprep.mubr.f32.mxu0 0.0
    %578 = vmatmul.mubr.f32.gmra.mxu0 %v496
    %v579 = vpop.f32.mrf.mxu0
    %v580 = vadd.f32 %v493, %v579
    %v581 = vpop.f32.mrf.mxu0
    %582 = vmatprep.mubr.f32.mxu0 0.0
    %583 = vmatmul.mubr.f32.gmra.mxu0 %v499
    %v584 = vpop.f32.mrf.mxu0
    %v585 = vadd.f32 %v493, %v584
    %v586 = vpop.f32.mrf.mxu0
    %587 = vmatprep.mubr.f32.mxu0 0.0
    %588 = vmatmul.mubr.f32.gmra.mxu0 %v502
    %v589 = vpop.f32.mrf.mxu0
    %v590 = vadd.f32 %v493, %v589
    %v591 = vpop.f32.mrf.mxu0
    %592 = vmatprep.mubr.f32.mxu0 0.0
    %593 = vmatmul.mubr.f32.gmra.mxu0 %v505
    %v594 = vpop.f32.mrf.mxu0
    %v595 = vadd.f32 %v493, %v594
    %v596 = vpop.f32.mrf.mxu0
    %597 = vmatprep.mubr.f32.mxu0 0.0
    %598 = vmatmul.mubr.f32.gmra.mxu0 %v508
    %v599 = vpop.f32.mrf.mxu0
    %v600 = vadd.f32 %v493, %v599
    %v601 = vpop.f32.mrf.mxu0
    %602 = vmatprep.mubr.f32.mxu0 0.0
    %603 = vmatmul.mubr.f32.gmra.mxu0 %v511
    %v604 = vpop.f32.mrf.mxu0
    %v605 = vadd.f32 %v493, %v604
    %v606 = vpop.f32.mrf.mxu0
    %607 = vdwg.mxu0
    %v608 = vmax.f32 %v580, 0.0
    %v609 = vmax.f32 %v585, 0.0
    %v610 = vmax.f32 %v590, 0.0
    %v611 = vmax.f32 %v595, 0.0
    %v612 = vmax.f32 %v600, 0.0
    %v613 = vmax.f32 %v605, 0.0
    %v614 = vlaneseq
    %v615 = vshrl.u32 %v614, 7
    %v616 = vmul.u32 %v615, 6
    %vm617 = vcmp.ge.s32.totalorder %v187, %v616
    %v618 = vadd.s32 %v615, 1
    %v619 = vmul.u32 %v618, 6
    %vm620 = vcmp.lt.s32.totalorder %v187, %v619
    %vm621 = vmand %vm617, %vm620
    %v622 = vsel %vm621, 1, 0
    %v623 = vcvt.s32.f32 %v622
    %vm624 = vcmask 392192
    %v626 = vsel %vm624, %v623, 0
    %628 = vmatprep.subr.mxu0 0.0
    %629 = vmatpush1.msra.mxu0 0.0
    %630 = vmatprep.subr.mxu0 0.0
    %631 = vmatpush1.msra.mxu0 0.0
    %632 = vmatprep.subr.mxu0 0.0
    %633 = vmatpush1.msra.mxu0 0.0
    %634 = vmatprep.subr.mxu0 0.0
    %635 = vmatpush1.msra.mxu0 0.0
    %636 = vmatprep.subr.mxu0 0.0
    %637 = vmatpush1.msra.mxu0 0.0
    %638 = vmatprep.subr.mxu0 0.0
    %639 = vmatpush1.msra.mxu0 0.0
    %640 = vmatprep.subr.mxu0 0.0
    %641 = vmatpush1.msra.mxu0 0.0
    %642 = vmatprep.subr.mxu0 0.0
    %643 = vmatpush1.msra.mxu0 0.0
    %644 = vmatprep.subr.mxu0 0.0
    %645 = vmatpush1.msra.mxu0 0.0
    %646 = vmatprep.subr.mxu0 0.0
    %647 = vmatpush1.msra.mxu0 0.0
    %648 = vmatprep.subr.mxu0 0.0
    %649 = vmatpush1.msra.mxu0 %v613
    %650 = vmatprep.subr.mxu0 0.0
    %651 = vmatpush1.msra.mxu0 %v612
    %652 = vmatprep.subr.mxu0 0.0
    %653 = vmatpush1.msra.mxu0 %v611
    %654 = vmatprep.subr.mxu0 0.0
    %655 = vmatpush1.msra.mxu0 %v610
    %656 = vmatprep.subr.mxu0 0.0
    %657 = vmatpush1.msra.mxu0 %v609
    %658 = vmatprep.subr.mxu0 0.0
    %659 = vmatpush1.msra.mxu0 %v608
    %660 = vmatprep.subr.mxu0 0.0
    %661 = vmatpush2.msra.mxu0 0.0
    %662 = vmatprep.subr.mxu0 0.0
    %663 = vmatpush2.msra.mxu0 0.0
    %664 = vmatprep.subr.mxu0 0.0
    %665 = vmatpush2.msra.mxu0 0.0
    %666 = vmatprep.subr.mxu0 0.0
    %667 = vmatpush2.msra.mxu0 0.0
    %668 = vmatprep.subr.mxu0 0.0
    %669 = vmatpush2.msra.mxu0 0.0
    %670 = vmatprep.subr.mxu0 0.0
    %671 = vmatpush2.msra.mxu0 0.0
    %672 = vmatprep.subr.mxu0 0.0
    %673 = vmatpush2.msra.mxu0 0.0
    %674 = vmatprep.subr.mxu0 0.0
    %675 = vmatpush2.msra.mxu0 0.0
    %676 = vmatprep.subr.mxu0 0.0
    %677 = vmatpush2.msra.mxu0 0.0
    %678 = vmatprep.subr.mxu0 0.0
    %679 = vmatpush2.msra.mxu0 0.0
    %680 = vmatprep.subr.mxu0 0.0
    %681 = vmatpush2.msra.mxu0 0.0
    %682 = vmatprep.subr.mxu0 0.0
    %683 = vmatpush2.msra.mxu0 0.0
    %684 = vmatprep.subr.mxu0 0.0
    %685 = vmatpush2.msra.mxu0 0.0
    %686 = vmatprep.subr.mxu0 0.0
    %687 = vmatpush2.msra.mxu0 0.0
    %688 = vmatprep.subr.mxu0 0.0
    %689 = vmatpush2.msra.mxu0 0.0
    %690 = vmatprep.subr.mxu0 0.0
    %691 = vmatpush2.msra.mxu0 0.0
    %692 = vmatprep.mubr.f32.mxu0 0.0
    %693 = vmatmul.mubr.f32.gmra.mxu0 %v626
    %v694 = vpop.f32.mrf.mxu0
    %v695 = vadd.f32 0.0, %v694
    %v696 = vpop.f32.mrf.mxu0
    %697 = vdwg.mxu0
    %v698 = vld [vmem:[%s8] sm:$0xff]
    %v699 = vld [vmem:[%s8 + $0x8] sm:$0xff]
    %v700 = vmul.f32 %v698, %v698
    %v701 = vmul.f32 %v699, %v699
    %vm702 = vcmask 64512
    %v703 = vsel %vm702, %v700, 0.0
    %v704 = vsel %vm702, %v701, 0.0
    %v705 = vadd.f32 %v703, %v704
    %v706 = vrot.slane %v705, 4
    %v707 = vadd.f32 %v705, %v706
    %v708 = vrot.slane %v707, 2
    %v709 = vadd.f32 %v707, %v708
    %v710 = vrot.slane %v709, 1
    %v711 = vadd.f32 %v709, %v710
    %vm712 = vcmp.lt.s32.totalorder %v615, 4
    %v713 = vsel %vm712, 1, 0
    %v714 = vcvt.s32.f32 %v713
    %v715 = vld [vmem:[%s10] sm:$0x1]
    %v716 = vld [vmem:[%s6] sm:$0xff]
    %v717 = vld [vmem:[%s6 + $0x8] sm:$0xff]
    %v718 = vld [vmem:[%s6 + $0x10] sm:$0xff]
    %v719 = vld [vmem:[%s6 + $0x18] sm:$0xff]
    %v720 = vld [vmem:[#allocation3] sm:$0x1]
    %v722 = vlaneseq
    %v723 = vshrl.u32 %v722, 7
    %v724 = vsub.s32 0, %v723
    %v725 = vrot.slane %v720, %v724
    %v728 = vsel %vm362, %v695, 0
    %730 = vmatprep.subr.mxu0 0.0
    %731 = vmatpush1.msra.mxu0 0.0
    %732 = vmatprep.subr.mxu0 0.0
    %733 = vmatpush1.msra.mxu0 0.0
    %734 = vmatprep.subr.mxu0 0.0
    %735 = vmatpush1.msra.mxu0 0.0
    %736 = vmatprep.subr.mxu0 0.0
    %737 = vmatpush1.msra.mxu0 0.0
    %738 = vmatprep.subr.mxu0 0.0
    %739 = vmatpush1.msra.mxu0 0.0
    %740 = vmatprep.subr.mxu0 0.0
    %741 = vmatpush1.msra.mxu0 0.0
    %742 = vmatprep.subr.mxu0 0.0
    %743 = vmatpush1.msra.mxu0 0.0
    %744 = vmatprep.subr.mxu0 0.0
    %745 = vmatpush1.msra.mxu0 0.0
    %746 = vmatprep.subr.mxu0 0.0
    %747 = vmatpush1.msra.mxu0 0.0
    %748 = vmatprep.subr.mxu0 0.0
    %749 = vmatpush1.msra.mxu0 0.0
    %750 = vmatprep.subr.mxu0 0.0
    %751 = vmatpush1.msra.mxu0 0.0
    %752 = vmatprep.subr.mxu0 0.0
    %753 = vmatpush1.msra.mxu0 0.0
    %754 = vmatprep.subr.mxu0 0.0
    %755 = vmatpush1.msra.mxu0 %v719
    %756 = vmatprep.subr.mxu0 0.0
    %757 = vmatpush1.msra.mxu0 %v718
    %758 = vmatprep.subr.mxu0 0.0
    %759 = vmatpush1.msra.mxu0 %v717
    %760 = vmatprep.subr.mxu0 0.0
    %761 = vmatpush1.msra.mxu0 %v716
    %762 = vmatprep.subr.mxu0 0.0
    %763 = vmatpush2.msra.mxu0 0.0
    %764 = vmatprep.subr.mxu0 0.0
    %765 = vmatpush2.msra.mxu0 0.0
    %766 = vmatprep.subr.mxu0 0.0
    %767 = vmatpush2.msra.mxu0 0.0
    %768 = vmatprep.subr.mxu0 0.0
    %769 = vmatpush2.msra.mxu0 0.0
    %770 = vmatprep.subr.mxu0 0.0
    %771 = vmatpush2.msra.mxu0 0.0
    %772 = vmatprep.subr.mxu0 0.0
    %773 = vmatpush2.msra.mxu0 0.0
    %774 = vmatprep.subr.mxu0 0.0
    %775 = vmatpush2.msra.mxu0 0.0
    %776 = vmatprep.subr.mxu0 0.0
    %777 = vmatpush2.msra.mxu0 0.0
    %778 = vmatprep.subr.mxu0 0.0
    %779 = vmatpush2.msra.mxu0 0.0
    %780 = vmatprep.subr.mxu0 0.0
    %781 = vmatpush2.msra.mxu0 0.0
    %782 = vmatprep.subr.mxu0 0.0
    %783 = vmatpush2.msra.mxu0 0.0
    %784 = vmatprep.subr.mxu0 0.0
    %785 = vmatpush2.msra.mxu0 0.0
    %786 = vmatprep.subr.mxu0 0.0
    %787 = vmatpush2.msra.mxu0 0.0
    %788 = vmatprep.subr.mxu0 0.0
    %789 = vmatpush2.msra.mxu0 0.0
    %790 = vmatprep.subr.mxu0 0.0
    %791 = vmatpush2.msra.mxu0 0.0
    %792 = vmatprep.subr.mxu0 0.0
    %793 = vmatpush2.msra.mxu0 0.0
    %794 = vmatprep.mubr.f32.mxu0 0.0
    %795 = vmatmul.mubr.f32.gmra.mxu0 %v728
    %v796 = vpop.f32.mrf.mxu0
    %v797 = vadd.f32 %v725, %v796
    %v798 = vpop.f32.mrf.mxu0
    %799 = vdwg.mxu0
    %vm800 = vcmask 130048
    %v802 = vsel %vm800, %v797, 0
    %804 = vmatprep.subr.mxu0 0.0
    %805 = vmatpush1.msra.mxu0 0.0
    %806 = vmatprep.subr.mxu0 0.0
    %807 = vmatpush1.msra.mxu0 0.0
    %808 = vmatprep.subr.mxu0 0.0
    %809 = vmatpush1.msra.mxu0 0.0
    %810 = vmatprep.subr.mxu0 0.0
    %811 = vmatpush1.msra.mxu0 0.0
    %812 = vmatprep.subr.mxu0 0.0
    %813 = vmatpush1.msra.mxu0 0.0
    %814 = vmatprep.subr.mxu0 0.0
    %815 = vmatpush1.msra.mxu0 0.0
    %816 = vmatprep.subr.mxu0 0.0
    %817 = vmatpush1.msra.mxu0 0.0
    %818 = vmatprep.subr.mxu0 0.0
    %819 = vmatpush1.msra.mxu0 0.0
    %820 = vmatprep.subr.mxu0 0.0
    %821 = vmatpush1.msra.mxu0 0.0
    %822 = vmatprep.subr.mxu0 0.0
    %823 = vmatpush1.msra.mxu0 0.0
    %824 = vmatprep.subr.mxu0 0.0
    %825 = vmatpush1.msra.mxu0 0.0
    %826 = vmatprep.subr.mxu0 0.0
    %827 = vmatpush1.msra.mxu0 0.0
    %828 = vmatprep.subr.mxu0 0.0
    %829 = vmatpush1.msra.mxu0 0.0
    %830 = vmatprep.subr.mxu0 0.0
    %831 = vmatpush1.msra.mxu0 0.0
    %832 = vmatprep.subr.mxu0 0.0
    %833 = vmatpush1.msra.mxu0 %v699
    %834 = vmatprep.subr.mxu0 0.0
    %835 = vmatpush1.msra.mxu0 %v698
    %836 = vmatprep.subr.mxu0 0.0
    %837 = vmatpush2.msra.mxu0 0.0
    %838 = vmatprep.subr.mxu0 0.0
    %839 = vmatpush2.msra.mxu0 0.0
    %840 = vmatprep.subr.mxu0 0.0
    %841 = vmatpush2.msra.mxu0 0.0
    %842 = vmatprep.subr.mxu0 0.0
    %843 = vmatpush2.msra.mxu0 0.0
    %844 = vmatprep.subr.mxu0 0.0
    %845 = vmatpush2.msra.mxu0 0.0
    %846 = vmatprep.subr.mxu0 0.0
    %847 = vmatpush2.msra.mxu0 0.0
    %848 = vmatprep.subr.mxu0 0.0
    %849 = vmatpush2.msra.mxu0 0.0
    %850 = vmatprep.subr.mxu0 0.0
    %851 = vmatpush2.msra.mxu0 0.0
    %852 = vmatprep.subr.mxu0 0.0
    %853 = vmatpush2.msra.mxu0 0.0
    %854 = vmatprep.subr.mxu0 0.0
    %855 = vmatpush2.msra.mxu0 0.0
    %856 = vmatprep.subr.mxu0 0.0
    %857 = vmatpush2.msra.mxu0 0.0
    %858 = vmatprep.subr.mxu0 0.0
    %859 = vmatpush2.msra.mxu0 0.0
    %860 = vmatprep.subr.mxu0 0.0
    %861 = vmatpush2.msra.mxu0 0.0
    %862 = vmatprep.subr.mxu0 0.0
    %863 = vmatpush2.msra.mxu0 0.0
    %864 = vmatprep.subr.mxu0 0.0
    %865 = vmatpush2.msra.mxu0 0.0
    %866 = vmatprep.subr.mxu0 0.0
    %867 = vmatpush2.msra.mxu0 0.0
    %868 = vmatprep.mubr.f32.mxu0 0.0
    %869 = vmatmul.mubr.f32.gmra.mxu0 %v802
    %v870 = vpop.f32.mrf.mxu0
    %v871 = vadd.f32 0.0, %v870
    %v872 = vpop.f32.mrf.mxu0
    %873 = vdwg.mxu0
    %v874 = vmul.f32 %v797, %v797
    %v875 = vsel %vm800, %v874, 0.0
    %876 = vadd.xlane.f32.xlu0 %v875
    %v877 = vpop.xlane.xlu0 %876
    %v878 = vmul.f32 %v871, 2.0
    %v879 = vsub.f32 %v877, %v878
    %v880 = vadd.f32 %v879, %v711
    %v881 = vsel %vm702, %v880, inf
    %882 = vmin.xlane.f32.xlu0 %v881
    %v883 = vpop.xlane.xlu0 %882
    %vm884 = vcmp.le.f32.partialorder %v880, %v883
    %v885 = vsel %vm884, %v187, 8
    %v886 = vsel %vm702, %v885, 2147483647
    %v887 = vand.u32 %v886, 65535
    %v888 = vshra.s32 %v886, 16
    %v889 = vcvt.s32.f32 %v887
    %v890 = vcvt.s32.f32 %v888
    %891 = vmin.xlane.f32.xlu0 %v890
    %v892 = vpop.xlane.xlu0 %891
    %vm893 = vcmp.eq.f32.partialorder %v890, %v892
    %v894 = vsel %vm893, %v889, inf
    %895 = vmin.xlane.f32.xlu0 %v894
    %v896 = vpop.xlane.xlu0 %895
    %v897 = vcvt.f32.s32 %v896
    %v898 = vcvt.f32.s32 %v892
    %v899 = vshll.u32 %v898, 16
    %v900 = vadd.s32 %v899, %v897
    %vm901 = vcmp.eq.s32.totalorder %v187, %v900
    %v902 = vsel %vm901, 1, 0
    %v903 = vcvt.s32.f32 %v902
    %v905 = vsel %vm702, %v903, 0
    %v908 = vsel %vm702, %v698, 0
    %v911 = vsel %vm702, %v699, 0
    %913 = vmatprep.subr.mxu0 0.0
    %914 = vmatpush1.xpose.msra.mxu0 0.0
    %915 = vmatprep.subr.mxu0 0.0
    %916 = vmatpush1.xpose.msra.mxu0 0.0
    %917 = vmatprep.subr.mxu0 0.0
    %918 = vmatpush1.xpose.msra.mxu0 0.0
    %919 = vmatprep.subr.mxu0 0.0
    %920 = vmatpush1.xpose.msra.mxu0 0.0
    %921 = vmatprep.subr.mxu0 0.0
    %922 = vmatpush1.xpose.msra.mxu0 0.0
    %923 = vmatprep.subr.mxu0 0.0
    %924 = vmatpush1.xpose.msra.mxu0 0.0
    %925 = vmatprep.subr.mxu0 0.0
    %926 = vmatpush1.xpose.msra.mxu0 0.0
    %927 = vmatprep.subr.mxu0 0.0
    %928 = vmatpush1.xpose.msra.mxu0 0.0
    %929 = vmatprep.subr.mxu0 0.0
    %930 = vmatpush1.xpose.msra.mxu0 0.0
    %931 = vmatprep.subr.mxu0 0.0
    %932 = vmatpush1.xpose.msra.mxu0 0.0
    %933 = vmatprep.subr.mxu0 0.0
    %934 = vmatpush1.xpose.msra.mxu0 0.0
    %935 = vmatprep.subr.mxu0 0.0
    %936 = vmatpush1.xpose.msra.mxu0 0.0
    %937 = vmatprep.subr.mxu0 0.0
    %938 = vmatpush1.xpose.msra.mxu0 0.0
    %939 = vmatprep.subr.mxu0 0.0
    %940 = vmatpush1.xpose.msra.mxu0 0.0
    %941 = vmatprep.subr.mxu0 0.0
    %942 = vmatpush1.xpose.msra.mxu0 %v911
    %943 = vmatprep.subr.mxu0 0.0
    %944 = vmatpush1.xpose.msra.mxu0 %v908
    %945 = vmatprep.subr.mxu0 0.0
    %946 = vmatpush2.xpose.msra.mxu0 0.0
    %947 = vmatprep.subr.mxu0 0.0
    %948 = vmatpush2.xpose.msra.mxu0 0.0
    %949 = vmatprep.subr.mxu0 0.0
    %950 = vmatpush2.xpose.msra.mxu0 0.0
    %951 = vmatprep.subr.mxu0 0.0
    %952 = vmatpush2.xpose.msra.mxu0 0.0
    %953 = vmatprep.subr.mxu0 0.0
    %954 = vmatpush2.xpose.msra.mxu0 0.0
    %955 = vmatprep.subr.mxu0 0.0
    %956 = vmatpush2.xpose.msra.mxu0 0.0
    %957 = vmatprep.subr.mxu0 0.0
    %958 = vmatpush2.xpose.msra.mxu0 0.0
    %959 = vmatprep.subr.mxu0 0.0
    %960 = vmatpush2.xpose.msra.mxu0 0.0
    %961 = vmatprep.subr.mxu0 0.0
    %962 = vmatpush2.xpose.msra.mxu0 0.0
    %963 = vmatprep.subr.mxu0 0.0
    %964 = vmatpush2.xpose.msra.mxu0 0.0
    %965 = vmatprep.subr.mxu0 0.0
    %966 = vmatpush2.xpose.msra.mxu0 0.0
    %967 = vmatprep.subr.mxu0 0.0
    %968 = vmatpush2.xpose.msra.mxu0 0.0
    %969 = vmatprep.subr.mxu0 0.0
    %970 = vmatpush2.xpose.msra.mxu0 0.0
    %971 = vmatprep.subr.mxu0 0.0
    %972 = vmatpush2.xpose.msra.mxu0 0.0
    %973 = vmatprep.subr.mxu0 0.0
    %974 = vmatpush2.xpose.msra.mxu0 0.0
    %975 = vmatprep.subr.mxu0 0.0
    %976 = vmatpush2.xpose.msra.mxu0 0.0
    %977 = vmatprep.mubr.f32.mxu0 0.0
    %978 = vmatmul.mubr.f32.gmra.mxu0 %v905
    %v979 = vpop.f32.mrf.mxu0
    %v980 = vadd.f32 0.0, %v979
    %v981 = vpop.f32.mrf.mxu0
    %982 = vdwg.mxu0
    %v983 = vsub.f32 %v980, %v797
    %v984 = vmul.f32 %v983, %v983
    %v985 = vadd.f32 %v984, 0.0
    %v986 = vld [vmem:[#allocation5] sm:$0xff]
    %v987 = vld [vmem:[#allocation5 + $0x8] sm:$0xff]
    %v989 = vsel %vm800, %v980, 0
    %991 = vmatprep.subr.mxu0 0.0
    %992 = vmatpush1.msra.mxu0 0.0
    %993 = vmatprep.subr.mxu0 0.0
    %994 = vmatpush1.msra.mxu0 0.0
    %995 = vmatprep.subr.mxu0 0.0
    %996 = vmatpush1.msra.mxu0 0.0
    %997 = vmatprep.subr.mxu0 0.0
    %998 = vmatpush1.msra.mxu0 0.0
    %999 = vmatprep.subr.mxu0 0.0
    %1000 = vmatpush1.msra.mxu0 0.0
    %1001 = vmatprep.subr.mxu0 0.0
    %1002 = vmatpush1.msra.mxu0 0.0
    %1003 = vmatprep.subr.mxu0 0.0
    %1004 = vmatpush1.msra.mxu0 0.0
    %1005 = vmatprep.subr.mxu0 0.0
    %1006 = vmatpush1.msra.mxu0 0.0
    %1007 = vmatprep.subr.mxu0 0.0
    %1008 = vmatpush1.msra.mxu0 0.0
    %1009 = vmatprep.subr.mxu0 0.0
    %1010 = vmatpush1.msra.mxu0 0.0
    %1011 = vmatprep.subr.mxu0 0.0
    %1012 = vmatpush1.msra.mxu0 0.0
    %1013 = vmatprep.subr.mxu0 0.0
    %1014 = vmatpush1.msra.mxu0 0.0
    %1015 = vmatprep.subr.mxu0 0.0
    %1016 = vmatpush1.msra.mxu0 0.0
    %1017 = vmatprep.subr.mxu0 0.0
    %1018 = vmatpush1.msra.mxu0 0.0
    %1019 = vmatprep.subr.mxu0 0.0
    %1020 = vmatpush1.msra.mxu0 %v987
    %1021 = vmatprep.subr.mxu0 0.0
    %1022 = vmatpush1.msra.mxu0 %v986
    %1023 = vmatprep.subr.mxu0 0.0
    %1024 = vmatpush2.msra.mxu0 0.0
    %1025 = vmatprep.subr.mxu0 0.0
    %1026 = vmatpush2.msra.mxu0 0.0
    %1027 = vmatprep.subr.mxu0 0.0
    %1028 = vmatpush2.msra.mxu0 0.0
    %1029 = vmatprep.subr.mxu0 0.0
    %1030 = vmatpush2.msra.mxu0 0.0
    %1031 = vmatprep.subr.mxu0 0.0
    %1032 = vmatpush2.msra.mxu0 0.0
    %1033 = vmatprep.subr.mxu0 0.0
    %1034 = vmatpush2.msra.mxu0 0.0
    %1035 = vmatprep.subr.mxu0 0.0
    %1036 = vmatpush2.msra.mxu0 0.0
    %1037 = vmatprep.subr.mxu0 0.0
    %1038 = vmatpush2.msra.mxu0 0.0
    %1039 = vmatprep.subr.mxu0 0.0
    %1040 = vmatpush2.msra.mxu0 0.0
    %1041 = vmatprep.subr.mxu0 0.0
    %1042 = vmatpush2.msra.mxu0 0.0
    %1043 = vmatprep.subr.mxu0 0.0
    %1044 = vmatpush2.msra.mxu0 0.0
    %1045 = vmatprep.subr.mxu0 0.0
    %1046 = vmatpush2.msra.mxu0 0.0
    %1047 = vmatprep.subr.mxu0 0.0
    %1048 = vmatpush2.msra.mxu0 0.0
    %1049 = vmatprep.subr.mxu0 0.0
    %1050 = vmatpush2.msra.mxu0 0.0
    %1051 = vmatprep.subr.mxu0 0.0
    %1052 = vmatpush2.msra.mxu0 0.0
    %1053 = vmatprep.subr.mxu0 0.0
    %1054 = vmatpush2.msra.mxu0 0.0
    %1055 = vmatprep.mubr.f32.mxu0 0.0
    %1056 = vmatmul.mubr.f32.gmra.mxu0 %v989
    %v1057 = vpop.f32.mrf.mxu0
    %v1058 = vadd.f32 0.0, %v1057
    %v1059 = vpop.f32.mrf.mxu0
    %1060 = vdwg.mxu0
    %v1062 = vlaneseq
    %v1063 = vshrl.u32 %v1062, 7
    %v1064 = vsub.s32 0, %v1063
    %v1065 = vrot.slane %v715, %v1064
    %v1067 = vadd.f32 %v1065, %v1058
    %s1068 = scalar_lea.vmem %s6, 32
    %v1069 = vld [vmem:[%s1068] sm:$0xff]
    %v1070 = vld [vmem:[%s1068 + $0x8] sm:$0xff]
    %v1071 = vld [vmem:[%s1068 + $0x10] sm:$0xff]
    %v1072 = vld [vmem:[%s1068 + $0x18] sm:$0xff]
    %s1073 = scalar_lea.vmem [#allocation3], 1
    %v1074 = vld [vmem:[%s1073] sm:$0x1]
    %v1076 = vlaneseq
    %v1077 = vshrl.u32 %v1076, 7
    %v1078 = vsub.s32 0, %v1077
    %v1079 = vrot.slane %v1074, %v1078
    %1081 = vmatprep.subr.mxu0 0.0
    %1082 = vmatpush1.msra.mxu0 0.0
    %1083 = vmatprep.subr.mxu0 0.0
    %1084 = vmatpush1.msra.mxu0 0.0
    %1085 = vmatprep.subr.mxu0 0.0
    %1086 = vmatpush1.msra.mxu0 0.0
    %1087 = vmatprep.subr.mxu0 0.0
    %1088 = vmatpush1.msra.mxu0 0.0
    %1089 = vmatprep.subr.mxu0 0.0
    %1090 = vmatpush1.msra.mxu0 0.0
    %1091 = vmatprep.subr.mxu0 0.0
    %1092 = vmatpush1.msra.mxu0 0.0
    %1093 = vmatprep.subr.mxu0 0.0
    %1094 = vmatpush1.msra.mxu0 0.0
    %1095 = vmatprep.subr.mxu0 0.0
    %1096 = vmatpush1.msra.mxu0 0.0
    %1097 = vmatprep.subr.mxu0 0.0
    %1098 = vmatpush1.msra.mxu0 0.0
    %1099 = vmatprep.subr.mxu0 0.0
    %1100 = vmatpush1.msra.mxu0 0.0
    %1101 = vmatprep.subr.mxu0 0.0
    %1102 = vmatpush1.msra.mxu0 0.0
    %1103 = vmatprep.subr.mxu0 0.0
    %1104 = vmatpush1.msra.mxu0 0.0
    %1105 = vmatprep.subr.mxu0 0.0
    %1106 = vmatpush1.msra.mxu0 %v1072
    %1107 = vmatprep.subr.mxu0 0.0
    %1108 = vmatpush1.msra.mxu0 %v1071
    %1109 = vmatprep.subr.mxu0 0.0
    %1110 = vmatpush1.msra.mxu0 %v1070
    %1111 = vmatprep.subr.mxu0 0.0
    %1112 = vmatpush1.msra.mxu0 %v1069
    %1113 = vmatprep.subr.mxu0 0.0
    %1114 = vmatpush2.msra.mxu0 0.0
    %1115 = vmatprep.subr.mxu0 0.0
    %1116 = vmatpush2.msra.mxu0 0.0
    %1117 = vmatprep.subr.mxu0 0.0
    %1118 = vmatpush2.msra.mxu0 0.0
    %1119 = vmatprep.subr.mxu0 0.0
    %1120 = vmatpush2.msra.mxu0 0.0
    %1121 = vmatprep.subr.mxu0 0.0
    %1122 = vmatpush2.msra.mxu0 0.0
    %1123 = vmatprep.subr.mxu0 0.0
    %1124 = vmatpush2.msra.mxu0 0.0
    %1125 = vmatprep.subr.mxu0 0.0
    %1126 = vmatpush2.msra.mxu0 0.0
    %1127 = vmatprep.subr.mxu0 0.0
    %1128 = vmatpush2.msra.mxu0 0.0
    %1129 = vmatprep.subr.mxu0 0.0
    %1130 = vmatpush2.msra.mxu0 0.0
    %1131 = vmatprep.subr.mxu0 0.0
    %1132 = vmatpush2.msra.mxu0 0.0
    %1133 = vmatprep.subr.mxu0 0.0
    %1134 = vmatpush2.msra.mxu0 0.0
    %1135 = vmatprep.subr.mxu0 0.0
    %1136 = vmatpush2.msra.mxu0 0.0
    %1137 = vmatprep.subr.mxu0 0.0
    %1138 = vmatpush2.msra.mxu0 0.0
    %1139 = vmatprep.subr.mxu0 0.0
    %1140 = vmatpush2.msra.mxu0 0.0
    %1141 = vmatprep.subr.mxu0 0.0
    %1142 = vmatpush2.msra.mxu0 0.0
    %1143 = vmatprep.subr.mxu0 0.0
    %1144 = vmatpush2.msra.mxu0 0.0
    %1145 = vmatprep.mubr.f32.mxu0 0.0
    %1146 = vmatmul.mubr.f32.gmra.mxu0 %v728
    %v1147 = vpop.f32.mrf.mxu0
    %v1148 = vadd.f32 %v1079, %v1147
    %v1149 = vpop.f32.mrf.mxu0
    %1150 = vdwg.mxu0
    %v1152 = vsel %vm800, %v1148, 0
    %1154 = vmatprep.subr.mxu0 0.0
    %1155 = vmatpush1.msra.mxu0 0.0
    %1156 = vmatprep.subr.mxu0 0.0
    %1157 = vmatpush1.msra.mxu0 0.0
    %1158 = vmatprep.subr.mxu0 0.0
    %1159 = vmatpush1.msra.mxu0 0.0
    %1160 = vmatprep.subr.mxu0 0.0
    %1161 = vmatpush1.msra.mxu0 0.0
    %1162 = vmatprep.subr.mxu0 0.0
    %1163 = vmatpush1.msra.mxu0 0.0
    %1164 = vmatprep.subr.mxu0 0.0
    %1165 = vmatpush1.msra.mxu0 0.0
    %1166 = vmatprep.subr.mxu0 0.0
    %1167 = vmatpush1.msra.mxu0 0.0
    %1168 = vmatprep.subr.mxu0 0.0
    %1169 = vmatpush1.msra.mxu0 0.0
    %1170 = vmatprep.subr.mxu0 0.0
    %1171 = vmatpush1.msra.mxu0 0.0
    %1172 = vmatprep.subr.mxu0 0.0
    %1173 = vmatpush1.msra.mxu0 0.0
    %1174 = vmatprep.subr.mxu0 0.0
    %1175 = vmatpush1.msra.mxu0 0.0
    %1176 = vmatprep.subr.mxu0 0.0
    %1177 = vmatpush1.msra.mxu0 0.0
    %1178 = vmatprep.subr.mxu0 0.0
    %1179 = vmatpush1.msra.mxu0 0.0
    %1180 = vmatprep.subr.mxu0 0.0
    %1181 = vmatpush1.msra.mxu0 0.0
    %1182 = vmatprep.subr.mxu0 0.0
    %1183 = vmatpush1.msra.mxu0 %v699
    %1184 = vmatprep.subr.mxu0 0.0
    %1185 = vmatpush1.msra.mxu0 %v698
    %1186 = vmatprep.subr.mxu0 0.0
    %1187 = vmatpush2.msra.mxu0 0.0
    %1188 = vmatprep.subr.mxu0 0.0
    %1189 = vmatpush2.msra.mxu0 0.0
    %1190 = vmatprep.subr.mxu0 0.0
    %1191 = vmatpush2.msra.mxu0 0.0
    %1192 = vmatprep.subr.mxu0 0.0
    %1193 = vmatpush2.msra.mxu0 0.0
    %1194 = vmatprep.subr.mxu0 0.0
    %1195 = vmatpush2.msra.mxu0 0.0
    %1196 = vmatprep.subr.mxu0 0.0
    %1197 = vmatpush2.msra.mxu0 0.0
    %1198 = vmatprep.subr.mxu0 0.0
    %1199 = vmatpush2.msra.mxu0 0.0
    %1200 = vmatprep.subr.mxu0 0.0
    %1201 = vmatpush2.msra.mxu0 0.0
    %1202 = vmatprep.subr.mxu0 0.0
    %1203 = vmatpush2.msra.mxu0 0.0
    %1204 = vmatprep.subr.mxu0 0.0
    %1205 = vmatpush2.msra.mxu0 0.0
    %1206 = vmatprep.subr.mxu0 0.0
    %1207 = vmatpush2.msra.mxu0 0.0
    %1208 = vmatprep.subr.mxu0 0.0
    %1209 = vmatpush2.msra.mxu0 0.0
    %1210 = vmatprep.subr.mxu0 0.0
    %1211 = vmatpush2.msra.mxu0 0.0
    %1212 = vmatprep.subr.mxu0 0.0
    %1213 = vmatpush2.msra.mxu0 0.0
    %1214 = vmatprep.subr.mxu0 0.0
    %1215 = vmatpush2.msra.mxu0 0.0
    %1216 = vmatprep.subr.mxu0 0.0
    %1217 = vmatpush2.msra.mxu0 0.0
    %1218 = vmatprep.mubr.f32.mxu0 0.0
    %1219 = vmatmul.mubr.f32.gmra.mxu0 %v1152
    %v1220 = vpop.f32.mrf.mxu0
    %v1221 = vadd.f32 0.0, %v1220
    %v1222 = vpop.f32.mrf.mxu0
    %1223 = vdwg.mxu0
    %v1224 = vmul.f32 %v1148, %v1148
    %v1225 = vsel %vm800, %v1224, 0.0
    %1226 = vadd.xlane.f32.xlu0 %v1225
    %v1227 = vpop.xlane.xlu0 %1226
    %v1228 = vmul.f32 %v1221, 2.0
    %v1229 = vsub.f32 %v1227, %v1228
    %v1230 = vadd.f32 %v1229, %v711
    %v1231 = vsel %vm702, %v1230, inf
    %1232 = vmin.xlane.f32.xlu0 %v1231
    %v1233 = vpop.xlane.xlu0 %1232
    %vm1234 = vcmp.le.f32.partialorder %v1230, %v1233
    %v1235 = vsel %vm1234, %v187, 8
    %v1236 = vsel %vm702, %v1235, 2147483647
    %v1237 = vand.u32 %v1236, 65535
    %v1238 = vshra.s32 %v1236, 16
    %v1239 = vcvt.s32.f32 %v1237
    %v1240 = vcvt.s32.f32 %v1238
    %1241 = vmin.xlane.f32.xlu0 %v1240
    %v1242 = vpop.xlane.xlu0 %1241
    %vm1243 = vcmp.eq.f32.partialorder %v1240, %v1242
    %v1244 = vsel %vm1243, %v1239, inf
    %1245 = vmin.xlane.f32.xlu0 %v1244
    %v1246 = vpop.xlane.xlu0 %1245
    %v1247 = vcvt.f32.s32 %v1246
    %v1248 = vcvt.f32.s32 %v1242
    %v1249 = vshll.u32 %v1248, 16
    %v1250 = vadd.s32 %v1249, %v1247
    %vm1251 = vcmp.eq.s32.totalorder %v187, %v1250
    %v1252 = vsel %vm1251, 1, 0
    %v1253 = vcvt.s32.f32 %v1252
    %v1255 = vsel %vm702, %v1253, 0
    %1257 = vmatprep.subr.mxu0 0.0
    %1258 = vmatpush1.xpose.msra.mxu0 0.0
    %1259 = vmatprep.subr.mxu0 0.0
    %1260 = vmatpush1.xpose.msra.mxu0 0.0
    %1261 = vmatprep.subr.mxu0 0.0
    %1262 = vmatpush1.xpose.msra.mxu0 0.0
    %1263 = vmatprep.subr.mxu0 0.0
    %1264 = vmatpush1.xpose.msra.mxu0 0.0
    %1265 = vmatprep.subr.mxu0 0.0
    %1266 = vmatpush1.xpose.msra.mxu0 0.0
    %1267 = vmatprep.subr.mxu0 0.0
    %1268 = vmatpush1.xpose.msra.mxu0 0.0
    %1269 = vmatprep.subr.mxu0 0.0
    %1270 = vmatpush1.xpose.msra.mxu0 0.0
    %1271 = vmatprep.subr.mxu0 0.0
    %1272 = vmatpush1.xpose.msra.mxu0 0.0
    %1273 = vmatprep.subr.mxu0 0.0
    %1274 = vmatpush1.xpose.msra.mxu0 0.0
    %1275 = vmatprep.subr.mxu0 0.0
    %1276 = vmatpush1.xpose.msra.mxu0 0.0
    %1277 = vmatprep.subr.mxu0 0.0
    %1278 = vmatpush1.xpose.msra.mxu0 0.0
    %1279 = vmatprep.subr.mxu0 0.0
    %1280 = vmatpush1.xpose.msra.mxu0 0.0
    %1281 = vmatprep.subr.mxu0 0.0
    %1282 = vmatpush1.xpose.msra.mxu0 0.0
    %1283 = vmatprep.subr.mxu0 0.0
    %1284 = vmatpush1.xpose.msra.mxu0 0.0
    %1285 = vmatprep.subr.mxu0 0.0
    %1286 = vmatpush1.xpose.msra.mxu0 %v911
    %1287 = vmatprep.subr.mxu0 0.0
    %1288 = vmatpush1.xpose.msra.mxu0 %v908
    %1289 = vmatprep.subr.mxu0 0.0
    %1290 = vmatpush2.xpose.msra.mxu0 0.0
    %1291 = vmatprep.subr.mxu0 0.0
    %1292 = vmatpush2.xpose.msra.mxu0 0.0
    %1293 = vmatprep.subr.mxu0 0.0
    %1294 = vmatpush2.xpose.msra.mxu0 0.0
    %1295 = vmatprep.subr.mxu0 0.0
    %1296 = vmatpush2.xpose.msra.mxu0 0.0
    %1297 = vmatprep.subr.mxu0 0.0
    %1298 = vmatpush2.xpose.msra.mxu0 0.0
    %1299 = vmatprep.subr.mxu0 0.0
    %1300 = vmatpush2.xpose.msra.mxu0 0.0
    %1301 = vmatprep.subr.mxu0 0.0
    %1302 = vmatpush2.xpose.msra.mxu0 0.0
    %1303 = vmatprep.subr.mxu0 0.0
    %1304 = vmatpush2.xpose.msra.mxu0 0.0
    %1305 = vmatprep.subr.mxu0 0.0
    %1306 = vmatpush2.xpose.msra.mxu0 0.0
    %1307 = vmatprep.subr.mxu0 0.0
    %1308 = vmatpush2.xpose.msra.mxu0 0.0
    %1309 = vmatprep.subr.mxu0 0.0
    %1310 = vmatpush2.xpose.msra.mxu0 0.0
    %1311 = vmatprep.subr.mxu0 0.0
    %1312 = vmatpush2.xpose.msra.mxu0 0.0
    %1313 = vmatprep.subr.mxu0 0.0
    %1314 = vmatpush2.xpose.msra.mxu0 0.0
    %1315 = vmatprep.subr.mxu0 0.0
    %1316 = vmatpush2.xpose.msra.mxu0 0.0
    %1317 = vmatprep.subr.mxu0 0.0
    %1318 = vmatpush2.xpose.msra.mxu0 0.0
    %1319 = vmatprep.subr.mxu0 0.0
    %1320 = vmatpush2.xpose.msra.mxu0 0.0
    %1321 = vmatprep.mubr.f32.mxu0 0.0
    %1322 = vmatmul.mubr.f32.gmra.mxu0 %v1255
    %v1323 = vpop.f32.mrf.mxu0
    %v1324 = vadd.f32 0.0, %v1323
    %v1325 = vpop.f32.mrf.mxu0
    %1326 = vdwg.mxu0
    %v1327 = vsub.f32 %v1324, %v1148
    %v1328 = vmul.f32 %v1327, %v1327
    %v1329 = vadd.f32 %v985, %v1328
    %s1330 = scalar_lea.vmem [#allocation5], 16
    %v1331 = vld [vmem:[%s1330] sm:$0xff]
    %v1332 = vld [vmem:[%s1330 + $0x8] sm:$0xff]
    %v1334 = vsel %vm800, %v1324, 0
    %1336 = vmatprep.subr.mxu0 0.0
    %1337 = vmatpush1.msra.mxu0 0.0
    %1338 = vmatprep.subr.mxu0 0.0
    %1339 = vmatpush1.msra.mxu0 0.0
    %1340 = vmatprep.subr.mxu0 0.0
    %1341 = vmatpush1.msra.mxu0 0.0
    %1342 = vmatprep.subr.mxu0 0.0
    %1343 = vmatpush1.msra.mxu0 0.0
    %1344 = vmatprep.subr.mxu0 0.0
    %1345 = vmatpush1.msra.mxu0 0.0
    %1346 = vmatprep.subr.mxu0 0.0
    %1347 = vmatpush1.msra.mxu0 0.0
    %1348 = vmatprep.subr.mxu0 0.0
    %1349 = vmatpush1.msra.mxu0 0.0
    %1350 = vmatprep.subr.mxu0 0.0
    %1351 = vmatpush1.msra.mxu0 0.0
    %1352 = vmatprep.subr.mxu0 0.0
    %1353 = vmatpush1.msra.mxu0 0.0
    %1354 = vmatprep.subr.mxu0 0.0
    %1355 = vmatpush1.msra.mxu0 0.0
    %1356 = vmatprep.subr.mxu0 0.0
    %1357 = vmatpush1.msra.mxu0 0.0
    %1358 = vmatprep.subr.mxu0 0.0
    %1359 = vmatpush1.msra.mxu0 0.0
    %1360 = vmatprep.subr.mxu0 0.0
    %1361 = vmatpush1.msra.mxu0 0.0
    %1362 = vmatprep.subr.mxu0 0.0
    %1363 = vmatpush1.msra.mxu0 0.0
    %1364 = vmatprep.subr.mxu0 0.0
    %1365 = vmatpush1.msra.mxu0 %v1332
    %1366 = vmatprep.subr.mxu0 0.0
    %1367 = vmatpush1.msra.mxu0 %v1331
    %1368 = vmatprep.subr.mxu0 0.0
    %1369 = vmatpush2.msra.mxu0 0.0
    %1370 = vmatprep.subr.mxu0 0.0
    %1371 = vmatpush2.msra.mxu0 0.0
    %1372 = vmatprep.subr.mxu0 0.0
    %1373 = vmatpush2.msra.mxu0 0.0
    %1374 = vmatprep.subr.mxu0 0.0
    %1375 = vmatpush2.msra.mxu0 0.0
    %1376 = vmatprep.subr.mxu0 0.0
    %1377 = vmatpush2.msra.mxu0 0.0
    %1378 = vmatprep.subr.mxu0 0.0
    %1379 = vmatpush2.msra.mxu0 0.0
    %1380 = vmatprep.subr.mxu0 0.0
    %1381 = vmatpush2.msra.mxu0 0.0
    %1382 = vmatprep.subr.mxu0 0.0
    %1383 = vmatpush2.msra.mxu0 0.0
    %1384 = vmatprep.subr.mxu0 0.0
    %1385 = vmatpush2.msra.mxu0 0.0
    %1386 = vmatprep.subr.mxu0 0.0
    %1387 = vmatpush2.msra.mxu0 0.0
    %1388 = vmatprep.subr.mxu0 0.0
    %1389 = vmatpush2.msra.mxu0 0.0
    %1390 = vmatprep.subr.mxu0 0.0
    %1391 = vmatpush2.msra.mxu0 0.0
    %1392 = vmatprep.subr.mxu0 0.0
    %1393 = vmatpush2.msra.mxu0 0.0
    %1394 = vmatprep.subr.mxu0 0.0
    %1395 = vmatpush2.msra.mxu0 0.0
    %1396 = vmatprep.subr.mxu0 0.0
    %1397 = vmatpush2.msra.mxu0 0.0
    %1398 = vmatprep.subr.mxu0 0.0
    %1399 = vmatpush2.msra.mxu0 0.0
    %1400 = vmatprep.mubr.f32.mxu0 0.0
    %1401 = vmatmul.mubr.f32.gmra.mxu0 %v1334
    %v1402 = vpop.f32.mrf.mxu0
    %v1403 = vadd.f32 0.0, %v1402
    %v1404 = vpop.f32.mrf.mxu0
    %1405 = vdwg.mxu0
    %v1406 = vadd.f32 %v1067, %v1403
    %v1407 = vmul.f32 %v1329, %v714
    %v1408 = vsel %vm800, %v1407, 0.0
    %1409 = vadd.xlane.f32.xlu0 %v1408
    %v1410 = vpop.xlane.xlu0 %1409
    %v1411 = vrot.slane %v1410, 4
    %v1412 = vadd.f32 %v1410, %v1411
    %v1413 = vrot.slane %v1412, 2
    %v1414 = vadd.f32 %v1412, %v1413
    %v1415 = vrot.slane %v1414, 1
    %v1416 = vadd.f32 %v1414, %v1415
    %s1417 = vtos %v1416
    %v1418 = vstv %s1417
    %v1419 = vrcp.pop 128.0
    %v1420 = vmul.f32 %v1418, %v1419
    %v1421 = vld [vmem:[#allocation7] sm:$0xff]
    %v1422 = vld [vmem:[#allocation7 + $0x8] sm:$0xff]
    %v1423 = vld [vmem:[#allocation7 + $0x10] sm:$0xff]
    %v1424 = vld [vmem:[#allocation7 + $0x18] sm:$0xff]
    %v1425 = vld [vmem:[%s12] sm:$0x1]
    %v1427 = vlaneseq
    %v1428 = vshrl.u32 %v1427, 7
    %v1429 = vsub.s32 0, %v1428
    %v1430 = vrot.slane %v1425, %v1429
    %v1433 = vsel %vm362, %v1406, 0
    %1435 = vmatprep.subr.mxu0 0.0
    %1436 = vmatpush1.msra.mxu0 0.0
    %1437 = vmatprep.subr.mxu0 0.0
    %1438 = vmatpush1.msra.mxu0 0.0
    %1439 = vmatprep.subr.mxu0 0.0
    %1440 = vmatpush1.msra.mxu0 0.0
    %1441 = vmatprep.subr.mxu0 0.0
    %1442 = vmatpush1.msra.mxu0 0.0
    %1443 = vmatprep.subr.mxu0 0.0
    %1444 = vmatpush1.msra.mxu0 0.0
    %1445 = vmatprep.subr.mxu0 0.0
    %1446 = vmatpush1.msra.mxu0 0.0
    %1447 = vmatprep.subr.mxu0 0.0
    %1448 = vmatpush1.msra.mxu0 0.0
    %1449 = vmatprep.subr.mxu0 0.0
    %1450 = vmatpush1.msra.mxu0 0.0
    %1451 = vmatprep.subr.mxu0 0.0
    %1452 = vmatpush1.msra.mxu0 0.0
    %1453 = vmatprep.subr.mxu0 0.0
    %1454 = vmatpush1.msra.mxu0 0.0
    %1455 = vmatprep.subr.mxu0 0.0
    %1456 = vmatpush1.msra.mxu0 0.0
    %1457 = vmatprep.subr.mxu0 0.0
    %1458 = vmatpush1.msra.mxu0 0.0
    %1459 = vmatprep.subr.mxu0 0.0
    %1460 = vmatpush1.msra.mxu0 %v1424
    %1461 = vmatprep.subr.mxu0 0.0
    %1462 = vmatpush1.msra.mxu0 %v1423
    %1463 = vmatprep.subr.mxu0 0.0
    %1464 = vmatpush1.msra.mxu0 %v1422
    %1465 = vmatprep.subr.mxu0 0.0
    %1466 = vmatpush1.msra.mxu0 %v1421
    %1467 = vmatprep.subr.mxu0 0.0
    %1468 = vmatpush2.msra.mxu0 0.0
    %1469 = vmatprep.subr.mxu0 0.0
    %1470 = vmatpush2.msra.mxu0 0.0
    %1471 = vmatprep.subr.mxu0 0.0
    %1472 = vmatpush2.msra.mxu0 0.0
    %1473 = vmatprep.subr.mxu0 0.0
    %1474 = vmatpush2.msra.mxu0 0.0
    %1475 = vmatprep.subr.mxu0 0.0
    %1476 = vmatpush2.msra.mxu0 0.0
    %1477 = vmatprep.subr.mxu0 0.0
    %1478 = vmatpush2.msra.mxu0 0.0
    %1479 = vmatprep.subr.mxu0 0.0
    %1480 = vmatpush2.msra.mxu0 0.0
    %1481 = vmatprep.subr.mxu0 0.0
    %1482 = vmatpush2.msra.mxu0 0.0
    %1483 = vmatprep.subr.mxu0 0.0
    %1484 = vmatpush2.msra.mxu0 0.0
    %1485 = vmatprep.subr.mxu0 0.0
    %1486 = vmatpush2.msra.mxu0 0.0
    %1487 = vmatprep.subr.mxu0 0.0
    %1488 = vmatpush2.msra.mxu0 0.0
    %1489 = vmatprep.subr.mxu0 0.0
    %1490 = vmatpush2.msra.mxu0 0.0
    %1491 = vmatprep.subr.mxu0 0.0
    %1492 = vmatpush2.msra.mxu0 0.0
    %1493 = vmatprep.subr.mxu0 0.0
    %1494 = vmatpush2.msra.mxu0 0.0
    %1495 = vmatprep.subr.mxu0 0.0
    %1496 = vmatpush2.msra.mxu0 0.0
    %1497 = vmatprep.subr.mxu0 0.0
    %1498 = vmatpush2.msra.mxu0 0.0
    %1499 = vmatprep.mubr.f32.mxu0 0.0
    %1500 = vmatmul.mubr.f32.gmra.mxu0 %v1433
    %v1501 = vpop.f32.mrf.mxu0
    %v1502 = vadd.f32 %v1430, %v1501
    %v1503 = vpop.f32.mrf.mxu0
    %1504 = vdwg.mxu0
    %v1505 = vmax.f32 %v1502, 0.0
    %v1506 = vld [vmem:[#allocation8] sm:$0xff]
    %v1507 = vld [vmem:[#allocation8 + $0x8] sm:$0xff]
    %v1508 = vld [vmem:[#allocation8 + $0x10] sm:$0xff]
    %v1509 = vld [vmem:[#allocation8 + $0x18] sm:$0xff]
    %v1510 = vld [vmem:[%s14] sm:$0x1]
    %v1512 = vlaneseq
    %v1513 = vshrl.u32 %v1512, 7
    %v1514 = vsub.s32 0, %v1513
    %v1515 = vrot.slane %v1510, %v1514
    %v1518 = vsel %vm362, %v1505, 0
    %1520 = vmatprep.subr.mxu0 0.0
    %1521 = vmatpush1.msra.mxu0 0.0
    %1522 = vmatprep.subr.mxu0 0.0
    %1523 = vmatpush1.msra.mxu0 0.0
    %1524 = vmatprep.subr.mxu0 0.0
    %1525 = vmatpush1.msra.mxu0 0.0
    %1526 = vmatprep.subr.mxu0 0.0
    %1527 = vmatpush1.msra.mxu0 0.0
    %1528 = vmatprep.subr.mxu0 0.0
    %1529 = vmatpush1.msra.mxu0 0.0
    %1530 = vmatprep.subr.mxu0 0.0
    %1531 = vmatpush1.msra.mxu0 0.0
    %1532 = vmatprep.subr.mxu0 0.0
    %1533 = vmatpush1.msra.mxu0 0.0
    %1534 = vmatprep.subr.mxu0 0.0
    %1535 = vmatpush1.msra.mxu0 0.0
    %1536 = vmatprep.subr.mxu0 0.0
    %1537 = vmatpush1.msra.mxu0 0.0
    %1538 = vmatprep.subr.mxu0 0.0
    %1539 = vmatpush1.msra.mxu0 0.0
    %1540 = vmatprep.subr.mxu0 0.0
    %1541 = vmatpush1.msra.mxu0 0.0
    %1542 = vmatprep.subr.mxu0 0.0
    %1543 = vmatpush1.msra.mxu0 0.0
    %1544 = vmatprep.subr.mxu0 0.0
    %1545 = vmatpush1.msra.mxu0 %v1509
    %1546 = vmatprep.subr.mxu0 0.0
    %1547 = vmatpush1.msra.mxu0 %v1508
    %1548 = vmatprep.subr.mxu0 0.0
    %1549 = vmatpush1.msra.mxu0 %v1507
    %1550 = vmatprep.subr.mxu0 0.0
    %1551 = vmatpush1.msra.mxu0 %v1506
    %1552 = vmatprep.subr.mxu0 0.0
    %1553 = vmatpush2.msra.mxu0 0.0
    %1554 = vmatprep.subr.mxu0 0.0
    %1555 = vmatpush2.msra.mxu0 0.0
    %1556 = vmatprep.subr.mxu0 0.0
    %1557 = vmatpush2.msra.mxu0 0.0
    %1558 = vmatprep.subr.mxu0 0.0
    %1559 = vmatpush2.msra.mxu0 0.0
    %1560 = vmatprep.subr.mxu0 0.0
    %1561 = vmatpush2.msra.mxu0 0.0
    %1562 = vmatprep.subr.mxu0 0.0
    %1563 = vmatpush2.msra.mxu0 0.0
    %1564 = vmatprep.subr.mxu0 0.0
    %1565 = vmatpush2.msra.mxu0 0.0
    %1566 = vmatprep.subr.mxu0 0.0
    %1567 = vmatpush2.msra.mxu0 0.0
    %1568 = vmatprep.subr.mxu0 0.0
    %1569 = vmatpush2.msra.mxu0 0.0
    %1570 = vmatprep.subr.mxu0 0.0
    %1571 = vmatpush2.msra.mxu0 0.0
    %1572 = vmatprep.subr.mxu0 0.0
    %1573 = vmatpush2.msra.mxu0 0.0
    %1574 = vmatprep.subr.mxu0 0.0
    %1575 = vmatpush2.msra.mxu0 0.0
    %1576 = vmatprep.subr.mxu0 0.0
    %1577 = vmatpush2.msra.mxu0 0.0
    %1578 = vmatprep.subr.mxu0 0.0
    %1579 = vmatpush2.msra.mxu0 0.0
    %1580 = vmatprep.subr.mxu0 0.0
    %1581 = vmatpush2.msra.mxu0 0.0
    %1582 = vmatprep.subr.mxu0 0.0
    %1583 = vmatpush2.msra.mxu0 0.0
    %1584 = vmatprep.mubr.f32.mxu0 0.0
    %1585 = vmatmul.mubr.f32.gmra.mxu0 %v1518
    %v1586 = vpop.f32.mrf.mxu0
    %v1587 = vadd.f32 %v1515, %v1586
    %v1588 = vpop.f32.mrf.mxu0
    %1589 = vdwg.mxu0
    %vm1590 = vcmp.eq.s32.totalorder %v187, 2
    %v1591 = vsel %vm1590, 1, 0
    %v1592 = vcvt.s32.f32 %v1591
    %v1593 = vmul.f32 %v1592, %v1420
    %v1594 = vadd.f32 %v1587, %v1593
    %1595 = vst [vmem:[%s23] sm:$0xff] %v1594
    %v1596 = vld [vmem:[%s1] sm:$0xff]
    %v1597 = vld [vmem:[%s1 + $0x8] sm:$0xff]
    %v1598 = vld [vmem:[%s1 + $0x10] sm:$0xff]
    %v1599 = vld [vmem:[%s1 + $0x18] sm:$0xff]
    %v1600 = vld [vmem:[%s1 + $0x20] sm:$0xff]
    %v1601 = vld [vmem:[%s1 + $0x28] sm:$0xff]
    %v1602 = vld [vmem:[%s1 + $0x30] sm:$0xff]
    %v1603 = vld [vmem:[%s1 + $0x38] sm:$0xff]
    %1604 = vset.pattern.permute.xlu0 0
    %1605 = vperm.xlu0 %1604, %v1596
    %v1606 = vpop.permute.xlu0 %1605
    %1607 = vset.pattern.permute.xlu0 0
    %1608 = vperm.xlu0 %1607, %v1597
    %v1609 = vpop.permute.xlu0 %1608
    %1610 = vset.pattern.permute.xlu0 0
    %1611 = vperm.xlu0 %1610, %v1598
    %v1612 = vpop.permute.xlu0 %1611
    %1613 = vset.pattern.permute.xlu0 0
    %1614 = vperm.xlu0 %1613, %v1599
    %v1615 = vpop.permute.xlu0 %1614
    %1616 = vset.pattern.permute.xlu0 0
    %1617 = vperm.xlu0 %1616, %v1600
    %v1618 = vpop.permute.xlu0 %1617
    %1619 = vset.pattern.permute.xlu0 0
    %1620 = vperm.xlu0 %1619, %v1601
    %v1621 = vpop.permute.xlu0 %1620
    %1622 = vset.pattern.permute.xlu0 0
    %1623 = vperm.xlu0 %1622, %v1602
    %v1624 = vpop.permute.xlu0 %1623
    %1625 = vset.pattern.permute.xlu0 0
    %1626 = vperm.xlu0 %1625, %v1603
    %v1627 = vpop.permute.xlu0 %1626
    %vm1628 = vcmp.eq.s32.totalorder %v187, %v1606
    %vm1629 = vcmp.eq.s32.totalorder %v187, %v1609
    %vm1630 = vcmp.eq.s32.totalorder %v187, %v1612
    %vm1631 = vcmp.eq.s32.totalorder %v187, %v1615
    %vm1632 = vcmp.eq.s32.totalorder %v187, %v1618
    %vm1633 = vcmp.eq.s32.totalorder %v187, %v1621
    %vm1634 = vcmp.eq.s32.totalorder %v187, %v1624
    %vm1635 = vcmp.eq.s32.totalorder %v187, %v1627
    %v1636 = vsel %vm1628, 1, 0
    %v1637 = vsel %vm1629, 1, 0
    %v1638 = vsel %vm1630, 1, 0
    %v1639 = vsel %vm1631, 1, 0
    %v1640 = vsel %vm1632, 1, 0
    %v1641 = vsel %vm1633, 1, 0
    %v1642 = vsel %vm1634, 1, 0
    %v1643 = vsel %vm1635, 1, 0
    %v1644 = vcvt.s32.f32 %v1636
    %v1645 = vcvt.s32.f32 %v1637
    %v1646 = vcvt.s32.f32 %v1638
    %v1647 = vcvt.s32.f32 %v1639
    %v1648 = vcvt.s32.f32 %v1640
    %v1649 = vcvt.s32.f32 %v1641
    %v1650 = vcvt.s32.f32 %v1642
    %v1651 = vcvt.s32.f32 %v1643
    %v1652 = vld [vmem:[#allocation10] sm:$0xff]
    %v1653 = vld [vmem:[#allocation10 + $0x8] sm:$0xff]
    %v1655 = vsel %vm800, %v1644, 0
    %v1658 = vsel %vm800, %v1645, 0
    %v1661 = vsel %vm800, %v1646, 0
    %v1664 = vsel %vm800, %v1647, 0
    %v1667 = vsel %vm800, %v1648, 0
    %v1670 = vsel %vm800, %v1649, 0
    %v1673 = vsel %vm800, %v1650, 0
    %v1676 = vsel %vm800, %v1651, 0
    %1678 = vmatprep.subr.mxu0 0.0
    %1679 = vmatpush1.msra.mxu0 0.0
    %1680 = vmatprep.subr.mxu0 0.0
    %1681 = vmatpush1.msra.mxu0 0.0
    %1682 = vmatprep.subr.mxu0 0.0
    %1683 = vmatpush1.msra.mxu0 0.0
    %1684 = vmatprep.subr.mxu0 0.0
    %1685 = vmatpush1.msra.mxu0 0.0
    %1686 = vmatprep.subr.mxu0 0.0
    %1687 = vmatpush1.msra.mxu0 0.0
    %1688 = vmatprep.subr.mxu0 0.0
    %1689 = vmatpush1.msra.mxu0 0.0
    %1690 = vmatprep.subr.mxu0 0.0
    %1691 = vmatpush1.msra.mxu0 0.0
    %1692 = vmatprep.subr.mxu0 0.0
    %1693 = vmatpush1.msra.mxu0 0.0
    %1694 = vmatprep.subr.mxu0 0.0
    %1695 = vmatpush1.msra.mxu0 0.0
    %1696 = vmatprep.subr.mxu0 0.0
    %1697 = vmatpush1.msra.mxu0 0.0
    %1698 = vmatprep.subr.mxu0 0.0
    %1699 = vmatpush1.msra.mxu0 0.0
    %1700 = vmatprep.subr.mxu0 0.0
    %1701 = vmatpush1.msra.mxu0 0.0
    %1702 = vmatprep.subr.mxu0 0.0
    %1703 = vmatpush1.msra.mxu0 0.0
    %1704 = vmatprep.subr.mxu0 0.0
    %1705 = vmatpush1.msra.mxu0 0.0
    %1706 = vmatprep.subr.mxu0 0.0
    %1707 = vmatpush1.msra.mxu0 %v1653
    %1708 = vmatprep.subr.mxu0 0.0
    %1709 = vmatpush1.msra.mxu0 %v1652
    %1710 = vmatprep.subr.mxu0 0.0
    %1711 = vmatpush2.msra.mxu0 0.0
    %1712 = vmatprep.subr.mxu0 0.0
    %1713 = vmatpush2.msra.mxu0 0.0
    %1714 = vmatprep.subr.mxu0 0.0
    %1715 = vmatpush2.msra.mxu0 0.0
    %1716 = vmatprep.subr.mxu0 0.0
    %1717 = vmatpush2.msra.mxu0 0.0
    %1718 = vmatprep.subr.mxu0 0.0
    %1719 = vmatpush2.msra.mxu0 0.0
    %1720 = vmatprep.subr.mxu0 0.0
    %1721 = vmatpush2.msra.mxu0 0.0
    %1722 = vmatprep.subr.mxu0 0.0
    %1723 = vmatpush2.msra.mxu0 0.0
    %1724 = vmatprep.subr.mxu0 0.0
    %1725 = vmatpush2.msra.mxu0 0.0
    %1726 = vmatprep.subr.mxu0 0.0
    %1727 = vmatpush2.msra.mxu0 0.0
    %1728 = vmatprep.subr.mxu0 0.0
    %1729 = vmatpush2.msra.mxu0 0.0
    %1730 = vmatprep.subr.mxu0 0.0
    %1731 = vmatpush2.msra.mxu0 0.0
    %1732 = vmatprep.subr.mxu0 0.0
    %1733 = vmatpush2.msra.mxu0 0.0
    %1734 = vmatprep.subr.mxu0 0.0
    %1735 = vmatpush2.msra.mxu0 0.0
    %1736 = vmatprep.subr.mxu0 0.0
    %1737 = vmatpush2.msra.mxu0 0.0
    %1738 = vmatprep.subr.mxu0 0.0
    %1739 = vmatpush2.msra.mxu0 0.0
    %1740 = vmatprep.subr.mxu0 0.0
    %1741 = vmatpush2.msra.mxu0 0.0
    %1742 = vmatprep.mubr.f32.mxu0 0.0
    %1743 = vmatmul.mubr.f32.gmra.mxu0 %v1655
    %v1744 = vpop.f32.mrf.mxu0
    %v1745 = vadd.f32 0.0, %v1744
    %v1746 = vpop.f32.mrf.mxu0
    %1747 = vmatprep.mubr.f32.mxu0 0.0
    %1748 = vmatmul.mubr.f32.gmra.mxu0 %v1658
    %v1749 = vpop.f32.mrf.mxu0
    %v1750 = vadd.f32 0.0, %v1749
    %v1751 = vpop.f32.mrf.mxu0
    %1752 = vmatprep.mubr.f32.mxu0 0.0
    %1753 = vmatmul.mubr.f32.gmra.mxu0 %v1661
    %v1754 = vpop.f32.mrf.mxu0
    %v1755 = vadd.f32 0.0, %v1754
    %v1756 = vpop.f32.mrf.mxu0
    %1757 = vmatprep.mubr.f32.mxu0 0.0
    %1758 = vmatmul.mubr.f32.gmra.mxu0 %v1664
    %v1759 = vpop.f32.mrf.mxu0
    %v1760 = vadd.f32 0.0, %v1759
    %v1761 = vpop.f32.mrf.mxu0
    %1762 = vmatprep.mubr.f32.mxu0 0.0
    %1763 = vmatmul.mubr.f32.gmra.mxu0 %v1667
    %v1764 = vpop.f32.mrf.mxu0
    %v1765 = vadd.f32 0.0, %v1764
    %v1766 = vpop.f32.mrf.mxu0
    %1767 = vmatprep.mubr.f32.mxu0 0.0
    %1768 = vmatmul.mubr.f32.gmra.mxu0 %v1670
    %v1769 = vpop.f32.mrf.mxu0
    %v1770 = vadd.f32 0.0, %v1769
    %v1771 = vpop.f32.mrf.mxu0
    %1772 = vmatprep.mubr.f32.mxu0 0.0
    %1773 = vmatmul.mubr.f32.gmra.mxu0 %v1673
    %v1774 = vpop.f32.mrf.mxu0
    %v1775 = vadd.f32 0.0, %v1774
    %v1776 = vpop.f32.mrf.mxu0
    %1777 = vmatprep.mubr.f32.mxu0 0.0
    %1778 = vmatmul.mubr.f32.gmra.mxu0 %v1676
    %v1779 = vpop.f32.mrf.mxu0
    %v1780 = vadd.f32 0.0, %v1779
    %v1781 = vpop.f32.mrf.mxu0
    %1782 = vdwg.mxu0
    %v1783 = vld [vmem:[%s16] sm:$0xff]
    %v1784 = vld [vmem:[%s16 + $0x8] sm:$0xff]
    %v1785 = vld [vmem:[%s16 + $0x10] sm:$0xff]
    %v1786 = vld [vmem:[%s16 + $0x18] sm:$0xff]
    %v1787 = vld [vmem:[%s18] sm:$0x1]
    %v1789 = vlaneseq
    %v1790 = vshrl.u32 %v1789, 7
    %v1791 = vsub.s32 0, %v1790
    %v1792 = vrot.slane %v1787, %v1791
    %v1795 = vsel %vm362, %v1745, 0
    %v1798 = vsel %vm362, %v1750, 0
    %v1801 = vsel %vm362, %v1755, 0
    %v1804 = vsel %vm362, %v1760, 0
    %v1807 = vsel %vm362, %v1765, 0
    %v1810 = vsel %vm362, %v1770, 0
    %v1813 = vsel %vm362, %v1775, 0
    %v1816 = vsel %vm362, %v1780, 0
    %1818 = vmatprep.subr.mxu0 0.0
    %1819 = vmatpush1.msra.mxu0 0.0
    %1820 = vmatprep.subr.mxu0 0.0
    %1821 = vmatpush1.msra.mxu0 0.0
    %1822 = vmatprep.subr.mxu0 0.0
    %1823 = vmatpush1.msra.mxu0 0.0
    %1824 = vmatprep.subr.mxu0 0.0
    %1825 = vmatpush1.msra.mxu0 0.0
    %1826 = vmatprep.subr.mxu0 0.0
    %1827 = vmatpush1.msra.mxu0 0.0
    %1828 = vmatprep.subr.mxu0 0.0
    %1829 = vmatpush1.msra.mxu0 0.0
    %1830 = vmatprep.subr.mxu0 0.0
    %1831 = vmatpush1.msra.mxu0 0.0
    %1832 = vmatprep.subr.mxu0 0.0
    %1833 = vmatpush1.msra.mxu0 0.0
    %1834 = vmatprep.subr.mxu0 0.0
    %1835 = vmatpush1.msra.mxu0 0.0
    %1836 = vmatprep.subr.mxu0 0.0
    %1837 = vmatpush1.msra.mxu0 0.0
    %1838 = vmatprep.subr.mxu0 0.0
    %1839 = vmatpush1.msra.mxu0 0.0
    %1840 = vmatprep.subr.mxu0 0.0
    %1841 = vmatpush1.msra.mxu0 0.0
    %1842 = vmatprep.subr.mxu0 0.0
    %1843 = vmatpush1.msra.mxu0 %v1786
    %1844 = vmatprep.subr.mxu0 0.0
    %1845 = vmatpush1.msra.mxu0 %v1785
    %1846 = vmatprep.subr.mxu0 0.0
    %1847 = vmatpush1.msra.mxu0 %v1784
    %1848 = vmatprep.subr.mxu0 0.0
    %1849 = vmatpush1.msra.mxu0 %v1783
    %1850 = vmatprep.subr.mxu0 0.0
    %1851 = vmatpush2.msra.mxu0 0.0
    %1852 = vmatprep.subr.mxu0 0.0
    %1853 = vmatpush2.msra.mxu0 0.0
    %1854 = vmatprep.subr.mxu0 0.0
    %1855 = vmatpush2.msra.mxu0 0.0
    %1856 = vmatprep.subr.mxu0 0.0
    %1857 = vmatpush2.msra.mxu0 0.0
    %1858 = vmatprep.subr.mxu0 0.0
    %1859 = vmatpush2.msra.mxu0 0.0
    %1860 = vmatprep.subr.mxu0 0.0
    %1861 = vmatpush2.msra.mxu0 0.0
    %1862 = vmatprep.subr.mxu0 0.0
    %1863 = vmatpush2.msra.mxu0 0.0
    %1864 = vmatprep.subr.mxu0 0.0
    %1865 = vmatpush2.msra.mxu0 0.0
    %1866 = vmatprep.subr.mxu0 0.0
    %1867 = vmatpush2.msra.mxu0 0.0
    %1868 = vmatprep.subr.mxu0 0.0
    %1869 = vmatpush2.msra.mxu0 0.0
    %1870 = vmatprep.subr.mxu0 0.0
    %1871 = vmatpush2.msra.mxu0 0.0
    %1872 = vmatprep.subr.mxu0 0.0
    %1873 = vmatpush2.msra.mxu0 0.0
    %1874 = vmatprep.subr.mxu0 0.0
    %1875 = vmatpush2.msra.mxu0 0.0
    %1876 = vmatprep.subr.mxu0 0.0
    %1877 = vmatpush2.msra.mxu0 0.0
    %1878 = vmatprep.subr.mxu0 0.0
    %1879 = vmatpush2.msra.mxu0 0.0
    %1880 = vmatprep.subr.mxu0 0.0
    %1881 = vmatpush2.msra.mxu0 0.0
    %1882 = vmatprep.mubr.f32.mxu0 0.0
    %1883 = vmatmul.mubr.f32.gmra.mxu0 %v1795
    %v1884 = vpop.f32.mrf.mxu0
    %v1885 = vadd.f32 %v1792, %v1884
    %v1886 = vpop.f32.mrf.mxu0
    %1887 = vmatprep.mubr.f32.mxu0 0.0
    %1888 = vmatmul.mubr.f32.gmra.mxu0 %v1798
    %v1889 = vpop.f32.mrf.mxu0
    %v1890 = vadd.f32 %v1792, %v1889
    %v1891 = vpop.f32.mrf.mxu0
    %1892 = vmatprep.mubr.f32.mxu0 0.0
    %1893 = vmatmul.mubr.f32.gmra.mxu0 %v1801
    %v1894 = vpop.f32.mrf.mxu0
    %v1895 = vadd.f32 %v1792, %v1894
    %v1896 = vpop.f32.mrf.mxu0
    %1897 = vmatprep.mubr.f32.mxu0 0.0
    %1898 = vmatmul.mubr.f32.gmra.mxu0 %v1804
    %v1899 = vpop.f32.mrf.mxu0
    %v1900 = vadd.f32 %v1792, %v1899
    %v1901 = vpop.f32.mrf.mxu0
    %1902 = vmatprep.mubr.f32.mxu0 0.0
    %1903 = vmatmul.mubr.f32.gmra.mxu0 %v1807
    %v1904 = vpop.f32.mrf.mxu0
    %v1905 = vadd.f32 %v1792, %v1904
    %v1906 = vpop.f32.mrf.mxu0
    %1907 = vmatprep.mubr.f32.mxu0 0.0
    %1908 = vmatmul.mubr.f32.gmra.mxu0 %v1810
    %v1909 = vpop.f32.mrf.mxu0
    %v1910 = vadd.f32 %v1792, %v1909
    %v1911 = vpop.f32.mrf.mxu0
    %1912 = vmatprep.mubr.f32.mxu0 0.0
    %1913 = vmatmul.mubr.f32.gmra.mxu0 %v1813
    %v1914 = vpop.f32.mrf.mxu0
    %v1915 = vadd.f32 %v1792, %v1914
    %v1916 = vpop.f32.mrf.mxu0
    %1917 = vmatprep.mubr.f32.mxu0 0.0
    %1918 = vmatmul.mubr.f32.gmra.mxu0 %v1816
    %v1919 = vpop.f32.mrf.mxu0
    %v1920 = vadd.f32 %v1792, %v1919
    %v1921 = vpop.f32.mrf.mxu0
    %1922 = vdwg.mxu0
    %s1923 = scalar_lea.vmem %s16, 32
    %v1924 = vld [vmem:[%s1923] sm:$0xff]
    %v1925 = vld [vmem:[%s1923 + $0x8] sm:$0xff]
    %v1926 = vld [vmem:[%s1923 + $0x10] sm:$0xff]
    %v1927 = vld [vmem:[%s1923 + $0x18] sm:$0xff]
    %s1928 = scalar_lea.vmem %s18, 1
    %v1929 = vld [vmem:[%s1928] sm:$0x1]
    %v1931 = vlaneseq
    %v1932 = vshrl.u32 %v1931, 7
    %v1933 = vsub.s32 0, %v1932
    %v1934 = vrot.slane %v1929, %v1933
    %1936 = vmatprep.subr.mxu0 0.0
    %1937 = vmatpush1.msra.mxu0 0.0
    %1938 = vmatprep.subr.mxu0 0.0
    %1939 = vmatpush1.msra.mxu0 0.0
    %1940 = vmatprep.subr.mxu0 0.0
    %1941 = vmatpush1.msra.mxu0 0.0
    %1942 = vmatprep.subr.mxu0 0.0
    %1943 = vmatpush1.msra.mxu0 0.0
    %1944 = vmatprep.subr.mxu0 0.0
    %1945 = vmatpush1.msra.mxu0 0.0
    %1946 = vmatprep.subr.mxu0 0.0
    %1947 = vmatpush1.msra.mxu0 0.0
    %1948 = vmatprep.subr.mxu0 0.0
    %1949 = vmatpush1.msra.mxu0 0.0
    %1950 = vmatprep.subr.mxu0 0.0
    %1951 = vmatpush1.msra.mxu0 0.0
    %1952 = vmatprep.subr.mxu0 0.0
    %1953 = vmatpush1.msra.mxu0 0.0
    %1954 = vmatprep.subr.mxu0 0.0
    %1955 = vmatpush1.msra.mxu0 0.0
    %1956 = vmatprep.subr.mxu0 0.0
    %1957 = vmatpush1.msra.mxu0 0.0
    %1958 = vmatprep.subr.mxu0 0.0
    %1959 = vmatpush1.msra.mxu0 0.0
    %1960 = vmatprep.subr.mxu0 0.0
    %1961 = vmatpush1.msra.mxu0 %v1927
    %1962 = vmatprep.subr.mxu0 0.0
    %1963 = vmatpush1.msra.mxu0 %v1926
    %1964 = vmatprep.subr.mxu0 0.0
    %1965 = vmatpush1.msra.mxu0 %v1925
    %1966 = vmatprep.subr.mxu0 0.0
    %1967 = vmatpush1.msra.mxu0 %v1924
    %1968 = vmatprep.subr.mxu0 0.0
    %1969 = vmatpush2.msra.mxu0 0.0
    %1970 = vmatprep.subr.mxu0 0.0
    %1971 = vmatpush2.msra.mxu0 0.0
    %1972 = vmatprep.subr.mxu0 0.0
    %1973 = vmatpush2.msra.mxu0 0.0
    %1974 = vmatprep.subr.mxu0 0.0
    %1975 = vmatpush2.msra.mxu0 0.0
    %1976 = vmatprep.subr.mxu0 0.0
    %1977 = vmatpush2.msra.mxu0 0.0
    %1978 = vmatprep.subr.mxu0 0.0
    %1979 = vmatpush2.msra.mxu0 0.0
    %1980 = vmatprep.subr.mxu0 0.0
    %1981 = vmatpush2.msra.mxu0 0.0
    %1982 = vmatprep.subr.mxu0 0.0
    %1983 = vmatpush2.msra.mxu0 0.0
    %1984 = vmatprep.subr.mxu0 0.0
    %1985 = vmatpush2.msra.mxu0 0.0
    %1986 = vmatprep.subr.mxu0 0.0
    %1987 = vmatpush2.msra.mxu0 0.0
    %1988 = vmatprep.subr.mxu0 0.0
    %1989 = vmatpush2.msra.mxu0 0.0
    %1990 = vmatprep.subr.mxu0 0.0
    %1991 = vmatpush2.msra.mxu0 0.0
    %1992 = vmatprep.subr.mxu0 0.0
    %1993 = vmatpush2.msra.mxu0 0.0
    %1994 = vmatprep.subr.mxu0 0.0
    %1995 = vmatpush2.msra.mxu0 0.0
    %1996 = vmatprep.subr.mxu0 0.0
    %1997 = vmatpush2.msra.mxu0 0.0
    %1998 = vmatprep.subr.mxu0 0.0
    %1999 = vmatpush2.msra.mxu0 0.0
    %2000 = vmatprep.mubr.f32.mxu0 0.0
    %2001 = vmatmul.mubr.f32.gmra.mxu0 %v1795
    %v2002 = vpop.f32.mrf.mxu0
    %v2003 = vadd.f32 %v1934, %v2002
    %v2004 = vpop.f32.mrf.mxu0
    %2005 = vmatprep.mubr.f32.mxu0 0.0
    %2006 = vmatmul.mubr.f32.gmra.mxu0 %v1798
    %v2007 = vpop.f32.mrf.mxu0
    %v2008 = vadd.f32 %v1934, %v2007
    %v2009 = vpop.f32.mrf.mxu0
    %2010 = vmatprep.mubr.f32.mxu0 0.0
    %2011 = vmatmul.mubr.f32.gmra.mxu0 %v1801
    %v2012 = vpop.f32.mrf.mxu0
    %v2013 = vadd.f32 %v1934, %v2012
    %v2014 = vpop.f32.mrf.mxu0
    %2015 = vmatprep.mubr.f32.mxu0 0.0
    %2016 = vmatmul.mubr.f32.gmra.mxu0 %v1804
    %v2017 = vpop.f32.mrf.mxu0
    %v2018 = vadd.f32 %v1934, %v2017
    %v2019 = vpop.f32.mrf.mxu0
    %2020 = vmatprep.mubr.f32.mxu0 0.0
    %2021 = vmatmul.mubr.f32.gmra.mxu0 %v1807
    %v2022 = vpop.f32.mrf.mxu0
    %v2023 = vadd.f32 %v1934, %v2022
    %v2024 = vpop.f32.mrf.mxu0
    %2025 = vmatprep.mubr.f32.mxu0 0.0
    %2026 = vmatmul.mubr.f32.gmra.mxu0 %v1810
    %v2027 = vpop.f32.mrf.mxu0
    %v2028 = vadd.f32 %v1934, %v2027
    %v2029 = vpop.f32.mrf.mxu0
    %2030 = vmatprep.mubr.f32.mxu0 0.0
    %2031 = vmatmul.mubr.f32.gmra.mxu0 %v1813
    %v2032 = vpop.f32.mrf.mxu0
    %v2033 = vadd.f32 %v1934, %v2032
    %v2034 = vpop.f32.mrf.mxu0
    %2035 = vmatprep.mubr.f32.mxu0 0.0
    %2036 = vmatmul.mubr.f32.gmra.mxu0 %v1816
    %v2037 = vpop.f32.mrf.mxu0
    %v2038 = vadd.f32 %v1934, %v2037
    %v2039 = vpop.f32.mrf.mxu0
    %2040 = vdwg.mxu0
    %s2041 = scalar_lea.vmem %s16, 64
    %v2042 = vld [vmem:[%s2041] sm:$0xff]
    %v2043 = vld [vmem:[%s2041 + $0x8] sm:$0xff]
    %v2044 = vld [vmem:[%s2041 + $0x10] sm:$0xff]
    %v2045 = vld [vmem:[%s2041 + $0x18] sm:$0xff]
    %s2046 = scalar_lea.vmem %s18, 2
    %v2047 = vld [vmem:[%s2046] sm:$0x1]
    %v2049 = vlaneseq
    %v2050 = vshrl.u32 %v2049, 7
    %v2051 = vsub.s32 0, %v2050
    %v2052 = vrot.slane %v2047, %v2051
    %2054 = vmatprep.subr.mxu0 0.0
    %2055 = vmatpush1.msra.mxu0 0.0
    %2056 = vmatprep.subr.mxu0 0.0
    %2057 = vmatpush1.msra.mxu0 0.0
    %2058 = vmatprep.subr.mxu0 0.0
    %2059 = vmatpush1.msra.mxu0 0.0
    %2060 = vmatprep.subr.mxu0 0.0
    %2061 = vmatpush1.msra.mxu0 0.0
    %2062 = vmatprep.subr.mxu0 0.0
    %2063 = vmatpush1.msra.mxu0 0.0
    %2064 = vmatprep.subr.mxu0 0.0
    %2065 = vmatpush1.msra.mxu0 0.0
    %2066 = vmatprep.subr.mxu0 0.0
    %2067 = vmatpush1.msra.mxu0 0.0
    %2068 = vmatprep.subr.mxu0 0.0
    %2069 = vmatpush1.msra.mxu0 0.0
    %2070 = vmatprep.subr.mxu0 0.0
    %2071 = vmatpush1.msra.mxu0 0.0
    %2072 = vmatprep.subr.mxu0 0.0
    %2073 = vmatpush1.msra.mxu0 0.0
    %2074 = vmatprep.subr.mxu0 0.0
    %2075 = vmatpush1.msra.mxu0 0.0
    %2076 = vmatprep.subr.mxu0 0.0
    %2077 = vmatpush1.msra.mxu0 0.0
    %2078 = vmatprep.subr.mxu0 0.0
    %2079 = vmatpush1.msra.mxu0 %v2045
    %2080 = vmatprep.subr.mxu0 0.0
    %2081 = vmatpush1.msra.mxu0 %v2044
    %2082 = vmatprep.subr.mxu0 0.0
    %2083 = vmatpush1.msra.mxu0 %v2043
    %2084 = vmatprep.subr.mxu0 0.0
    %2085 = vmatpush1.msra.mxu0 %v2042
    %2086 = vmatprep.subr.mxu0 0.0
    %2087 = vmatpush2.msra.mxu0 0.0
    %2088 = vmatprep.subr.mxu0 0.0
    %2089 = vmatpush2.msra.mxu0 0.0
    %2090 = vmatprep.subr.mxu0 0.0
    %2091 = vmatpush2.msra.mxu0 0.0
    %2092 = vmatprep.subr.mxu0 0.0
    %2093 = vmatpush2.msra.mxu0 0.0
    %2094 = vmatprep.subr.mxu0 0.0
    %2095 = vmatpush2.msra.mxu0 0.0
    %2096 = vmatprep.subr.mxu0 0.0
    %2097 = vmatpush2.msra.mxu0 0.0
    %2098 = vmatprep.subr.mxu0 0.0
    %2099 = vmatpush2.msra.mxu0 0.0
    %2100 = vmatprep.subr.mxu0 0.0
    %2101 = vmatpush2.msra.mxu0 0.0
    %2102 = vmatprep.subr.mxu0 0.0
    %2103 = vmatpush2.msra.mxu0 0.0
    %2104 = vmatprep.subr.mxu0 0.0
    %2105 = vmatpush2.msra.mxu0 0.0
    %2106 = vmatprep.subr.mxu0 0.0
    %2107 = vmatpush2.msra.mxu0 0.0
    %2108 = vmatprep.subr.mxu0 0.0
    %2109 = vmatpush2.msra.mxu0 0.0
    %2110 = vmatprep.subr.mxu0 0.0
    %2111 = vmatpush2.msra.mxu0 0.0
    %2112 = vmatprep.subr.mxu0 0.0
    %2113 = vmatpush2.msra.mxu0 0.0
    %2114 = vmatprep.subr.mxu0 0.0
    %2115 = vmatpush2.msra.mxu0 0.0
    %2116 = vmatprep.subr.mxu0 0.0
    %2117 = vmatpush2.msra.mxu0 0.0
    %2118 = vmatprep.mubr.f32.mxu0 0.0
    %2119 = vmatmul.mubr.f32.gmra.mxu0 %v1795
    %v2120 = vpop.f32.mrf.mxu0
    %v2121 = vadd.f32 %v2052, %v2120
    %v2122 = vpop.f32.mrf.mxu0
    %2123 = vmatprep.mubr.f32.mxu0 0.0
    %2124 = vmatmul.mubr.f32.gmra.mxu0 %v1798
    %v2125 = vpop.f32.mrf.mxu0
    %v2126 = vadd.f32 %v2052, %v2125
    %v2127 = vpop.f32.mrf.mxu0
    %2128 = vmatprep.mubr.f32.mxu0 0.0
    %2129 = vmatmul.mubr.f32.gmra.mxu0 %v1801
    %v2130 = vpop.f32.mrf.mxu0
    %v2131 = vadd.f32 %v2052, %v2130
    %v2132 = vpop.f32.mrf.mxu0
    %2133 = vmatprep.mubr.f32.mxu0 0.0
    %2134 = vmatmul.mubr.f32.gmra.mxu0 %v1804
    %v2135 = vpop.f32.mrf.mxu0
    %v2136 = vadd.f32 %v2052, %v2135
    %v2137 = vpop.f32.mrf.mxu0
    %2138 = vmatprep.mubr.f32.mxu0 0.0
    %2139 = vmatmul.mubr.f32.gmra.mxu0 %v1807
    %v2140 = vpop.f32.mrf.mxu0
    %v2141 = vadd.f32 %v2052, %v2140
    %v2142 = vpop.f32.mrf.mxu0
    %2143 = vmatprep.mubr.f32.mxu0 0.0
    %2144 = vmatmul.mubr.f32.gmra.mxu0 %v1810
    %v2145 = vpop.f32.mrf.mxu0
    %v2146 = vadd.f32 %v2052, %v2145
    %v2147 = vpop.f32.mrf.mxu0
    %2148 = vmatprep.mubr.f32.mxu0 0.0
    %2149 = vmatmul.mubr.f32.gmra.mxu0 %v1813
    %v2150 = vpop.f32.mrf.mxu0
    %v2151 = vadd.f32 %v2052, %v2150
    %v2152 = vpop.f32.mrf.mxu0
    %2153 = vmatprep.mubr.f32.mxu0 0.0
    %2154 = vmatmul.mubr.f32.gmra.mxu0 %v1816
    %v2155 = vpop.f32.mrf.mxu0
    %v2156 = vadd.f32 %v2052, %v2155
    %v2157 = vpop.f32.mrf.mxu0
    %2158 = vdwg.mxu0
    %v2159 = vld [vmem:[%s17] sm:$0xff]
    %v2160 = vld [vmem:[%s17 + $0x8] sm:$0xff]
    %v2161 = vld [vmem:[%s17 + $0x10] sm:$0xff]
    %v2162 = vld [vmem:[%s17 + $0x18] sm:$0xff]
    %s2163 = scalar_lea.vmem %s17, 32
    %v2164 = vld [vmem:[%s2163] sm:$0xff]
    %v2165 = vld [vmem:[%s2163 + $0x8] sm:$0xff]
    %v2166 = vld [vmem:[%s2163 + $0x10] sm:$0xff]
    %v2167 = vld [vmem:[%s2163 + $0x18] sm:$0xff]
    %s2168 = scalar_lea.vmem %s17, 64
    %v2169 = vld [vmem:[%s2168] sm:$0xff]
    %v2170 = vld [vmem:[%s2168 + $0x8] sm:$0xff]
    %v2171 = vld [vmem:[%s2168 + $0x10] sm:$0xff]
    %v2172 = vld [vmem:[%s2168 + $0x18] sm:$0xff]
    %v2173 = vld [vmem:[#allocation11] sm:$0x1]
    %s2174 = scalar_lea.vmem [#allocation11], 1
    %v2175 = vld [vmem:[%s2174] sm:$0x1]
    %s2176 = scalar_lea.vmem [#allocation11], 2
    %v2177 = vld [vmem:[%s2176] sm:$0x1]
    %v2179 = vlaneseq
    %v2180 = vshrl.u32 %v2179, 7
    %v2181 = vsub.s32 0, %v2180
    %v2182 = vrot.slane %v2173, %v2181
    %2184 = vmatprep.subr.mxu0 0.0
    %2185 = vmatpush1.msra.mxu0 0.0
    %2186 = vmatprep.subr.mxu0 0.0
    %2187 = vmatpush1.msra.mxu0 0.0
    %2188 = vmatprep.subr.mxu0 0.0
    %2189 = vmatpush1.msra.mxu0 0.0
    %2190 = vmatprep.subr.mxu0 0.0
    %2191 = vmatpush1.msra.mxu0 0.0
    %2192 = vmatprep.subr.mxu0 0.0
    %2193 = vmatpush1.msra.mxu0 0.0
    %2194 = vmatprep.subr.mxu0 0.0
    %2195 = vmatpush1.msra.mxu0 0.0
    %2196 = vmatprep.subr.mxu0 0.0
    %2197 = vmatpush1.msra.mxu0 0.0
    %2198 = vmatprep.subr.mxu0 0.0
    %2199 = vmatpush1.msra.mxu0 0.0
    %2200 = vmatprep.subr.mxu0 0.0
    %2201 = vmatpush1.msra.mxu0 0.0
    %2202 = vmatprep.subr.mxu0 0.0
    %2203 = vmatpush1.msra.mxu0 0.0
    %2204 = vmatprep.subr.mxu0 0.0
    %2205 = vmatpush1.msra.mxu0 0.0
    %2206 = vmatprep.subr.mxu0 0.0
    %2207 = vmatpush1.msra.mxu0 0.0
    %2208 = vmatprep.subr.mxu0 0.0
    %2209 = vmatpush1.msra.mxu0 %v2162
    %2210 = vmatprep.subr.mxu0 0.0
    %2211 = vmatpush1.msra.mxu0 %v2161
    %2212 = vmatprep.subr.mxu0 0.0
    %2213 = vmatpush1.msra.mxu0 %v2160
    %2214 = vmatprep.subr.mxu0 0.0
    %2215 = vmatpush1.msra.mxu0 %v2159
    %2216 = vmatprep.subr.mxu0 0.0
    %2217 = vmatpush2.msra.mxu0 0.0
    %2218 = vmatprep.subr.mxu0 0.0
    %2219 = vmatpush2.msra.mxu0 0.0
    %2220 = vmatprep.subr.mxu0 0.0
    %2221 = vmatpush2.msra.mxu0 0.0
    %2222 = vmatprep.subr.mxu0 0.0
    %2223 = vmatpush2.msra.mxu0 0.0
    %2224 = vmatprep.subr.mxu0 0.0
    %2225 = vmatpush2.msra.mxu0 0.0
    %2226 = vmatprep.subr.mxu0 0.0
    %2227 = vmatpush2.msra.mxu0 0.0
    %2228 = vmatprep.subr.mxu0 0.0
    %2229 = vmatpush2.msra.mxu0 0.0
    %2230 = vmatprep.subr.mxu0 0.0
    %2231 = vmatpush2.msra.mxu0 0.0
    %2232 = vmatprep.subr.mxu0 0.0
    %2233 = vmatpush2.msra.mxu0 0.0
    %2234 = vmatprep.subr.mxu0 0.0
    %2235 = vmatpush2.msra.mxu0 0.0
    %2236 = vmatprep.subr.mxu0 0.0
    %2237 = vmatpush2.msra.mxu0 0.0
    %2238 = vmatprep.subr.mxu0 0.0
    %2239 = vmatpush2.msra.mxu0 0.0
    %2240 = vmatprep.subr.mxu0 0.0
    %2241 = vmatpush2.msra.mxu0 0.0
    %2242 = vmatprep.subr.mxu0 0.0
    %2243 = vmatpush2.msra.mxu0 0.0
    %2244 = vmatprep.subr.mxu0 0.0
    %2245 = vmatpush2.msra.mxu0 0.0
    %2246 = vmatprep.subr.mxu0 0.0
    %2247 = vmatpush2.msra.mxu0 0.0
    %2248 = vmatprep.mubr.f32.mxu0 0.0
    %2249 = vmatmul.mubr.f32.gmra.mxu0 %v1433
    %v2250 = vpop.f32.mrf.mxu0
    %v2251 = vadd.f32 %v2182, %v2250
    %v2252 = vpop.f32.mrf.mxu0
    %2253 = vdwg.mxu0
    %v2255 = vlaneseq
    %v2256 = vshrl.u32 %v2255, 7
    %v2257 = vsub.s32 0, %v2256
    %v2258 = vrot.slane %v2175, %v2257
    %2260 = vmatprep.subr.mxu0 0.0
    %2261 = vmatpush1.msra.mxu0 0.0
    %2262 = vmatprep.subr.mxu0 0.0
    %2263 = vmatpush1.msra.mxu0 0.0
    %2264 = vmatprep.subr.mxu0 0.0
    %2265 = vmatpush1.msra.mxu0 0.0
    %2266 = vmatprep.subr.mxu0 0.0
    %2267 = vmatpush1.msra.mxu0 0.0
    %2268 = vmatprep.subr.mxu0 0.0
    %2269 = vmatpush1.msra.mxu0 0.0
    %2270 = vmatprep.subr.mxu0 0.0
    %2271 = vmatpush1.msra.mxu0 0.0
    %2272 = vmatprep.subr.mxu0 0.0
    %2273 = vmatpush1.msra.mxu0 0.0
    %2274 = vmatprep.subr.mxu0 0.0
    %2275 = vmatpush1.msra.mxu0 0.0
    %2276 = vmatprep.subr.mxu0 0.0
    %2277 = vmatpush1.msra.mxu0 0.0
    %2278 = vmatprep.subr.mxu0 0.0
    %2279 = vmatpush1.msra.mxu0 0.0
    %2280 = vmatprep.subr.mxu0 0.0
    %2281 = vmatpush1.msra.mxu0 0.0
    %2282 = vmatprep.subr.mxu0 0.0
    %2283 = vmatpush1.msra.mxu0 0.0
    %2284 = vmatprep.subr.mxu0 0.0
    %2285 = vmatpush1.msra.mxu0 %v2167
    %2286 = vmatprep.subr.mxu0 0.0
    %2287 = vmatpush1.msra.mxu0 %v2166
    %2288 = vmatprep.subr.mxu0 0.0
    %2289 = vmatpush1.msra.mxu0 %v2165
    %2290 = vmatprep.subr.mxu0 0.0
    %2291 = vmatpush1.msra.mxu0 %v2164
    %2292 = vmatprep.subr.mxu0 0.0
    %2293 = vmatpush2.msra.mxu0 0.0
    %2294 = vmatprep.subr.mxu0 0.0
    %2295 = vmatpush2.msra.mxu0 0.0
    %2296 = vmatprep.subr.mxu0 0.0
    %2297 = vmatpush2.msra.mxu0 0.0
    %2298 = vmatprep.subr.mxu0 0.0
    %2299 = vmatpush2.msra.mxu0 0.0
    %2300 = vmatprep.subr.mxu0 0.0
    %2301 = vmatpush2.msra.mxu0 0.0
    %2302 = vmatprep.subr.mxu0 0.0
    %2303 = vmatpush2.msra.mxu0 0.0
    %2304 = vmatprep.subr.mxu0 0.0
    %2305 = vmatpush2.msra.mxu0 0.0
    %2306 = vmatprep.subr.mxu0 0.0
    %2307 = vmatpush2.msra.mxu0 0.0
    %2308 = vmatprep.subr.mxu0 0.0
    %2309 = vmatpush2.msra.mxu0 0.0
    %2310 = vmatprep.subr.mxu0 0.0
    %2311 = vmatpush2.msra.mxu0 0.0
    %2312 = vmatprep.subr.mxu0 0.0
    %2313 = vmatpush2.msra.mxu0 0.0
    %2314 = vmatprep.subr.mxu0 0.0
    %2315 = vmatpush2.msra.mxu0 0.0
    %2316 = vmatprep.subr.mxu0 0.0
    %2317 = vmatpush2.msra.mxu0 0.0
    %2318 = vmatprep.subr.mxu0 0.0
    %2319 = vmatpush2.msra.mxu0 0.0
    %2320 = vmatprep.subr.mxu0 0.0
    %2321 = vmatpush2.msra.mxu0 0.0
    %2322 = vmatprep.subr.mxu0 0.0
    %2323 = vmatpush2.msra.mxu0 0.0
    %2324 = vmatprep.mubr.f32.mxu0 0.0
    %2325 = vmatmul.mubr.f32.gmra.mxu0 %v1433
    %v2326 = vpop.f32.mrf.mxu0
    %v2327 = vadd.f32 %v2258, %v2326
    %v2328 = vpop.f32.mrf.mxu0
    %2329 = vdwg.mxu0
    %v2331 = vlaneseq
    %v2332 = vshrl.u32 %v2331, 7
    %v2333 = vsub.s32 0, %v2332
    %v2334 = vrot.slane %v2177, %v2333
    %2336 = vmatprep.subr.mxu0 0.0
    %2337 = vmatpush1.msra.mxu0 0.0
    %2338 = vmatprep.subr.mxu0 0.0
    %2339 = vmatpush1.msra.mxu0 0.0
    %2340 = vmatprep.subr.mxu0 0.0
    %2341 = vmatpush1.msra.mxu0 0.0
    %2342 = vmatprep.subr.mxu0 0.0
    %2343 = vmatpush1.msra.mxu0 0.0
    %2344 = vmatprep.subr.mxu0 0.0
    %2345 = vmatpush1.msra.mxu0 0.0
    %2346 = vmatprep.subr.mxu0 0.0
    %2347 = vmatpush1.msra.mxu0 0.0
    %2348 = vmatprep.subr.mxu0 0.0
    %2349 = vmatpush1.msra.mxu0 0.0
    %2350 = vmatprep.subr.mxu0 0.0
    %2351 = vmatpush1.msra.mxu0 0.0
    %2352 = vmatprep.subr.mxu0 0.0
    %2353 = vmatpush1.msra.mxu0 0.0
    %2354 = vmatprep.subr.mxu0 0.0
    %2355 = vmatpush1.msra.mxu0 0.0
    %2356 = vmatprep.subr.mxu0 0.0
    %2357 = vmatpush1.msra.mxu0 0.0
    %2358 = vmatprep.subr.mxu0 0.0
    %2359 = vmatpush1.msra.mxu0 0.0
    %2360 = vmatprep.subr.mxu0 0.0
    %2361 = vmatpush1.msra.mxu0 %v2172
    %2362 = vmatprep.subr.mxu0 0.0
    %2363 = vmatpush1.msra.mxu0 %v2171
    %2364 = vmatprep.subr.mxu0 0.0
    %2365 = vmatpush1.msra.mxu0 %v2170
    %2366 = vmatprep.subr.mxu0 0.0
    %2367 = vmatpush1.msra.mxu0 %v2169
    %2368 = vmatprep.subr.mxu0 0.0
    %2369 = vmatpush2.msra.mxu0 0.0
    %2370 = vmatprep.subr.mxu0 0.0
    %2371 = vmatpush2.msra.mxu0 0.0
    %2372 = vmatprep.subr.mxu0 0.0
    %2373 = vmatpush2.msra.mxu0 0.0
    %2374 = vmatprep.subr.mxu0 0.0
    %2375 = vmatpush2.msra.mxu0 0.0
    %2376 = vmatprep.subr.mxu0 0.0
    %2377 = vmatpush2.msra.mxu0 0.0
    %2378 = vmatprep.subr.mxu0 0.0
    %2379 = vmatpush2.msra.mxu0 0.0
    %2380 = vmatprep.subr.mxu0 0.0
    %2381 = vmatpush2.msra.mxu0 0.0
    %2382 = vmatprep.subr.mxu0 0.0
    %2383 = vmatpush2.msra.mxu0 0.0
    %2384 = vmatprep.subr.mxu0 0.0
    %2385 = vmatpush2.msra.mxu0 0.0
    %2386 = vmatprep.subr.mxu0 0.0
    %2387 = vmatpush2.msra.mxu0 0.0
    %2388 = vmatprep.subr.mxu0 0.0
    %2389 = vmatpush2.msra.mxu0 0.0
    %2390 = vmatprep.subr.mxu0 0.0
    %2391 = vmatpush2.msra.mxu0 0.0
    %2392 = vmatprep.subr.mxu0 0.0
    %2393 = vmatpush2.msra.mxu0 0.0
    %2394 = vmatprep.subr.mxu0 0.0
    %2395 = vmatpush2.msra.mxu0 0.0
    %2396 = vmatprep.subr.mxu0 0.0
    %2397 = vmatpush2.msra.mxu0 0.0
    %2398 = vmatprep.subr.mxu0 0.0
    %2399 = vmatpush2.msra.mxu0 0.0
    %2400 = vmatprep.mubr.f32.mxu0 0.0
    %2401 = vmatmul.mubr.f32.gmra.mxu0 %v1433
    %v2402 = vpop.f32.mrf.mxu0
    %v2403 = vadd.f32 %v2334, %v2402
    %v2404 = vpop.f32.mrf.mxu0
    %2405 = vdwg.mxu0
    %v2406 = vadd.f32 %v1885, %v2251
    %v2407 = vxor.u32 %v2406, 2147483648
    %v2408 = vmul.f32 %v2407, 1.442695
    %v2409 = vpow.pop %v2408
    %v2410 = vadd.f32 %v2409, 1.0
    %v2411 = vrcp.pop %v2410
    %v2412 = vmul.f32 1.0, %v2411
    %v2413 = vadd.f32 %v2003, %v2327
    %v2414 = vxor.u32 %v2413, 2147483648
    %v2415 = vmul.f32 %v2414, 1.442695
    %v2416 = vpow.pop %v2415
    %v2417 = vadd.f32 %v2416, 1.0
    %v2418 = vrcp.pop %v2417
    %v2419 = vmul.f32 1.0, %v2418
    %v2420 = vmul.f32 %v2412, %v2403
    %v2421 = vadd.f32 %v2121, %v2420
    %v2422 = vtanh.pop %v2421
    %v2423 = vsub.f32 1.0, %v2419
    %v2424 = vmul.f32 %v2423, %v2422
    %v2425 = vmul.f32 %v2419, %v1406
    %v2426 = vadd.f32 %v2424, %v2425
    %2427 = vst.msk [vmem:[#allocation2] sm:$0xff] %vm362, %v2426
    %v2429 = vsel %vm362, %v2426, 0
    %2431 = vmatprep.subr.mxu0 0.0
    %2432 = vmatpush1.msra.mxu0 0.0
    %2433 = vmatprep.subr.mxu0 0.0
    %2434 = vmatpush1.msra.mxu0 0.0
    %2435 = vmatprep.subr.mxu0 0.0
    %2436 = vmatpush1.msra.mxu0 0.0
    %2437 = vmatprep.subr.mxu0 0.0
    %2438 = vmatpush1.msra.mxu0 0.0
    %2439 = vmatprep.subr.mxu0 0.0
    %2440 = vmatpush1.msra.mxu0 0.0
    %2441 = vmatprep.subr.mxu0 0.0
    %2442 = vmatpush1.msra.mxu0 0.0
    %2443 = vmatprep.subr.mxu0 0.0
    %2444 = vmatpush1.msra.mxu0 0.0
    %2445 = vmatprep.subr.mxu0 0.0
    %2446 = vmatpush1.msra.mxu0 0.0
    %2447 = vmatprep.subr.mxu0 0.0
    %2448 = vmatpush1.msra.mxu0 0.0
    %2449 = vmatprep.subr.mxu0 0.0
    %2450 = vmatpush1.msra.mxu0 0.0
    %2451 = vmatprep.subr.mxu0 0.0
    %2452 = vmatpush1.msra.mxu0 0.0
    %2453 = vmatprep.subr.mxu0 0.0
    %2454 = vmatpush1.msra.mxu0 0.0
    %2455 = vmatprep.subr.mxu0 0.0
    %2456 = vmatpush1.msra.mxu0 %v2162
    %2457 = vmatprep.subr.mxu0 0.0
    %2458 = vmatpush1.msra.mxu0 %v2161
    %2459 = vmatprep.subr.mxu0 0.0
    %2460 = vmatpush1.msra.mxu0 %v2160
    %2461 = vmatprep.subr.mxu0 0.0
    %2462 = vmatpush1.msra.mxu0 %v2159
    %2463 = vmatprep.subr.mxu0 0.0
    %2464 = vmatpush2.msra.mxu0 0.0
    %2465 = vmatprep.subr.mxu0 0.0
    %2466 = vmatpush2.msra.mxu0 0.0
    %2467 = vmatprep.subr.mxu0 0.0
    %2468 = vmatpush2.msra.mxu0 0.0
    %2469 = vmatprep.subr.mxu0 0.0
    %2470 = vmatpush2.msra.mxu0 0.0
    %2471 = vmatprep.subr.mxu0 0.0
    %2472 = vmatpush2.msra.mxu0 0.0
    %2473 = vmatprep.subr.mxu0 0.0
    %2474 = vmatpush2.msra.mxu0 0.0
    %2475 = vmatprep.subr.mxu0 0.0
    %2476 = vmatpush2.msra.mxu0 0.0
    %2477 = vmatprep.subr.mxu0 0.0
    %2478 = vmatpush2.msra.mxu0 0.0
    %2479 = vmatprep.subr.mxu0 0.0
    %2480 = vmatpush2.msra.mxu0 0.0
    %2481 = vmatprep.subr.mxu0 0.0
    %2482 = vmatpush2.msra.mxu0 0.0
    %2483 = vmatprep.subr.mxu0 0.0
    %2484 = vmatpush2.msra.mxu0 0.0
    %2485 = vmatprep.subr.mxu0 0.0
    %2486 = vmatpush2.msra.mxu0 0.0
    %2487 = vmatprep.subr.mxu0 0.0
    %2488 = vmatpush2.msra.mxu0 0.0
    %2489 = vmatprep.subr.mxu0 0.0
    %2490 = vmatpush2.msra.mxu0 0.0
    %2491 = vmatprep.subr.mxu0 0.0
    %2492 = vmatpush2.msra.mxu0 0.0
    %2493 = vmatprep.subr.mxu0 0.0
    %2494 = vmatpush2.msra.mxu0 0.0
    %2495 = vmatprep.mubr.f32.mxu0 0.0
    %2496 = vmatmul.mubr.f32.gmra.mxu0 %v2429
    %v2497 = vpop.f32.mrf.mxu0
    %v2498 = vadd.f32 %v2182, %v2497
    %v2499 = vpop.f32.mrf.mxu0
    %2500 = vdwg.mxu0
    %2501 = vmatprep.subr.mxu0 0.0
    %2502 = vmatpush1.msra.mxu0 0.0
    %2503 = vmatprep.subr.mxu0 0.0
    %2504 = vmatpush1.msra.mxu0 0.0
    %2505 = vmatprep.subr.mxu0 0.0
    %2506 = vmatpush1.msra.mxu0 0.0
    %2507 = vmatprep.subr.mxu0 0.0
    %2508 = vmatpush1.msra.mxu0 0.0
    %2509 = vmatprep.subr.mxu0 0.0
    %2510 = vmatpush1.msra.mxu0 0.0
    %2511 = vmatprep.subr.mxu0 0.0
    %2512 = vmatpush1.msra.mxu0 0.0
    %2513 = vmatprep.subr.mxu0 0.0
    %2514 = vmatpush1.msra.mxu0 0.0
    %2515 = vmatprep.subr.mxu0 0.0
    %2516 = vmatpush1.msra.mxu0 0.0
    %2517 = vmatprep.subr.mxu0 0.0
    %2518 = vmatpush1.msra.mxu0 0.0
    %2519 = vmatprep.subr.mxu0 0.0
    %2520 = vmatpush1.msra.mxu0 0.0
    %2521 = vmatprep.subr.mxu0 0.0
    %2522 = vmatpush1.msra.mxu0 0.0
    %2523 = vmatprep.subr.mxu0 0.0
    %2524 = vmatpush1.msra.mxu0 0.0
    %2525 = vmatprep.subr.mxu0 0.0
    %2526 = vmatpush1.msra.mxu0 %v2167
    %2527 = vmatprep.subr.mxu0 0.0
    %2528 = vmatpush1.msra.mxu0 %v2166
    %2529 = vmatprep.subr.mxu0 0.0
    %2530 = vmatpush1.msra.mxu0 %v2165
    %2531 = vmatprep.subr.mxu0 0.0
    %2532 = vmatpush1.msra.mxu0 %v2164
    %2533 = vmatprep.subr.mxu0 0.0
    %2534 = vmatpush2.msra.mxu0 0.0
    %2535 = vmatprep.subr.mxu0 0.0
    %2536 = vmatpush2.msra.mxu0 0.0
    %2537 = vmatprep.subr.mxu0 0.0
    %2538 = vmatpush2.msra.mxu0 0.0
    %2539 = vmatprep.subr.mxu0 0.0
    %2540 = vmatpush2.msra.mxu0 0.0
    %2541 = vmatprep.subr.mxu0 0.0
    %2542 = vmatpush2.msra.mxu0 0.0
    %2543 = vmatprep.subr.mxu0 0.0
    %2544 = vmatpush2.msra.mxu0 0.0
    %2545 = vmatprep.subr.mxu0 0.0
    %2546 = vmatpush2.msra.mxu0 0.0
    %2547 = vmatprep.subr.mxu0 0.0
    %2548 = vmatpush2.msra.mxu0 0.0
    %2549 = vmatprep.subr.mxu0 0.0
    %2550 = vmatpush2.msra.mxu0 0.0
    %2551 = vmatprep.subr.mxu0 0.0
    %2552 = vmatpush2.msra.mxu0 0.0
    %2553 = vmatprep.subr.mxu0 0.0
    %2554 = vmatpush2.msra.mxu0 0.0
    %2555 = vmatprep.subr.mxu0 0.0
    %2556 = vmatpush2.msra.mxu0 0.0
    %2557 = vmatprep.subr.mxu0 0.0
    %2558 = vmatpush2.msra.mxu0 0.0
    %2559 = vmatprep.subr.mxu0 0.0
    %2560 = vmatpush2.msra.mxu0 0.0
    %2561 = vmatprep.subr.mxu0 0.0
    %2562 = vmatpush2.msra.mxu0 0.0
    %2563 = vmatprep.subr.mxu0 0.0
    %2564 = vmatpush2.msra.mxu0 0.0
    %2565 = vmatprep.mubr.f32.mxu0 0.0
    %2566 = vmatmul.mubr.f32.gmra.mxu0 %v2429
    %v2567 = vpop.f32.mrf.mxu0
    %v2568 = vadd.f32 %v2258, %v2567
    %v2569 = vpop.f32.mrf.mxu0
    %2570 = vdwg.mxu0
    %2571 = vmatprep.subr.mxu0 0.0
    %2572 = vmatpush1.msra.mxu0 0.0
    %2573 = vmatprep.subr.mxu0 0.0
    %2574 = vmatpush1.msra.mxu0 0.0
    %2575 = vmatprep.subr.mxu0 0.0
    %2576 = vmatpush1.msra.mxu0 0.0
    %2577 = vmatprep.subr.mxu0 0.0
    %2578 = vmatpush1.msra.mxu0 0.0
    %2579 = vmatprep.subr.mxu0 0.0
    %2580 = vmatpush1.msra.mxu0 0.0
    %2581 = vmatprep.subr.mxu0 0.0
    %2582 = vmatpush1.msra.mxu0 0.0
    %2583 = vmatprep.subr.mxu0 0.0
    %2584 = vmatpush1.msra.mxu0 0.0
    %2585 = vmatprep.subr.mxu0 0.0
    %2586 = vmatpush1.msra.mxu0 0.0
    %2587 = vmatprep.subr.mxu0 0.0
    %2588 = vmatpush1.msra.mxu0 0.0
    %2589 = vmatprep.subr.mxu0 0.0
    %2590 = vmatpush1.msra.mxu0 0.0
    %2591 = vmatprep.subr.mxu0 0.0
    %2592 = vmatpush1.msra.mxu0 0.0
    %2593 = vmatprep.subr.mxu0 0.0
    %2594 = vmatpush1.msra.mxu0 0.0
    %2595 = vmatprep.subr.mxu0 0.0
    %2596 = vmatpush1.msra.mxu0 %v2172
    %2597 = vmatprep.subr.mxu0 0.0
    %2598 = vmatpush1.msra.mxu0 %v2171
    %2599 = vmatprep.subr.mxu0 0.0
    %2600 = vmatpush1.msra.mxu0 %v2170
    %2601 = vmatprep.subr.mxu0 0.0
    %2602 = vmatpush1.msra.mxu0 %v2169
    %2603 = vmatprep.subr.mxu0 0.0
    %2604 = vmatpush2.msra.mxu0 0.0
    %2605 = vmatprep.subr.mxu0 0.0
    %2606 = vmatpush2.msra.mxu0 0.0
    %2607 = vmatprep.subr.mxu0 0.0
    %2608 = vmatpush2.msra.mxu0 0.0
    %2609 = vmatprep.subr.mxu0 0.0
    %2610 = vmatpush2.msra.mxu0 0.0
    %2611 = vmatprep.subr.mxu0 0.0
    %2612 = vmatpush2.msra.mxu0 0.0
    %2613 = vmatprep.subr.mxu0 0.0
    %2614 = vmatpush2.msra.mxu0 0.0
    %2615 = vmatprep.subr.mxu0 0.0
    %2616 = vmatpush2.msra.mxu0 0.0
    %2617 = vmatprep.subr.mxu0 0.0
    %2618 = vmatpush2.msra.mxu0 0.0
    %2619 = vmatprep.subr.mxu0 0.0
    %2620 = vmatpush2.msra.mxu0 0.0
    %2621 = vmatprep.subr.mxu0 0.0
    %2622 = vmatpush2.msra.mxu0 0.0
    %2623 = vmatprep.subr.mxu0 0.0
    %2624 = vmatpush2.msra.mxu0 0.0
    %2625 = vmatprep.subr.mxu0 0.0
    %2626 = vmatpush2.msra.mxu0 0.0
    %2627 = vmatprep.subr.mxu0 0.0
    %2628 = vmatpush2.msra.mxu0 0.0
    %2629 = vmatprep.subr.mxu0 0.0
    %2630 = vmatpush2.msra.mxu0 0.0
    %2631 = vmatprep.subr.mxu0 0.0
    %2632 = vmatpush2.msra.mxu0 0.0
    %2633 = vmatprep.subr.mxu0 0.0
    %2634 = vmatpush2.msra.mxu0 0.0
    %2635 = vmatprep.mubr.f32.mxu0 0.0
    %2636 = vmatmul.mubr.f32.gmra.mxu0 %v2429
    %v2637 = vpop.f32.mrf.mxu0
    %v2638 = vadd.f32 %v2334, %v2637
    %v2639 = vpop.f32.mrf.mxu0
    %2640 = vdwg.mxu0
    %v2641 = vadd.f32 %v1890, %v2498
    %v2642 = vxor.u32 %v2641, 2147483648
    %v2643 = vmul.f32 %v2642, 1.442695
    %v2644 = vpow.pop %v2643
    %v2645 = vadd.f32 %v2644, 1.0
    %v2646 = vrcp.pop %v2645
    %v2647 = vmul.f32 1.0, %v2646
    %v2648 = vadd.f32 %v2008, %v2568
    %v2649 = vxor.u32 %v2648, 2147483648
    %v2650 = vmul.f32 %v2649, 1.442695
    %v2651 = vpow.pop %v2650
    %v2652 = vadd.f32 %v2651, 1.0
    %v2653 = vrcp.pop %v2652
    %v2654 = vmul.f32 1.0, %v2653
    %v2655 = vmul.f32 %v2647, %v2638
    %v2656 = vadd.f32 %v2126, %v2655
    %v2657 = vtanh.pop %v2656
    %v2658 = vsub.f32 1.0, %v2654
    %v2659 = vmul.f32 %v2658, %v2657
    %v2660 = vmul.f32 %v2654, %v2426
    %v2661 = vadd.f32 %v2659, %v2660
    %2662 = vst.msk [vmem:[#allocation2 + $0x8] sm:$0xff] %vm362, %v2661
    %v2664 = vsel %vm362, %v2661, 0
    %2666 = vmatprep.subr.mxu0 0.0
    %2667 = vmatpush1.msra.mxu0 0.0
    %2668 = vmatprep.subr.mxu0 0.0
    %2669 = vmatpush1.msra.mxu0 0.0
    %2670 = vmatprep.subr.mxu0 0.0
    %2671 = vmatpush1.msra.mxu0 0.0
    %2672 = vmatprep.subr.mxu0 0.0
    %2673 = vmatpush1.msra.mxu0 0.0
    %2674 = vmatprep.subr.mxu0 0.0
    %2675 = vmatpush1.msra.mxu0 0.0
    %2676 = vmatprep.subr.mxu0 0.0
    %2677 = vmatpush1.msra.mxu0 0.0
    %2678 = vmatprep.subr.mxu0 0.0
    %2679 = vmatpush1.msra.mxu0 0.0
    %2680 = vmatprep.subr.mxu0 0.0
    %2681 = vmatpush1.msra.mxu0 0.0
    %2682 = vmatprep.subr.mxu0 0.0
    %2683 = vmatpush1.msra.mxu0 0.0
    %2684 = vmatprep.subr.mxu0 0.0
    %2685 = vmatpush1.msra.mxu0 0.0
    %2686 = vmatprep.subr.mxu0 0.0
    %2687 = vmatpush1.msra.mxu0 0.0
    %2688 = vmatprep.subr.mxu0 0.0
    %2689 = vmatpush1.msra.mxu0 0.0
    %2690 = vmatprep.subr.mxu0 0.0
    %2691 = vmatpush1.msra.mxu0 %v2162
    %2692 = vmatprep.subr.mxu0 0.0
    %2693 = vmatpush1.msra.mxu0 %v2161
    %2694 = vmatprep.subr.mxu0 0.0
    %2695 = vmatpush1.msra.mxu0 %v2160
    %2696 = vmatprep.subr.mxu0 0.0
    %2697 = vmatpush1.msra.mxu0 %v2159
    %2698 = vmatprep.subr.mxu0 0.0
    %2699 = vmatpush2.msra.mxu0 0.0
    %2700 = vmatprep.subr.mxu0 0.0
    %2701 = vmatpush2.msra.mxu0 0.0
    %2702 = vmatprep.subr.mxu0 0.0
    %2703 = vmatpush2.msra.mxu0 0.0
    %2704 = vmatprep.subr.mxu0 0.0
    %2705 = vmatpush2.msra.mxu0 0.0
    %2706 = vmatprep.subr.mxu0 0.0
    %2707 = vmatpush2.msra.mxu0 0.0
    %2708 = vmatprep.subr.mxu0 0.0
    %2709 = vmatpush2.msra.mxu0 0.0
    %2710 = vmatprep.subr.mxu0 0.0
    %2711 = vmatpush2.msra.mxu0 0.0
    %2712 = vmatprep.subr.mxu0 0.0
    %2713 = vmatpush2.msra.mxu0 0.0
    %2714 = vmatprep.subr.mxu0 0.0
    %2715 = vmatpush2.msra.mxu0 0.0
    %2716 = vmatprep.subr.mxu0 0.0
    %2717 = vmatpush2.msra.mxu0 0.0
    %2718 = vmatprep.subr.mxu0 0.0
    %2719 = vmatpush2.msra.mxu0 0.0
    %2720 = vmatprep.subr.mxu0 0.0
    %2721 = vmatpush2.msra.mxu0 0.0
    %2722 = vmatprep.subr.mxu0 0.0
    %2723 = vmatpush2.msra.mxu0 0.0
    %2724 = vmatprep.subr.mxu0 0.0
    %2725 = vmatpush2.msra.mxu0 0.0
    %2726 = vmatprep.subr.mxu0 0.0
    %2727 = vmatpush2.msra.mxu0 0.0
    %2728 = vmatprep.subr.mxu0 0.0
    %2729 = vmatpush2.msra.mxu0 0.0
    %2730 = vmatprep.mubr.f32.mxu0 0.0
    %2731 = vmatmul.mubr.f32.gmra.mxu0 %v2664
    %v2732 = vpop.f32.mrf.mxu0
    %v2733 = vadd.f32 %v2182, %v2732
    %v2734 = vpop.f32.mrf.mxu0
    %2735 = vdwg.mxu0
    %2736 = vmatprep.subr.mxu0 0.0
    %2737 = vmatpush1.msra.mxu0 0.0
    %2738 = vmatprep.subr.mxu0 0.0
    %2739 = vmatpush1.msra.mxu0 0.0
    %2740 = vmatprep.subr.mxu0 0.0
    %2741 = vmatpush1.msra.mxu0 0.0
    %2742 = vmatprep.subr.mxu0 0.0
    %2743 = vmatpush1.msra.mxu0 0.0
    %2744 = vmatprep.subr.mxu0 0.0
    %2745 = vmatpush1.msra.mxu0 0.0
    %2746 = vmatprep.subr.mxu0 0.0
    %2747 = vmatpush1.msra.mxu0 0.0
    %2748 = vmatprep.subr.mxu0 0.0
    %2749 = vmatpush1.msra.mxu0 0.0
    %2750 = vmatprep.subr.mxu0 0.0
    %2751 = vmatpush1.msra.mxu0 0.0
    %2752 = vmatprep.subr.mxu0 0.0
    %2753 = vmatpush1.msra.mxu0 0.0
    %2754 = vmatprep.subr.mxu0 0.0
    %2755 = vmatpush1.msra.mxu0 0.0
    %2756 = vmatprep.subr.mxu0 0.0
    %2757 = vmatpush1.msra.mxu0 0.0
    %2758 = vmatprep.subr.mxu0 0.0
    %2759 = vmatpush1.msra.mxu0 0.0
    %2760 = vmatprep.subr.mxu0 0.0
    %2761 = vmatpush1.msra.mxu0 %v2167
    %2762 = vmatprep.subr.mxu0 0.0
    %2763 = vmatpush1.msra.mxu0 %v2166
    %2764 = vmatprep.subr.mxu0 0.0
    %2765 = vmatpush1.msra.mxu0 %v2165
    %2766 = vmatprep.subr.mxu0 0.0
    %2767 = vmatpush1.msra.mxu0 %v2164
    %2768 = vmatprep.subr.mxu0 0.0
    %2769 = vmatpush2.msra.mxu0 0.0
    %2770 = vmatprep.subr.mxu0 0.0
    %2771 = vmatpush2.msra.mxu0 0.0
    %2772 = vmatprep.subr.mxu0 0.0
    %2773 = vmatpush2.msra.mxu0 0.0
    %2774 = vmatprep.subr.mxu0 0.0
    %2775 = vmatpush2.msra.mxu0 0.0
    %2776 = vmatprep.subr.mxu0 0.0
    %2777 = vmatpush2.msra.mxu0 0.0
    %2778 = vmatprep.subr.mxu0 0.0
    %2779 = vmatpush2.msra.mxu0 0.0
    %2780 = vmatprep.subr.mxu0 0.0
    %2781 = vmatpush2.msra.mxu0 0.0
    %2782 = vmatprep.subr.mxu0 0.0
    %2783 = vmatpush2.msra.mxu0 0.0
    %2784 = vmatprep.subr.mxu0 0.0
    %2785 = vmatpush2.msra.mxu0 0.0
    %2786 = vmatprep.subr.mxu0 0.0
    %2787 = vmatpush2.msra.mxu0 0.0
    %2788 = vmatprep.subr.mxu0 0.0
    %2789 = vmatpush2.msra.mxu0 0.0
    %2790 = vmatprep.subr.mxu0 0.0
    %2791 = vmatpush2.msra.mxu0 0.0
    %2792 = vmatprep.subr.mxu0 0.0
    %2793 = vmatpush2.msra.mxu0 0.0
    %2794 = vmatprep.subr.mxu0 0.0
    %2795 = vmatpush2.msra.mxu0 0.0
    %2796 = vmatprep.subr.mxu0 0.0
    %2797 = vmatpush2.msra.mxu0 0.0
    %2798 = vmatprep.subr.mxu0 0.0
    %2799 = vmatpush2.msra.mxu0 0.0
    %2800 = vmatprep.mubr.f32.mxu0 0.0
    %2801 = vmatmul.mubr.f32.gmra.mxu0 %v2664
    %v2802 = vpop.f32.mrf.mxu0
    %v2803 = vadd.f32 %v2258, %v2802
    %v2804 = vpop.f32.mrf.mxu0
    %2805 = vdwg.mxu0
    %2806 = vmatprep.subr.mxu0 0.0
    %2807 = vmatpush1.msra.mxu0 0.0
    %2808 = vmatprep.subr.mxu0 0.0
    %2809 = vmatpush1.msra.mxu0 0.0
    %2810 = vmatprep.subr.mxu0 0.0
    %2811 = vmatpush1.msra.mxu0 0.0
    %2812 = vmatprep.subr.mxu0 0.0
    %2813 = vmatpush1.msra.mxu0 0.0
    %2814 = vmatprep.subr.mxu0 0.0
    %2815 = vmatpush1.msra.mxu0 0.0
    %2816 = vmatprep.subr.mxu0 0.0
    %2817 = vmatpush1.msra.mxu0 0.0
    %2818 = vmatprep.subr.mxu0 0.0
    %2819 = vmatpush1.msra.mxu0 0.0
    %2820 = vmatprep.subr.mxu0 0.0
    %2821 = vmatpush1.msra.mxu0 0.0
    %2822 = vmatprep.subr.mxu0 0.0
    %2823 = vmatpush1.msra.mxu0 0.0
    %2824 = vmatprep.subr.mxu0 0.0
    %2825 = vmatpush1.msra.mxu0 0.0
    %2826 = vmatprep.subr.mxu0 0.0
    %2827 = vmatpush1.msra.mxu0 0.0
    %2828 = vmatprep.subr.mxu0 0.0
    %2829 = vmatpush1.msra.mxu0 0.0
    %2830 = vmatprep.subr.mxu0 0.0
    %2831 = vmatpush1.msra.mxu0 %v2172
    %2832 = vmatprep.subr.mxu0 0.0
    %2833 = vmatpush1.msra.mxu0 %v2171
    %2834 = vmatprep.subr.mxu0 0.0
    %2835 = vmatpush1.msra.mxu0 %v2170
    %2836 = vmatprep.subr.mxu0 0.0
    %2837 = vmatpush1.msra.mxu0 %v2169
    %2838 = vmatprep.subr.mxu0 0.0
    %2839 = vmatpush2.msra.mxu0 0.0
    %2840 = vmatprep.subr.mxu0 0.0
    %2841 = vmatpush2.msra.mxu0 0.0
    %2842 = vmatprep.subr.mxu0 0.0
    %2843 = vmatpush2.msra.mxu0 0.0
    %2844 = vmatprep.subr.mxu0 0.0
    %2845 = vmatpush2.msra.mxu0 0.0
    %2846 = vmatprep.subr.mxu0 0.0
    %2847 = vmatpush2.msra.mxu0 0.0
    %2848 = vmatprep.subr.mxu0 0.0
    %2849 = vmatpush2.msra.mxu0 0.0
    %2850 = vmatprep.subr.mxu0 0.0
    %2851 = vmatpush2.msra.mxu0 0.0
    %2852 = vmatprep.subr.mxu0 0.0
    %2853 = vmatpush2.msra.mxu0 0.0
    %2854 = vmatprep.subr.mxu0 0.0
    %2855 = vmatpush2.msra.mxu0 0.0
    %2856 = vmatprep.subr.mxu0 0.0
    %2857 = vmatpush2.msra.mxu0 0.0
    %2858 = vmatprep.subr.mxu0 0.0
    %2859 = vmatpush2.msra.mxu0 0.0
    %2860 = vmatprep.subr.mxu0 0.0
    %2861 = vmatpush2.msra.mxu0 0.0
    %2862 = vmatprep.subr.mxu0 0.0
    %2863 = vmatpush2.msra.mxu0 0.0
    %2864 = vmatprep.subr.mxu0 0.0
    %2865 = vmatpush2.msra.mxu0 0.0
    %2866 = vmatprep.subr.mxu0 0.0
    %2867 = vmatpush2.msra.mxu0 0.0
    %2868 = vmatprep.subr.mxu0 0.0
    %2869 = vmatpush2.msra.mxu0 0.0
    %2870 = vmatprep.mubr.f32.mxu0 0.0
    %2871 = vmatmul.mubr.f32.gmra.mxu0 %v2664
    %v2872 = vpop.f32.mrf.mxu0
    %v2873 = vadd.f32 %v2334, %v2872
    %v2874 = vpop.f32.mrf.mxu0
    %2875 = vdwg.mxu0
    %v2876 = vadd.f32 %v1895, %v2733
    %v2877 = vxor.u32 %v2876, 2147483648
    %v2878 = vmul.f32 %v2877, 1.442695
    %v2879 = vpow.pop %v2878
    %v2880 = vadd.f32 %v2879, 1.0
    %v2881 = vrcp.pop %v2880
    %v2882 = vmul.f32 1.0, %v2881
    %v2883 = vadd.f32 %v2013, %v2803
    %v2884 = vxor.u32 %v2883, 2147483648
    %v2885 = vmul.f32 %v2884, 1.442695
    %v2886 = vpow.pop %v2885
    %v2887 = vadd.f32 %v2886, 1.0
    %v2888 = vrcp.pop %v2887
    %v2889 = vmul.f32 1.0, %v2888
    %v2890 = vmul.f32 %v2882, %v2873
    %v2891 = vadd.f32 %v2131, %v2890
    %v2892 = vtanh.pop %v2891
    %v2893 = vsub.f32 1.0, %v2889
    %v2894 = vmul.f32 %v2893, %v2892
    %v2895 = vmul.f32 %v2889, %v2661
    %v2896 = vadd.f32 %v2894, %v2895
    %2897 = vst.msk [vmem:[#allocation2 + $0x10] sm:$0xff] %vm362, %v2896
    %v2899 = vsel %vm362, %v2896, 0
    %2901 = vmatprep.subr.mxu0 0.0
    %2902 = vmatpush1.msra.mxu0 0.0
    %2903 = vmatprep.subr.mxu0 0.0
    %2904 = vmatpush1.msra.mxu0 0.0
    %2905 = vmatprep.subr.mxu0 0.0
    %2906 = vmatpush1.msra.mxu0 0.0
    %2907 = vmatprep.subr.mxu0 0.0
    %2908 = vmatpush1.msra.mxu0 0.0
    %2909 = vmatprep.subr.mxu0 0.0
    %2910 = vmatpush1.msra.mxu0 0.0
    %2911 = vmatprep.subr.mxu0 0.0
    %2912 = vmatpush1.msra.mxu0 0.0
    %2913 = vmatprep.subr.mxu0 0.0
    %2914 = vmatpush1.msra.mxu0 0.0
    %2915 = vmatprep.subr.mxu0 0.0
    %2916 = vmatpush1.msra.mxu0 0.0
    %2917 = vmatprep.subr.mxu0 0.0
    %2918 = vmatpush1.msra.mxu0 0.0
    %2919 = vmatprep.subr.mxu0 0.0
    %2920 = vmatpush1.msra.mxu0 0.0
    %2921 = vmatprep.subr.mxu0 0.0
    %2922 = vmatpush1.msra.mxu0 0.0
    %2923 = vmatprep.subr.mxu0 0.0
    %2924 = vmatpush1.msra.mxu0 0.0
    %2925 = vmatprep.subr.mxu0 0.0
    %2926 = vmatpush1.msra.mxu0 %v2162
    %2927 = vmatprep.subr.mxu0 0.0
    %2928 = vmatpush1.msra.mxu0 %v2161
    %2929 = vmatprep.subr.mxu0 0.0
    %2930 = vmatpush1.msra.mxu0 %v2160
    %2931 = vmatprep.subr.mxu0 0.0
    %2932 = vmatpush1.msra.mxu0 %v2159
    %2933 = vmatprep.subr.mxu0 0.0
    %2934 = vmatpush2.msra.mxu0 0.0
    %2935 = vmatprep.subr.mxu0 0.0
    %2936 = vmatpush2.msra.mxu0 0.0
    %2937 = vmatprep.subr.mxu0 0.0
    %2938 = vmatpush2.msra.mxu0 0.0
    %2939 = vmatprep.subr.mxu0 0.0
    %2940 = vmatpush2.msra.mxu0 0.0
    %2941 = vmatprep.subr.mxu0 0.0
    %2942 = vmatpush2.msra.mxu0 0.0
    %2943 = vmatprep.subr.mxu0 0.0
    %2944 = vmatpush2.msra.mxu0 0.0
    %2945 = vmatprep.subr.mxu0 0.0
    %2946 = vmatpush2.msra.mxu0 0.0
    %2947 = vmatprep.subr.mxu0 0.0
    %2948 = vmatpush2.msra.mxu0 0.0
    %2949 = vmatprep.subr.mxu0 0.0
    %2950 = vmatpush2.msra.mxu0 0.0
    %2951 = vmatprep.subr.mxu0 0.0
    %2952 = vmatpush2.msra.mxu0 0.0
    %2953 = vmatprep.subr.mxu0 0.0
    %2954 = vmatpush2.msra.mxu0 0.0
    %2955 = vmatprep.subr.mxu0 0.0
    %2956 = vmatpush2.msra.mxu0 0.0
    %2957 = vmatprep.subr.mxu0 0.0
    %2958 = vmatpush2.msra.mxu0 0.0
    %2959 = vmatprep.subr.mxu0 0.0
    %2960 = vmatpush2.msra.mxu0 0.0
    %2961 = vmatprep.subr.mxu0 0.0
    %2962 = vmatpush2.msra.mxu0 0.0
    %2963 = vmatprep.subr.mxu0 0.0
    %2964 = vmatpush2.msra.mxu0 0.0
    %2965 = vmatprep.mubr.f32.mxu0 0.0
    %2966 = vmatmul.mubr.f32.gmra.mxu0 %v2899
    %v2967 = vpop.f32.mrf.mxu0
    %v2968 = vadd.f32 %v2182, %v2967
    %v2969 = vpop.f32.mrf.mxu0
    %2970 = vdwg.mxu0
    %2971 = vmatprep.subr.mxu0 0.0
    %2972 = vmatpush1.msra.mxu0 0.0
    %2973 = vmatprep.subr.mxu0 0.0
    %2974 = vmatpush1.msra.mxu0 0.0
    %2975 = vmatprep.subr.mxu0 0.0
    %2976 = vmatpush1.msra.mxu0 0.0
    %2977 = vmatprep.subr.mxu0 0.0
    %2978 = vmatpush1.msra.mxu0 0.0
    %2979 = vmatprep.subr.mxu0 0.0
    %2980 = vmatpush1.msra.mxu0 0.0
    %2981 = vmatprep.subr.mxu0 0.0
    %2982 = vmatpush1.msra.mxu0 0.0
    %2983 = vmatprep.subr.mxu0 0.0
    %2984 = vmatpush1.msra.mxu0 0.0
    %2985 = vmatprep.subr.mxu0 0.0
    %2986 = vmatpush1.msra.mxu0 0.0
    %2987 = vmatprep.subr.mxu0 0.0
    %2988 = vmatpush1.msra.mxu0 0.0
    %2989 = vmatprep.subr.mxu0 0.0
    %2990 = vmatpush1.msra.mxu0 0.0
    %2991 = vmatprep.subr.mxu0 0.0
    %2992 = vmatpush1.msra.mxu0 0.0
    %2993 = vmatprep.subr.mxu0 0.0
    %2994 = vmatpush1.msra.mxu0 0.0
    %2995 = vmatprep.subr.mxu0 0.0
    %2996 = vmatpush1.msra.mxu0 %v2167
    %2997 = vmatprep.subr.mxu0 0.0
    %2998 = vmatpush1.msra.mxu0 %v2166
    %2999 = vmatprep.subr.mxu0 0.0
    %3000 = vmatpush1.msra.mxu0 %v2165
    %3001 = vmatprep.subr.mxu0 0.0
    %3002 = vmatpush1.msra.mxu0 %v2164
    %3003 = vmatprep.subr.mxu0 0.0
    %3004 = vmatpush2.msra.mxu0 0.0
    %3005 = vmatprep.subr.mxu0 0.0
    %3006 = vmatpush2.msra.mxu0 0.0
    %3007 = vmatprep.subr.mxu0 0.0
    %3008 = vmatpush2.msra.mxu0 0.0
    %3009 = vmatprep.subr.mxu0 0.0
    %3010 = vmatpush2.msra.mxu0 0.0
    %3011 = vmatprep.subr.mxu0 0.0
    %3012 = vmatpush2.msra.mxu0 0.0
    %3013 = vmatprep.subr.mxu0 0.0
    %3014 = vmatpush2.msra.mxu0 0.0
    %3015 = vmatprep.subr.mxu0 0.0
    %3016 = vmatpush2.msra.mxu0 0.0
    %3017 = vmatprep.subr.mxu0 0.0
    %3018 = vmatpush2.msra.mxu0 0.0
    %3019 = vmatprep.subr.mxu0 0.0
    %3020 = vmatpush2.msra.mxu0 0.0
    %3021 = vmatprep.subr.mxu0 0.0
    %3022 = vmatpush2.msra.mxu0 0.0
    %3023 = vmatprep.subr.mxu0 0.0
    %3024 = vmatpush2.msra.mxu0 0.0
    %3025 = vmatprep.subr.mxu0 0.0
    %3026 = vmatpush2.msra.mxu0 0.0
    %3027 = vmatprep.subr.mxu0 0.0
    %3028 = vmatpush2.msra.mxu0 0.0
    %3029 = vmatprep.subr.mxu0 0.0
    %3030 = vmatpush2.msra.mxu0 0.0
    %3031 = vmatprep.subr.mxu0 0.0
    %3032 = vmatpush2.msra.mxu0 0.0
    %3033 = vmatprep.subr.mxu0 0.0
    %3034 = vmatpush2.msra.mxu0 0.0
    %3035 = vmatprep.mubr.f32.mxu0 0.0
    %3036 = vmatmul.mubr.f32.gmra.mxu0 %v2899
    %v3037 = vpop.f32.mrf.mxu0
    %v3038 = vadd.f32 %v2258, %v3037
    %v3039 = vpop.f32.mrf.mxu0
    %3040 = vdwg.mxu0
    %3041 = vmatprep.subr.mxu0 0.0
    %3042 = vmatpush1.msra.mxu0 0.0
    %3043 = vmatprep.subr.mxu0 0.0
    %3044 = vmatpush1.msra.mxu0 0.0
    %3045 = vmatprep.subr.mxu0 0.0
    %3046 = vmatpush1.msra.mxu0 0.0
    %3047 = vmatprep.subr.mxu0 0.0
    %3048 = vmatpush1.msra.mxu0 0.0
    %3049 = vmatprep.subr.mxu0 0.0
    %3050 = vmatpush1.msra.mxu0 0.0
    %3051 = vmatprep.subr.mxu0 0.0
    %3052 = vmatpush1.msra.mxu0 0.0
    %3053 = vmatprep.subr.mxu0 0.0
    %3054 = vmatpush1.msra.mxu0 0.0
    %3055 = vmatprep.subr.mxu0 0.0
    %3056 = vmatpush1.msra.mxu0 0.0
    %3057 = vmatprep.subr.mxu0 0.0
    %3058 = vmatpush1.msra.mxu0 0.0
    %3059 = vmatprep.subr.mxu0 0.0
    %3060 = vmatpush1.msra.mxu0 0.0
    %3061 = vmatprep.subr.mxu0 0.0
    %3062 = vmatpush1.msra.mxu0 0.0
    %3063 = vmatprep.subr.mxu0 0.0
    %3064 = vmatpush1.msra.mxu0 0.0
    %3065 = vmatprep.subr.mxu0 0.0
    %3066 = vmatpush1.msra.mxu0 %v2172
    %3067 = vmatprep.subr.mxu0 0.0
    %3068 = vmatpush1.msra.mxu0 %v2171
    %3069 = vmatprep.subr.mxu0 0.0
    %3070 = vmatpush1.msra.mxu0 %v2170
    %3071 = vmatprep.subr.mxu0 0.0
    %3072 = vmatpush1.msra.mxu0 %v2169
    %3073 = vmatprep.subr.mxu0 0.0
    %3074 = vmatpush2.msra.mxu0 0.0
    %3075 = vmatprep.subr.mxu0 0.0
    %3076 = vmatpush2.msra.mxu0 0.0
    %3077 = vmatprep.subr.mxu0 0.0
    %3078 = vmatpush2.msra.mxu0 0.0
    %3079 = vmatprep.subr.mxu0 0.0
    %3080 = vmatpush2.msra.mxu0 0.0
    %3081 = vmatprep.subr.mxu0 0.0
    %3082 = vmatpush2.msra.mxu0 0.0
    %3083 = vmatprep.subr.mxu0 0.0
    %3084 = vmatpush2.msra.mxu0 0.0
    %3085 = vmatprep.subr.mxu0 0.0
    %3086 = vmatpush2.msra.mxu0 0.0
    %3087 = vmatprep.subr.mxu0 0.0
    %3088 = vmatpush2.msra.mxu0 0.0
    %3089 = vmatprep.subr.mxu0 0.0
    %3090 = vmatpush2.msra.mxu0 0.0
    %3091 = vmatprep.subr.mxu0 0.0
    %3092 = vmatpush2.msra.mxu0 0.0
    %3093 = vmatprep.subr.mxu0 0.0
    %3094 = vmatpush2.msra.mxu0 0.0
    %3095 = vmatprep.subr.mxu0 0.0
    %3096 = vmatpush2.msra.mxu0 0.0
    %3097 = vmatprep.subr.mxu0 0.0
    %3098 = vmatpush2.msra.mxu0 0.0
    %3099 = vmatprep.subr.mxu0 0.0
    %3100 = vmatpush2.msra.mxu0 0.0
    %3101 = vmatprep.subr.mxu0 0.0
    %3102 = vmatpush2.msra.mxu0 0.0
    %3103 = vmatprep.subr.mxu0 0.0
    %3104 = vmatpush2.msra.mxu0 0.0
    %3105 = vmatprep.mubr.f32.mxu0 0.0
    %3106 = vmatmul.mubr.f32.gmra.mxu0 %v2899
    %v3107 = vpop.f32.mrf.mxu0
    %v3108 = vadd.f32 %v2334, %v3107
    %v3109 = vpop.f32.mrf.mxu0
    %3110 = vdwg.mxu0
    %v3111 = vadd.f32 %v1900, %v2968
    %v3112 = vxor.u32 %v3111, 2147483648
    %v3113 = vmul.f32 %v3112, 1.442695
    %v3114 = vpow.pop %v3113
    %v3115 = vadd.f32 %v3114, 1.0
    %v3116 = vrcp.pop %v3115
    %v3117 = vmul.f32 1.0, %v3116
    %v3118 = vadd.f32 %v2018, %v3038
    %v3119 = vxor.u32 %v3118, 2147483648
    %v3120 = vmul.f32 %v3119, 1.442695
    %v3121 = vpow.pop %v3120
    %v3122 = vadd.f32 %v3121, 1.0
    %v3123 = vrcp.pop %v3122
    %v3124 = vmul.f32 1.0, %v3123
    %v3125 = vmul.f32 %v3117, %v3108
    %v3126 = vadd.f32 %v2136, %v3125
    %v3127 = vtanh.pop %v3126
    %v3128 = vsub.f32 1.0, %v3124
    %v3129 = vmul.f32 %v3128, %v3127
    %v3130 = vmul.f32 %v3124, %v2896
    %v3131 = vadd.f32 %v3129, %v3130
    %3132 = vst.msk [vmem:[#allocation2 + $0x18] sm:$0xff] %vm362, %v3131
    %v3134 = vsel %vm362, %v3131, 0
    %3136 = vmatprep.subr.mxu0 0.0
    %3137 = vmatpush1.msra.mxu0 0.0
    %3138 = vmatprep.subr.mxu0 0.0
    %3139 = vmatpush1.msra.mxu0 0.0
    %3140 = vmatprep.subr.mxu0 0.0
    %3141 = vmatpush1.msra.mxu0 0.0
    %3142 = vmatprep.subr.mxu0 0.0
    %3143 = vmatpush1.msra.mxu0 0.0
    %3144 = vmatprep.subr.mxu0 0.0
    %3145 = vmatpush1.msra.mxu0 0.0
    %3146 = vmatprep.subr.mxu0 0.0
    %3147 = vmatpush1.msra.mxu0 0.0
    %3148 = vmatprep.subr.mxu0 0.0
    %3149 = vmatpush1.msra.mxu0 0.0
    %3150 = vmatprep.subr.mxu0 0.0
    %3151 = vmatpush1.msra.mxu0 0.0
    %3152 = vmatprep.subr.mxu0 0.0
    %3153 = vmatpush1.msra.mxu0 0.0
    %3154 = vmatprep.subr.mxu0 0.0
    %3155 = vmatpush1.msra.mxu0 0.0
    %3156 = vmatprep.subr.mxu0 0.0
    %3157 = vmatpush1.msra.mxu0 0.0
    %3158 = vmatprep.subr.mxu0 0.0
    %3159 = vmatpush1.msra.mxu0 0.0
    %3160 = vmatprep.subr.mxu0 0.0
    %3161 = vmatpush1.msra.mxu0 %v2162
    %3162 = vmatprep.subr.mxu0 0.0
    %3163 = vmatpush1.msra.mxu0 %v2161
    %3164 = vmatprep.subr.mxu0 0.0
    %3165 = vmatpush1.msra.mxu0 %v2160
    %3166 = vmatprep.subr.mxu0 0.0
    %3167 = vmatpush1.msra.mxu0 %v2159
    %3168 = vmatprep.subr.mxu0 0.0
    %3169 = vmatpush2.msra.mxu0 0.0
    %3170 = vmatprep.subr.mxu0 0.0
    %3171 = vmatpush2.msra.mxu0 0.0
    %3172 = vmatprep.subr.mxu0 0.0
    %3173 = vmatpush2.msra.mxu0 0.0
    %3174 = vmatprep.subr.mxu0 0.0
    %3175 = vmatpush2.msra.mxu0 0.0
    %3176 = vmatprep.subr.mxu0 0.0
    %3177 = vmatpush2.msra.mxu0 0.0
    %3178 = vmatprep.subr.mxu0 0.0
    %3179 = vmatpush2.msra.mxu0 0.0
    %3180 = vmatprep.subr.mxu0 0.0
    %3181 = vmatpush2.msra.mxu0 0.0
    %3182 = vmatprep.subr.mxu0 0.0
    %3183 = vmatpush2.msra.mxu0 0.0
    %3184 = vmatprep.subr.mxu0 0.0
    %3185 = vmatpush2.msra.mxu0 0.0
    %3186 = vmatprep.subr.mxu0 0.0
    %3187 = vmatpush2.msra.mxu0 0.0
    %3188 = vmatprep.subr.mxu0 0.0
    %3189 = vmatpush2.msra.mxu0 0.0
    %3190 = vmatprep.subr.mxu0 0.0
    %3191 = vmatpush2.msra.mxu0 0.0
    %3192 = vmatprep.subr.mxu0 0.0
    %3193 = vmatpush2.msra.mxu0 0.0
    %3194 = vmatprep.subr.mxu0 0.0
    %3195 = vmatpush2.msra.mxu0 0.0
    %3196 = vmatprep.subr.mxu0 0.0
    %3197 = vmatpush2.msra.mxu0 0.0
    %3198 = vmatprep.subr.mxu0 0.0
    %3199 = vmatpush2.msra.mxu0 0.0
    %3200 = vmatprep.mubr.f32.mxu0 0.0
    %3201 = vmatmul.mubr.f32.gmra.mxu0 %v3134
    %v3202 = vpop.f32.mrf.mxu0
    %v3203 = vadd.f32 %v2182, %v3202
    %v3204 = vpop.f32.mrf.mxu0
    %3205 = vdwg.mxu0
    %3206 = vmatprep.subr.mxu0 0.0
    %3207 = vmatpush1.msra.mxu0 0.0
    %3208 = vmatprep.subr.mxu0 0.0
    %3209 = vmatpush1.msra.mxu0 0.0
    %3210 = vmatprep.subr.mxu0 0.0
    %3211 = vmatpush1.msra.mxu0 0.0
    %3212 = vmatprep.subr.mxu0 0.0
    %3213 = vmatpush1.msra.mxu0 0.0
    %3214 = vmatprep.subr.mxu0 0.0
    %3215 = vmatpush1.msra.mxu0 0.0
    %3216 = vmatprep.subr.mxu0 0.0
    %3217 = vmatpush1.msra.mxu0 0.0
    %3218 = vmatprep.subr.mxu0 0.0
    %3219 = vmatpush1.msra.mxu0 0.0
    %3220 = vmatprep.subr.mxu0 0.0
    %3221 = vmatpush1.msra.mxu0 0.0
    %3222 = vmatprep.subr.mxu0 0.0
    %3223 = vmatpush1.msra.mxu0 0.0
    %3224 = vmatprep.subr.mxu0 0.0
    %3225 = vmatpush1.msra.mxu0 0.0
    %3226 = vmatprep.subr.mxu0 0.0
    %3227 = vmatpush1.msra.mxu0 0.0
    %3228 = vmatprep.subr.mxu0 0.0
    %3229 = vmatpush1.msra.mxu0 0.0
    %3230 = vmatprep.subr.mxu0 0.0
    %3231 = vmatpush1.msra.mxu0 %v2167
    %3232 = vmatprep.subr.mxu0 0.0
    %3233 = vmatpush1.msra.mxu0 %v2166
    %3234 = vmatprep.subr.mxu0 0.0
    %3235 = vmatpush1.msra.mxu0 %v2165
    %3236 = vmatprep.subr.mxu0 0.0
    %3237 = vmatpush1.msra.mxu0 %v2164
    %3238 = vmatprep.subr.mxu0 0.0
    %3239 = vmatpush2.msra.mxu0 0.0
    %3240 = vmatprep.subr.mxu0 0.0
    %3241 = vmatpush2.msra.mxu0 0.0
    %3242 = vmatprep.subr.mxu0 0.0
    %3243 = vmatpush2.msra.mxu0 0.0
    %3244 = vmatprep.subr.mxu0 0.0
    %3245 = vmatpush2.msra.mxu0 0.0
    %3246 = vmatprep.subr.mxu0 0.0
    %3247 = vmatpush2.msra.mxu0 0.0
    %3248 = vmatprep.subr.mxu0 0.0
    %3249 = vmatpush2.msra.mxu0 0.0
    %3250 = vmatprep.subr.mxu0 0.0
    %3251 = vmatpush2.msra.mxu0 0.0
    %3252 = vmatprep.subr.mxu0 0.0
    %3253 = vmatpush2.msra.mxu0 0.0
    %3254 = vmatprep.subr.mxu0 0.0
    %3255 = vmatpush2.msra.mxu0 0.0
    %3256 = vmatprep.subr.mxu0 0.0
    %3257 = vmatpush2.msra.mxu0 0.0
    %3258 = vmatprep.subr.mxu0 0.0
    %3259 = vmatpush2.msra.mxu0 0.0
    %3260 = vmatprep.subr.mxu0 0.0
    %3261 = vmatpush2.msra.mxu0 0.0
    %3262 = vmatprep.subr.mxu0 0.0
    %3263 = vmatpush2.msra.mxu0 0.0
    %3264 = vmatprep.subr.mxu0 0.0
    %3265 = vmatpush2.msra.mxu0 0.0
    %3266 = vmatprep.subr.mxu0 0.0
    %3267 = vmatpush2.msra.mxu0 0.0
    %3268 = vmatprep.subr.mxu0 0.0
    %3269 = vmatpush2.msra.mxu0 0.0
    %3270 = vmatprep.mubr.f32.mxu0 0.0
    %3271 = vmatmul.mubr.f32.gmra.mxu0 %v3134
    %v3272 = vpop.f32.mrf.mxu0
    %v3273 = vadd.f32 %v2258, %v3272
    %v3274 = vpop.f32.mrf.mxu0
    %3275 = vdwg.mxu0
    %3276 = vmatprep.subr.mxu0 0.0
    %3277 = vmatpush1.msra.mxu0 0.0
    %3278 = vmatprep.subr.mxu0 0.0
    %3279 = vmatpush1.msra.mxu0 0.0
    %3280 = vmatprep.subr.mxu0 0.0
    %3281 = vmatpush1.msra.mxu0 0.0
    %3282 = vmatprep.subr.mxu0 0.0
    %3283 = vmatpush1.msra.mxu0 0.0
    %3284 = vmatprep.subr.mxu0 0.0
    %3285 = vmatpush1.msra.mxu0 0.0
    %3286 = vmatprep.subr.mxu0 0.0
    %3287 = vmatpush1.msra.mxu0 0.0
    %3288 = vmatprep.subr.mxu0 0.0
    %3289 = vmatpush1.msra.mxu0 0.0
    %3290 = vmatprep.subr.mxu0 0.0
    %3291 = vmatpush1.msra.mxu0 0.0
    %3292 = vmatprep.subr.mxu0 0.0
    %3293 = vmatpush1.msra.mxu0 0.0
    %3294 = vmatprep.subr.mxu0 0.0
    %3295 = vmatpush1.msra.mxu0 0.0
    %3296 = vmatprep.subr.mxu0 0.0
    %3297 = vmatpush1.msra.mxu0 0.0
    %3298 = vmatprep.subr.mxu0 0.0
    %3299 = vmatpush1.msra.mxu0 0.0
    %3300 = vmatprep.subr.mxu0 0.0
    %3301 = vmatpush1.msra.mxu0 %v2172
    %3302 = vmatprep.subr.mxu0 0.0
    %3303 = vmatpush1.msra.mxu0 %v2171
    %3304 = vmatprep.subr.mxu0 0.0
    %3305 = vmatpush1.msra.mxu0 %v2170
    %3306 = vmatprep.subr.mxu0 0.0
    %3307 = vmatpush1.msra.mxu0 %v2169
    %3308 = vmatprep.subr.mxu0 0.0
    %3309 = vmatpush2.msra.mxu0 0.0
    %3310 = vmatprep.subr.mxu0 0.0
    %3311 = vmatpush2.msra.mxu0 0.0
    %3312 = vmatprep.subr.mxu0 0.0
    %3313 = vmatpush2.msra.mxu0 0.0
    %3314 = vmatprep.subr.mxu0 0.0
    %3315 = vmatpush2.msra.mxu0 0.0
    %3316 = vmatprep.subr.mxu0 0.0
    %3317 = vmatpush2.msra.mxu0 0.0
    %3318 = vmatprep.subr.mxu0 0.0
    %3319 = vmatpush2.msra.mxu0 0.0
    %3320 = vmatprep.subr.mxu0 0.0
    %3321 = vmatpush2.msra.mxu0 0.0
    %3322 = vmatprep.subr.mxu0 0.0
    %3323 = vmatpush2.msra.mxu0 0.0
    %3324 = vmatprep.subr.mxu0 0.0
    %3325 = vmatpush2.msra.mxu0 0.0
    %3326 = vmatprep.subr.mxu0 0.0
    %3327 = vmatpush2.msra.mxu0 0.0
    %3328 = vmatprep.subr.mxu0 0.0
    %3329 = vmatpush2.msra.mxu0 0.0
    %3330 = vmatprep.subr.mxu0 0.0
    %3331 = vmatpush2.msra.mxu0 0.0
    %3332 = vmatprep.subr.mxu0 0.0
    %3333 = vmatpush2.msra.mxu0 0.0
    %3334 = vmatprep.subr.mxu0 0.0
    %3335 = vmatpush2.msra.mxu0 0.0
    %3336 = vmatprep.subr.mxu0 0.0
    %3337 = vmatpush2.msra.mxu0 0.0
    %3338 = vmatprep.subr.mxu0 0.0
    %3339 = vmatpush2.msra.mxu0 0.0
    %3340 = vmatprep.mubr.f32.mxu0 0.0
    %3341 = vmatmul.mubr.f32.gmra.mxu0 %v3134
    %v3342 = vpop.f32.mrf.mxu0
    %v3343 = vadd.f32 %v2334, %v3342
    %v3344 = vpop.f32.mrf.mxu0
    %3345 = vdwg.mxu0
    %v3346 = vadd.f32 %v1905, %v3203
    %v3347 = vxor.u32 %v3346, 2147483648
    %v3348 = vmul.f32 %v3347, 1.442695
    %v3349 = vpow.pop %v3348
    %v3350 = vadd.f32 %v3349, 1.0
    %v3351 = vrcp.pop %v3350
    %v3352 = vmul.f32 1.0, %v3351
    %v3353 = vadd.f32 %v2023, %v3273
    %v3354 = vxor.u32 %v3353, 2147483648
    %v3355 = vmul.f32 %v3354, 1.442695
    %v3356 = vpow.pop %v3355
    %v3357 = vadd.f32 %v3356, 1.0
    %v3358 = vrcp.pop %v3357
    %v3359 = vmul.f32 1.0, %v3358
    %v3360 = vmul.f32 %v3352, %v3343
    %v3361 = vadd.f32 %v2141, %v3360
    %v3362 = vtanh.pop %v3361
    %v3363 = vsub.f32 1.0, %v3359
    %v3364 = vmul.f32 %v3363, %v3362
    %v3365 = vmul.f32 %v3359, %v3131
    %v3366 = vadd.f32 %v3364, %v3365
    %3367 = vst.msk [vmem:[#allocation2 + $0x20] sm:$0xff] %vm362, %v3366
    %v3369 = vsel %vm362, %v3366, 0
    %3371 = vmatprep.subr.mxu0 0.0
    %3372 = vmatpush1.msra.mxu0 0.0
    %3373 = vmatprep.subr.mxu0 0.0
    %3374 = vmatpush1.msra.mxu0 0.0
    %3375 = vmatprep.subr.mxu0 0.0
    %3376 = vmatpush1.msra.mxu0 0.0
    %3377 = vmatprep.subr.mxu0 0.0
    %3378 = vmatpush1.msra.mxu0 0.0
    %3379 = vmatprep.subr.mxu0 0.0
    %3380 = vmatpush1.msra.mxu0 0.0
    %3381 = vmatprep.subr.mxu0 0.0
    %3382 = vmatpush1.msra.mxu0 0.0
    %3383 = vmatprep.subr.mxu0 0.0
    %3384 = vmatpush1.msra.mxu0 0.0
    %3385 = vmatprep.subr.mxu0 0.0
    %3386 = vmatpush1.msra.mxu0 0.0
    %3387 = vmatprep.subr.mxu0 0.0
    %3388 = vmatpush1.msra.mxu0 0.0
    %3389 = vmatprep.subr.mxu0 0.0
    %3390 = vmatpush1.msra.mxu0 0.0
    %3391 = vmatprep.subr.mxu0 0.0
    %3392 = vmatpush1.msra.mxu0 0.0
    %3393 = vmatprep.subr.mxu0 0.0
    %3394 = vmatpush1.msra.mxu0 0.0
    %3395 = vmatprep.subr.mxu0 0.0
    %3396 = vmatpush1.msra.mxu0 %v2162
    %3397 = vmatprep.subr.mxu0 0.0
    %3398 = vmatpush1.msra.mxu0 %v2161
    %3399 = vmatprep.subr.mxu0 0.0
    %3400 = vmatpush1.msra.mxu0 %v2160
    %3401 = vmatprep.subr.mxu0 0.0
    %3402 = vmatpush1.msra.mxu0 %v2159
    %3403 = vmatprep.subr.mxu0 0.0
    %3404 = vmatpush2.msra.mxu0 0.0
    %3405 = vmatprep.subr.mxu0 0.0
    %3406 = vmatpush2.msra.mxu0 0.0
    %3407 = vmatprep.subr.mxu0 0.0
    %3408 = vmatpush2.msra.mxu0 0.0
    %3409 = vmatprep.subr.mxu0 0.0
    %3410 = vmatpush2.msra.mxu0 0.0
    %3411 = vmatprep.subr.mxu0 0.0
    %3412 = vmatpush2.msra.mxu0 0.0
    %3413 = vmatprep.subr.mxu0 0.0
    %3414 = vmatpush2.msra.mxu0 0.0
    %3415 = vmatprep.subr.mxu0 0.0
    %3416 = vmatpush2.msra.mxu0 0.0
    %3417 = vmatprep.subr.mxu0 0.0
    %3418 = vmatpush2.msra.mxu0 0.0
    %3419 = vmatprep.subr.mxu0 0.0
    %3420 = vmatpush2.msra.mxu0 0.0
    %3421 = vmatprep.subr.mxu0 0.0
    %3422 = vmatpush2.msra.mxu0 0.0
    %3423 = vmatprep.subr.mxu0 0.0
    %3424 = vmatpush2.msra.mxu0 0.0
    %3425 = vmatprep.subr.mxu0 0.0
    %3426 = vmatpush2.msra.mxu0 0.0
    %3427 = vmatprep.subr.mxu0 0.0
    %3428 = vmatpush2.msra.mxu0 0.0
    %3429 = vmatprep.subr.mxu0 0.0
    %3430 = vmatpush2.msra.mxu0 0.0
    %3431 = vmatprep.subr.mxu0 0.0
    %3432 = vmatpush2.msra.mxu0 0.0
    %3433 = vmatprep.subr.mxu0 0.0
    %3434 = vmatpush2.msra.mxu0 0.0
    %3435 = vmatprep.mubr.f32.mxu0 0.0
    %3436 = vmatmul.mubr.f32.gmra.mxu0 %v3369
    %v3437 = vpop.f32.mrf.mxu0
    %v3438 = vadd.f32 %v2182, %v3437
    %v3439 = vpop.f32.mrf.mxu0
    %3440 = vdwg.mxu0
    %3441 = vmatprep.subr.mxu0 0.0
    %3442 = vmatpush1.msra.mxu0 0.0
    %3443 = vmatprep.subr.mxu0 0.0
    %3444 = vmatpush1.msra.mxu0 0.0
    %3445 = vmatprep.subr.mxu0 0.0
    %3446 = vmatpush1.msra.mxu0 0.0
    %3447 = vmatprep.subr.mxu0 0.0
    %3448 = vmatpush1.msra.mxu0 0.0
    %3449 = vmatprep.subr.mxu0 0.0
    %3450 = vmatpush1.msra.mxu0 0.0
    %3451 = vmatprep.subr.mxu0 0.0
    %3452 = vmatpush1.msra.mxu0 0.0
    %3453 = vmatprep.subr.mxu0 0.0
    %3454 = vmatpush1.msra.mxu0 0.0
    %3455 = vmatprep.subr.mxu0 0.0
    %3456 = vmatpush1.msra.mxu0 0.0
    %3457 = vmatprep.subr.mxu0 0.0
    %3458 = vmatpush1.msra.mxu0 0.0
    %3459 = vmatprep.subr.mxu0 0.0
    %3460 = vmatpush1.msra.mxu0 0.0
    %3461 = vmatprep.subr.mxu0 0.0
    %3462 = vmatpush1.msra.mxu0 0.0
    %3463 = vmatprep.subr.mxu0 0.0
    %3464 = vmatpush1.msra.mxu0 0.0
    %3465 = vmatprep.subr.mxu0 0.0
    %3466 = vmatpush1.msra.mxu0 %v2167
    %3467 = vmatprep.subr.mxu0 0.0
    %3468 = vmatpush1.msra.mxu0 %v2166
    %3469 = vmatprep.subr.mxu0 0.0
    %3470 = vmatpush1.msra.mxu0 %v2165
    %3471 = vmatprep.subr.mxu0 0.0
    %3472 = vmatpush1.msra.mxu0 %v2164
    %3473 = vmatprep.subr.mxu0 0.0
    %3474 = vmatpush2.msra.mxu0 0.0
    %3475 = vmatprep.subr.mxu0 0.0
    %3476 = vmatpush2.msra.mxu0 0.0
    %3477 = vmatprep.subr.mxu0 0.0
    %3478 = vmatpush2.msra.mxu0 0.0
    %3479 = vmatprep.subr.mxu0 0.0
    %3480 = vmatpush2.msra.mxu0 0.0
    %3481 = vmatprep.subr.mxu0 0.0
    %3482 = vmatpush2.msra.mxu0 0.0
    %3483 = vmatprep.subr.mxu0 0.0
    %3484 = vmatpush2.msra.mxu0 0.0
    %3485 = vmatprep.subr.mxu0 0.0
    %3486 = vmatpush2.msra.mxu0 0.0
    %3487 = vmatprep.subr.mxu0 0.0
    %3488 = vmatpush2.msra.mxu0 0.0
    %3489 = vmatprep.subr.mxu0 0.0
    %3490 = vmatpush2.msra.mxu0 0.0
    %3491 = vmatprep.subr.mxu0 0.0
    %3492 = vmatpush2.msra.mxu0 0.0
    %3493 = vmatprep.subr.mxu0 0.0
    %3494 = vmatpush2.msra.mxu0 0.0
    %3495 = vmatprep.subr.mxu0 0.0
    %3496 = vmatpush2.msra.mxu0 0.0
    %3497 = vmatprep.subr.mxu0 0.0
    %3498 = vmatpush2.msra.mxu0 0.0
    %3499 = vmatprep.subr.mxu0 0.0
    %3500 = vmatpush2.msra.mxu0 0.0
    %3501 = vmatprep.subr.mxu0 0.0
    %3502 = vmatpush2.msra.mxu0 0.0
    %3503 = vmatprep.subr.mxu0 0.0
    %3504 = vmatpush2.msra.mxu0 0.0
    %3505 = vmatprep.mubr.f32.mxu0 0.0
    %3506 = vmatmul.mubr.f32.gmra.mxu0 %v3369
    %v3507 = vpop.f32.mrf.mxu0
    %v3508 = vadd.f32 %v2258, %v3507
    %v3509 = vpop.f32.mrf.mxu0
    %3510 = vdwg.mxu0
    %3511 = vmatprep.subr.mxu0 0.0
    %3512 = vmatpush1.msra.mxu0 0.0
    %3513 = vmatprep.subr.mxu0 0.0
    %3514 = vmatpush1.msra.mxu0 0.0
    %3515 = vmatprep.subr.mxu0 0.0
    %3516 = vmatpush1.msra.mxu0 0.0
    %3517 = vmatprep.subr.mxu0 0.0
    %3518 = vmatpush1.msra.mxu0 0.0
    %3519 = vmatprep.subr.mxu0 0.0
    %3520 = vmatpush1.msra.mxu0 0.0
    %3521 = vmatprep.subr.mxu0 0.0
    %3522 = vmatpush1.msra.mxu0 0.0
    %3523 = vmatprep.subr.mxu0 0.0
    %3524 = vmatpush1.msra.mxu0 0.0
    %3525 = vmatprep.subr.mxu0 0.0
    %3526 = vmatpush1.msra.mxu0 0.0
    %3527 = vmatprep.subr.mxu0 0.0
    %3528 = vmatpush1.msra.mxu0 0.0
    %3529 = vmatprep.subr.mxu0 0.0
    %3530 = vmatpush1.msra.mxu0 0.0
    %3531 = vmatprep.subr.mxu0 0.0
    %3532 = vmatpush1.msra.mxu0 0.0
    %3533 = vmatprep.subr.mxu0 0.0
    %3534 = vmatpush1.msra.mxu0 0.0
    %3535 = vmatprep.subr.mxu0 0.0
    %3536 = vmatpush1.msra.mxu0 %v2172
    %3537 = vmatprep.subr.mxu0 0.0
    %3538 = vmatpush1.msra.mxu0 %v2171
    %3539 = vmatprep.subr.mxu0 0.0
    %3540 = vmatpush1.msra.mxu0 %v2170
    %3541 = vmatprep.subr.mxu0 0.0
    %3542 = vmatpush1.msra.mxu0 %v2169
    %3543 = vmatprep.subr.mxu0 0.0
    %3544 = vmatpush2.msra.mxu0 0.0
    %3545 = vmatprep.subr.mxu0 0.0
    %3546 = vmatpush2.msra.mxu0 0.0
    %3547 = vmatprep.subr.mxu0 0.0
    %3548 = vmatpush2.msra.mxu0 0.0
    %3549 = vmatprep.subr.mxu0 0.0
    %3550 = vmatpush2.msra.mxu0 0.0
    %3551 = vmatprep.subr.mxu0 0.0
    %3552 = vmatpush2.msra.mxu0 0.0
    %3553 = vmatprep.subr.mxu0 0.0
    %3554 = vmatpush2.msra.mxu0 0.0
    %3555 = vmatprep.subr.mxu0 0.0
    %3556 = vmatpush2.msra.mxu0 0.0
    %3557 = vmatprep.subr.mxu0 0.0
    %3558 = vmatpush2.msra.mxu0 0.0
    %3559 = vmatprep.subr.mxu0 0.0
    %3560 = vmatpush2.msra.mxu0 0.0
    %3561 = vmatprep.subr.mxu0 0.0
    %3562 = vmatpush2.msra.mxu0 0.0
    %3563 = vmatprep.subr.mxu0 0.0
    %3564 = vmatpush2.msra.mxu0 0.0
    %3565 = vmatprep.subr.mxu0 0.0
    %3566 = vmatpush2.msra.mxu0 0.0
    %3567 = vmatprep.subr.mxu0 0.0
    %3568 = vmatpush2.msra.mxu0 0.0
    %3569 = vmatprep.subr.mxu0 0.0
    %3570 = vmatpush2.msra.mxu0 0.0
    %3571 = vmatprep.subr.mxu0 0.0
    %3572 = vmatpush2.msra.mxu0 0.0
    %3573 = vmatprep.subr.mxu0 0.0
    %3574 = vmatpush2.msra.mxu0 0.0
    %3575 = vmatprep.mubr.f32.mxu0 0.0
    %3576 = vmatmul.mubr.f32.gmra.mxu0 %v3369
    %v3577 = vpop.f32.mrf.mxu0
    %v3578 = vadd.f32 %v2334, %v3577
    %v3579 = vpop.f32.mrf.mxu0
    %3580 = vdwg.mxu0
    %v3581 = vadd.f32 %v1910, %v3438
    %v3582 = vxor.u32 %v3581, 2147483648
    %v3583 = vmul.f32 %v3582, 1.442695
    %v3584 = vpow.pop %v3583
    %v3585 = vadd.f32 %v3584, 1.0
    %v3586 = vrcp.pop %v3585
    %v3587 = vmul.f32 1.0, %v3586
    %v3588 = vadd.f32 %v2028, %v3508
    %v3589 = vxor.u32 %v3588, 2147483648
    %v3590 = vmul.f32 %v3589, 1.442695
    %v3591 = vpow.pop %v3590
    %v3592 = vadd.f32 %v3591, 1.0
    %v3593 = vrcp.pop %v3592
    %v3594 = vmul.f32 1.0, %v3593
    %v3595 = vmul.f32 %v3587, %v3578
    %v3596 = vadd.f32 %v2146, %v3595
    %v3597 = vtanh.pop %v3596
    %v3598 = vsub.f32 1.0, %v3594
    %v3599 = vmul.f32 %v3598, %v3597
    %v3600 = vmul.f32 %v3594, %v3366
    %v3601 = vadd.f32 %v3599, %v3600
    %3602 = vst.msk [vmem:[#allocation2 + $0x28] sm:$0xff] %vm362, %v3601
    %v3604 = vsel %vm362, %v3601, 0
    %3606 = vmatprep.subr.mxu0 0.0
    %3607 = vmatpush1.msra.mxu0 0.0
    %3608 = vmatprep.subr.mxu0 0.0
    %3609 = vmatpush1.msra.mxu0 0.0
    %3610 = vmatprep.subr.mxu0 0.0
    %3611 = vmatpush1.msra.mxu0 0.0
    %3612 = vmatprep.subr.mxu0 0.0
    %3613 = vmatpush1.msra.mxu0 0.0
    %3614 = vmatprep.subr.mxu0 0.0
    %3615 = vmatpush1.msra.mxu0 0.0
    %3616 = vmatprep.subr.mxu0 0.0
    %3617 = vmatpush1.msra.mxu0 0.0
    %3618 = vmatprep.subr.mxu0 0.0
    %3619 = vmatpush1.msra.mxu0 0.0
    %3620 = vmatprep.subr.mxu0 0.0
    %3621 = vmatpush1.msra.mxu0 0.0
    %3622 = vmatprep.subr.mxu0 0.0
    %3623 = vmatpush1.msra.mxu0 0.0
    %3624 = vmatprep.subr.mxu0 0.0
    %3625 = vmatpush1.msra.mxu0 0.0
    %3626 = vmatprep.subr.mxu0 0.0
    %3627 = vmatpush1.msra.mxu0 0.0
    %3628 = vmatprep.subr.mxu0 0.0
    %3629 = vmatpush1.msra.mxu0 0.0
    %3630 = vmatprep.subr.mxu0 0.0
    %3631 = vmatpush1.msra.mxu0 %v2162
    %3632 = vmatprep.subr.mxu0 0.0
    %3633 = vmatpush1.msra.mxu0 %v2161
    %3634 = vmatprep.subr.mxu0 0.0
    %3635 = vmatpush1.msra.mxu0 %v2160
    %3636 = vmatprep.subr.mxu0 0.0
    %3637 = vmatpush1.msra.mxu0 %v2159
    %3638 = vmatprep.subr.mxu0 0.0
    %3639 = vmatpush2.msra.mxu0 0.0
    %3640 = vmatprep.subr.mxu0 0.0
    %3641 = vmatpush2.msra.mxu0 0.0
    %3642 = vmatprep.subr.mxu0 0.0
    %3643 = vmatpush2.msra.mxu0 0.0
    %3644 = vmatprep.subr.mxu0 0.0
    %3645 = vmatpush2.msra.mxu0 0.0
    %3646 = vmatprep.subr.mxu0 0.0
    %3647 = vmatpush2.msra.mxu0 0.0
    %3648 = vmatprep.subr.mxu0 0.0
    %3649 = vmatpush2.msra.mxu0 0.0
    %3650 = vmatprep.subr.mxu0 0.0
    %3651 = vmatpush2.msra.mxu0 0.0
    %3652 = vmatprep.subr.mxu0 0.0
    %3653 = vmatpush2.msra.mxu0 0.0
    %3654 = vmatprep.subr.mxu0 0.0
    %3655 = vmatpush2.msra.mxu0 0.0
    %3656 = vmatprep.subr.mxu0 0.0
    %3657 = vmatpush2.msra.mxu0 0.0
    %3658 = vmatprep.subr.mxu0 0.0
    %3659 = vmatpush2.msra.mxu0 0.0
    %3660 = vmatprep.subr.mxu0 0.0
    %3661 = vmatpush2.msra.mxu0 0.0
    %3662 = vmatprep.subr.mxu0 0.0
    %3663 = vmatpush2.msra.mxu0 0.0
    %3664 = vmatprep.subr.mxu0 0.0
    %3665 = vmatpush2.msra.mxu0 0.0
    %3666 = vmatprep.subr.mxu0 0.0
    %3667 = vmatpush2.msra.mxu0 0.0
    %3668 = vmatprep.subr.mxu0 0.0
    %3669 = vmatpush2.msra.mxu0 0.0
    %3670 = vmatprep.mubr.f32.mxu0 0.0
    %3671 = vmatmul.mubr.f32.gmra.mxu0 %v3604
    %v3672 = vpop.f32.mrf.mxu0
    %v3673 = vadd.f32 %v2182, %v3672
    %v3674 = vpop.f32.mrf.mxu0
    %3675 = vdwg.mxu0
    %3676 = vmatprep.subr.mxu0 0.0
    %3677 = vmatpush1.msra.mxu0 0.0
    %3678 = vmatprep.subr.mxu0 0.0
    %3679 = vmatpush1.msra.mxu0 0.0
    %3680 = vmatprep.subr.mxu0 0.0
    %3681 = vmatpush1.msra.mxu0 0.0
    %3682 = vmatprep.subr.mxu0 0.0
    %3683 = vmatpush1.msra.mxu0 0.0
    %3684 = vmatprep.subr.mxu0 0.0
    %3685 = vmatpush1.msra.mxu0 0.0
    %3686 = vmatprep.subr.mxu0 0.0
    %3687 = vmatpush1.msra.mxu0 0.0
    %3688 = vmatprep.subr.mxu0 0.0
    %3689 = vmatpush1.msra.mxu0 0.0
    %3690 = vmatprep.subr.mxu0 0.0
    %3691 = vmatpush1.msra.mxu0 0.0
    %3692 = vmatprep.subr.mxu0 0.0
    %3693 = vmatpush1.msra.mxu0 0.0
    %3694 = vmatprep.subr.mxu0 0.0
    %3695 = vmatpush1.msra.mxu0 0.0
    %3696 = vmatprep.subr.mxu0 0.0
    %3697 = vmatpush1.msra.mxu0 0.0
    %3698 = vmatprep.subr.mxu0 0.0
    %3699 = vmatpush1.msra.mxu0 0.0
    %3700 = vmatprep.subr.mxu0 0.0
    %3701 = vmatpush1.msra.mxu0 %v2167
    %3702 = vmatprep.subr.mxu0 0.0
    %3703 = vmatpush1.msra.mxu0 %v2166
    %3704 = vmatprep.subr.mxu0 0.0
    %3705 = vmatpush1.msra.mxu0 %v2165
    %3706 = vmatprep.subr.mxu0 0.0
    %3707 = vmatpush1.msra.mxu0 %v2164
    %3708 = vmatprep.subr.mxu0 0.0
    %3709 = vmatpush2.msra.mxu0 0.0
    %3710 = vmatprep.subr.mxu0 0.0
    %3711 = vmatpush2.msra.mxu0 0.0
    %3712 = vmatprep.subr.mxu0 0.0
    %3713 = vmatpush2.msra.mxu0 0.0
    %3714 = vmatprep.subr.mxu0 0.0
    %3715 = vmatpush2.msra.mxu0 0.0
    %3716 = vmatprep.subr.mxu0 0.0
    %3717 = vmatpush2.msra.mxu0 0.0
    %3718 = vmatprep.subr.mxu0 0.0
    %3719 = vmatpush2.msra.mxu0 0.0
    %3720 = vmatprep.subr.mxu0 0.0
    %3721 = vmatpush2.msra.mxu0 0.0
    %3722 = vmatprep.subr.mxu0 0.0
    %3723 = vmatpush2.msra.mxu0 0.0
    %3724 = vmatprep.subr.mxu0 0.0
    %3725 = vmatpush2.msra.mxu0 0.0
    %3726 = vmatprep.subr.mxu0 0.0
    %3727 = vmatpush2.msra.mxu0 0.0
    %3728 = vmatprep.subr.mxu0 0.0
    %3729 = vmatpush2.msra.mxu0 0.0
    %3730 = vmatprep.subr.mxu0 0.0
    %3731 = vmatpush2.msra.mxu0 0.0
    %3732 = vmatprep.subr.mxu0 0.0
    %3733 = vmatpush2.msra.mxu0 0.0
    %3734 = vmatprep.subr.mxu0 0.0
    %3735 = vmatpush2.msra.mxu0 0.0
    %3736 = vmatprep.subr.mxu0 0.0
    %3737 = vmatpush2.msra.mxu0 0.0
    %3738 = vmatprep.subr.mxu0 0.0
    %3739 = vmatpush2.msra.mxu0 0.0
    %3740 = vmatprep.mubr.f32.mxu0 0.0
    %3741 = vmatmul.mubr.f32.gmra.mxu0 %v3604
    %v3742 = vpop.f32.mrf.mxu0
    %v3743 = vadd.f32 %v2258, %v3742
    %v3744 = vpop.f32.mrf.mxu0
    %3745 = vdwg.mxu0
    %3746 = vmatprep.subr.mxu0 0.0
    %3747 = vmatpush1.msra.mxu0 0.0
    %3748 = vmatprep.subr.mxu0 0.0
    %3749 = vmatpush1.msra.mxu0 0.0
    %3750 = vmatprep.subr.mxu0 0.0
    %3751 = vmatpush1.msra.mxu0 0.0
    %3752 = vmatprep.subr.mxu0 0.0
    %3753 = vmatpush1.msra.mxu0 0.0
    %3754 = vmatprep.subr.mxu0 0.0
    %3755 = vmatpush1.msra.mxu0 0.0
    %3756 = vmatprep.subr.mxu0 0.0
    %3757 = vmatpush1.msra.mxu0 0.0
    %3758 = vmatprep.subr.mxu0 0.0
    %3759 = vmatpush1.msra.mxu0 0.0
    %3760 = vmatprep.subr.mxu0 0.0
    %3761 = vmatpush1.msra.mxu0 0.0
    %3762 = vmatprep.subr.mxu0 0.0
    %3763 = vmatpush1.msra.mxu0 0.0
    %3764 = vmatprep.subr.mxu0 0.0
    %3765 = vmatpush1.msra.mxu0 0.0
    %3766 = vmatprep.subr.mxu0 0.0
    %3767 = vmatpush1.msra.mxu0 0.0
    %3768 = vmatprep.subr.mxu0 0.0
    %3769 = vmatpush1.msra.mxu0 0.0
    %3770 = vmatprep.subr.mxu0 0.0
    %3771 = vmatpush1.msra.mxu0 %v2172
    %3772 = vmatprep.subr.mxu0 0.0
    %3773 = vmatpush1.msra.mxu0 %v2171
    %3774 = vmatprep.subr.mxu0 0.0
    %3775 = vmatpush1.msra.mxu0 %v2170
    %3776 = vmatprep.subr.mxu0 0.0
    %3777 = vmatpush1.msra.mxu0 %v2169
    %3778 = vmatprep.subr.mxu0 0.0
    %3779 = vmatpush2.msra.mxu0 0.0
    %3780 = vmatprep.subr.mxu0 0.0
    %3781 = vmatpush2.msra.mxu0 0.0
    %3782 = vmatprep.subr.mxu0 0.0
    %3783 = vmatpush2.msra.mxu0 0.0
    %3784 = vmatprep.subr.mxu0 0.0
    %3785 = vmatpush2.msra.mxu0 0.0
    %3786 = vmatprep.subr.mxu0 0.0
    %3787 = vmatpush2.msra.mxu0 0.0
    %3788 = vmatprep.subr.mxu0 0.0
    %3789 = vmatpush2.msra.mxu0 0.0
    %3790 = vmatprep.subr.mxu0 0.0
    %3791 = vmatpush2.msra.mxu0 0.0
    %3792 = vmatprep.subr.mxu0 0.0
    %3793 = vmatpush2.msra.mxu0 0.0
    %3794 = vmatprep.subr.mxu0 0.0
    %3795 = vmatpush2.msra.mxu0 0.0
    %3796 = vmatprep.subr.mxu0 0.0
    %3797 = vmatpush2.msra.mxu0 0.0
    %3798 = vmatprep.subr.mxu0 0.0
    %3799 = vmatpush2.msra.mxu0 0.0
    %3800 = vmatprep.subr.mxu0 0.0
    %3801 = vmatpush2.msra.mxu0 0.0
    %3802 = vmatprep.subr.mxu0 0.0
    %3803 = vmatpush2.msra.mxu0 0.0
    %3804 = vmatprep.subr.mxu0 0.0
    %3805 = vmatpush2.msra.mxu0 0.0
    %3806 = vmatprep.subr.mxu0 0.0
    %3807 = vmatpush2.msra.mxu0 0.0
    %3808 = vmatprep.subr.mxu0 0.0
    %3809 = vmatpush2.msra.mxu0 0.0
    %3810 = vmatprep.mubr.f32.mxu0 0.0
    %3811 = vmatmul.mubr.f32.gmra.mxu0 %v3604
    %v3812 = vpop.f32.mrf.mxu0
    %v3813 = vadd.f32 %v2334, %v3812
    %v3814 = vpop.f32.mrf.mxu0
    %3815 = vdwg.mxu0
    %v3816 = vadd.f32 %v1915, %v3673
    %v3817 = vxor.u32 %v3816, 2147483648
    %v3818 = vmul.f32 %v3817, 1.442695
    %v3819 = vpow.pop %v3818
    %v3820 = vadd.f32 %v3819, 1.0
    %v3821 = vrcp.pop %v3820
    %v3822 = vmul.f32 1.0, %v3821
    %v3823 = vadd.f32 %v2033, %v3743
    %v3824 = vxor.u32 %v3823, 2147483648
    %v3825 = vmul.f32 %v3824, 1.442695
    %v3826 = vpow.pop %v3825
    %v3827 = vadd.f32 %v3826, 1.0
    %v3828 = vrcp.pop %v3827
    %v3829 = vmul.f32 1.0, %v3828
    %v3830 = vmul.f32 %v3822, %v3813
    %v3831 = vadd.f32 %v2151, %v3830
    %v3832 = vtanh.pop %v3831
    %v3833 = vsub.f32 1.0, %v3829
    %v3834 = vmul.f32 %v3833, %v3832
    %v3835 = vmul.f32 %v3829, %v3601
    %v3836 = vadd.f32 %v3834, %v3835
    %3837 = vst.msk [vmem:[#allocation2 + $0x30] sm:$0xff] %vm362, %v3836
    %v3839 = vsel %vm362, %v3836, 0
    %3841 = vmatprep.subr.mxu0 0.0
    %3842 = vmatpush1.msra.mxu0 0.0
    %3843 = vmatprep.subr.mxu0 0.0
    %3844 = vmatpush1.msra.mxu0 0.0
    %3845 = vmatprep.subr.mxu0 0.0
    %3846 = vmatpush1.msra.mxu0 0.0
    %3847 = vmatprep.subr.mxu0 0.0
    %3848 = vmatpush1.msra.mxu0 0.0
    %3849 = vmatprep.subr.mxu0 0.0
    %3850 = vmatpush1.msra.mxu0 0.0
    %3851 = vmatprep.subr.mxu0 0.0
    %3852 = vmatpush1.msra.mxu0 0.0
    %3853 = vmatprep.subr.mxu0 0.0
    %3854 = vmatpush1.msra.mxu0 0.0
    %3855 = vmatprep.subr.mxu0 0.0
    %3856 = vmatpush1.msra.mxu0 0.0
    %3857 = vmatprep.subr.mxu0 0.0
    %3858 = vmatpush1.msra.mxu0 0.0
    %3859 = vmatprep.subr.mxu0 0.0
    %3860 = vmatpush1.msra.mxu0 0.0
    %3861 = vmatprep.subr.mxu0 0.0
    %3862 = vmatpush1.msra.mxu0 0.0
    %3863 = vmatprep.subr.mxu0 0.0
    %3864 = vmatpush1.msra.mxu0 0.0
    %3865 = vmatprep.subr.mxu0 0.0
    %3866 = vmatpush1.msra.mxu0 %v2162
    %3867 = vmatprep.subr.mxu0 0.0
    %3868 = vmatpush1.msra.mxu0 %v2161
    %3869 = vmatprep.subr.mxu0 0.0
    %3870 = vmatpush1.msra.mxu0 %v2160
    %3871 = vmatprep.subr.mxu0 0.0
    %3872 = vmatpush1.msra.mxu0 %v2159
    %3873 = vmatprep.subr.mxu0 0.0
    %3874 = vmatpush2.msra.mxu0 0.0
    %3875 = vmatprep.subr.mxu0 0.0
    %3876 = vmatpush2.msra.mxu0 0.0
    %3877 = vmatprep.subr.mxu0 0.0
    %3878 = vmatpush2.msra.mxu0 0.0
    %3879 = vmatprep.subr.mxu0 0.0
    %3880 = vmatpush2.msra.mxu0 0.0
    %3881 = vmatprep.subr.mxu0 0.0
    %3882 = vmatpush2.msra.mxu0 0.0
    %3883 = vmatprep.subr.mxu0 0.0
    %3884 = vmatpush2.msra.mxu0 0.0
    %3885 = vmatprep.subr.mxu0 0.0
    %3886 = vmatpush2.msra.mxu0 0.0
    %3887 = vmatprep.subr.mxu0 0.0
    %3888 = vmatpush2.msra.mxu0 0.0
    %3889 = vmatprep.subr.mxu0 0.0
    %3890 = vmatpush2.msra.mxu0 0.0
    %3891 = vmatprep.subr.mxu0 0.0
    %3892 = vmatpush2.msra.mxu0 0.0
    %3893 = vmatprep.subr.mxu0 0.0
    %3894 = vmatpush2.msra.mxu0 0.0
    %3895 = vmatprep.subr.mxu0 0.0
    %3896 = vmatpush2.msra.mxu0 0.0
    %3897 = vmatprep.subr.mxu0 0.0
    %3898 = vmatpush2.msra.mxu0 0.0
    %3899 = vmatprep.subr.mxu0 0.0
    %3900 = vmatpush2.msra.mxu0 0.0
    %3901 = vmatprep.subr.mxu0 0.0
    %3902 = vmatpush2.msra.mxu0 0.0
    %3903 = vmatprep.subr.mxu0 0.0
    %3904 = vmatpush2.msra.mxu0 0.0
    %3905 = vmatprep.mubr.f32.mxu0 0.0
    %3906 = vmatmul.mubr.f32.gmra.mxu0 %v3839
    %v3907 = vpop.f32.mrf.mxu0
    %v3908 = vadd.f32 %v2182, %v3907
    %v3909 = vpop.f32.mrf.mxu0
    %3910 = vdwg.mxu0
    %3911 = vmatprep.subr.mxu0 0.0
    %3912 = vmatpush1.msra.mxu0 0.0
    %3913 = vmatprep.subr.mxu0 0.0
    %3914 = vmatpush1.msra.mxu0 0.0
    %3915 = vmatprep.subr.mxu0 0.0
    %3916 = vmatpush1.msra.mxu0 0.0
    %3917 = vmatprep.subr.mxu0 0.0
    %3918 = vmatpush1.msra.mxu0 0.0
    %3919 = vmatprep.subr.mxu0 0.0
    %3920 = vmatpush1.msra.mxu0 0.0
    %3921 = vmatprep.subr.mxu0 0.0
    %3922 = vmatpush1.msra.mxu0 0.0
    %3923 = vmatprep.subr.mxu0 0.0
    %3924 = vmatpush1.msra.mxu0 0.0
    %3925 = vmatprep.subr.mxu0 0.0
    %3926 = vmatpush1.msra.mxu0 0.0
    %3927 = vmatprep.subr.mxu0 0.0
    %3928 = vmatpush1.msra.mxu0 0.0
    %3929 = vmatprep.subr.mxu0 0.0
    %3930 = vmatpush1.msra.mxu0 0.0
    %3931 = vmatprep.subr.mxu0 0.0
    %3932 = vmatpush1.msra.mxu0 0.0
    %3933 = vmatprep.subr.mxu0 0.0
    %3934 = vmatpush1.msra.mxu0 0.0
    %3935 = vmatprep.subr.mxu0 0.0
    %3936 = vmatpush1.msra.mxu0 %v2167
    %3937 = vmatprep.subr.mxu0 0.0
    %3938 = vmatpush1.msra.mxu0 %v2166
    %3939 = vmatprep.subr.mxu0 0.0
    %3940 = vmatpush1.msra.mxu0 %v2165
    %3941 = vmatprep.subr.mxu0 0.0
    %3942 = vmatpush1.msra.mxu0 %v2164
    %3943 = vmatprep.subr.mxu0 0.0
    %3944 = vmatpush2.msra.mxu0 0.0
    %3945 = vmatprep.subr.mxu0 0.0
    %3946 = vmatpush2.msra.mxu0 0.0
    %3947 = vmatprep.subr.mxu0 0.0
    %3948 = vmatpush2.msra.mxu0 0.0
    %3949 = vmatprep.subr.mxu0 0.0
    %3950 = vmatpush2.msra.mxu0 0.0
    %3951 = vmatprep.subr.mxu0 0.0
    %3952 = vmatpush2.msra.mxu0 0.0
    %3953 = vmatprep.subr.mxu0 0.0
    %3954 = vmatpush2.msra.mxu0 0.0
    %3955 = vmatprep.subr.mxu0 0.0
    %3956 = vmatpush2.msra.mxu0 0.0
    %3957 = vmatprep.subr.mxu0 0.0
    %3958 = vmatpush2.msra.mxu0 0.0
    %3959 = vmatprep.subr.mxu0 0.0
    %3960 = vmatpush2.msra.mxu0 0.0
    %3961 = vmatprep.subr.mxu0 0.0
    %3962 = vmatpush2.msra.mxu0 0.0
    %3963 = vmatprep.subr.mxu0 0.0
    %3964 = vmatpush2.msra.mxu0 0.0
    %3965 = vmatprep.subr.mxu0 0.0
    %3966 = vmatpush2.msra.mxu0 0.0
    %3967 = vmatprep.subr.mxu0 0.0
    %3968 = vmatpush2.msra.mxu0 0.0
    %3969 = vmatprep.subr.mxu0 0.0
    %3970 = vmatpush2.msra.mxu0 0.0
    %3971 = vmatprep.subr.mxu0 0.0
    %3972 = vmatpush2.msra.mxu0 0.0
    %3973 = vmatprep.subr.mxu0 0.0
    %3974 = vmatpush2.msra.mxu0 0.0
    %3975 = vmatprep.mubr.f32.mxu0 0.0
    %3976 = vmatmul.mubr.f32.gmra.mxu0 %v3839
    %v3977 = vpop.f32.mrf.mxu0
    %v3978 = vadd.f32 %v2258, %v3977
    %v3979 = vpop.f32.mrf.mxu0
    %3980 = vdwg.mxu0
    %3981 = vmatprep.subr.mxu0 0.0
    %3982 = vmatpush1.msra.mxu0 0.0
    %3983 = vmatprep.subr.mxu0 0.0
    %3984 = vmatpush1.msra.mxu0 0.0
    %3985 = vmatprep.subr.mxu0 0.0
    %3986 = vmatpush1.msra.mxu0 0.0
    %3987 = vmatprep.subr.mxu0 0.0
    %3988 = vmatpush1.msra.mxu0 0.0
    %3989 = vmatprep.subr.mxu0 0.0
    %3990 = vmatpush1.msra.mxu0 0.0
    %3991 = vmatprep.subr.mxu0 0.0
    %3992 = vmatpush1.msra.mxu0 0.0
    %3993 = vmatprep.subr.mxu0 0.0
    %3994 = vmatpush1.msra.mxu0 0.0
    %3995 = vmatprep.subr.mxu0 0.0
    %3996 = vmatpush1.msra.mxu0 0.0
    %3997 = vmatprep.subr.mxu0 0.0
    %3998 = vmatpush1.msra.mxu0 0.0
    %3999 = vmatprep.subr.mxu0 0.0
    %4000 = vmatpush1.msra.mxu0 0.0
    %4001 = vmatprep.subr.mxu0 0.0
    %4002 = vmatpush1.msra.mxu0 0.0
    %4003 = vmatprep.subr.mxu0 0.0
    %4004 = vmatpush1.msra.mxu0 0.0
    %4005 = vmatprep.subr.mxu0 0.0
    %4006 = vmatpush1.msra.mxu0 %v2172
    %4007 = vmatprep.subr.mxu0 0.0
    %4008 = vmatpush1.msra.mxu0 %v2171
    %4009 = vmatprep.subr.mxu0 0.0
    %4010 = vmatpush1.msra.mxu0 %v2170
    %4011 = vmatprep.subr.mxu0 0.0
    %4012 = vmatpush1.msra.mxu0 %v2169
    %4013 = vmatprep.subr.mxu0 0.0
    %4014 = vmatpush2.msra.mxu0 0.0
    %4015 = vmatprep.subr.mxu0 0.0
    %4016 = vmatpush2.msra.mxu0 0.0
    %4017 = vmatprep.subr.mxu0 0.0
    %4018 = vmatpush2.msra.mxu0 0.0
    %4019 = vmatprep.subr.mxu0 0.0
    %4020 = vmatpush2.msra.mxu0 0.0
    %4021 = vmatprep.subr.mxu0 0.0
    %4022 = vmatpush2.msra.mxu0 0.0
    %4023 = vmatprep.subr.mxu0 0.0
    %4024 = vmatpush2.msra.mxu0 0.0
    %4025 = vmatprep.subr.mxu0 0.0
    %4026 = vmatpush2.msra.mxu0 0.0
    %4027 = vmatprep.subr.mxu0 0.0
    %4028 = vmatpush2.msra.mxu0 0.0
    %4029 = vmatprep.subr.mxu0 0.0
    %4030 = vmatpush2.msra.mxu0 0.0
    %4031 = vmatprep.subr.mxu0 0.0
    %4032 = vmatpush2.msra.mxu0 0.0
    %4033 = vmatprep.subr.mxu0 0.0
    %4034 = vmatpush2.msra.mxu0 0.0
    %4035 = vmatprep.subr.mxu0 0.0
    %4036 = vmatpush2.msra.mxu0 0.0
    %4037 = vmatprep.subr.mxu0 0.0
    %4038 = vmatpush2.msra.mxu0 0.0
    %4039 = vmatprep.subr.mxu0 0.0
    %4040 = vmatpush2.msra.mxu0 0.0
    %4041 = vmatprep.subr.mxu0 0.0
    %4042 = vmatpush2.msra.mxu0 0.0
    %4043 = vmatprep.subr.mxu0 0.0
    %4044 = vmatpush2.msra.mxu0 0.0
    %4045 = vmatprep.mubr.f32.mxu0 0.0
    %4046 = vmatmul.mubr.f32.gmra.mxu0 %v3839
    %v4047 = vpop.f32.mrf.mxu0
    %v4048 = vadd.f32 %v2334, %v4047
    %v4049 = vpop.f32.mrf.mxu0
    %4050 = vdwg.mxu0
    %v4051 = vadd.f32 %v1920, %v3908
    %v4052 = vxor.u32 %v4051, 2147483648
    %v4053 = vmul.f32 %v4052, 1.442695
    %v4054 = vpow.pop %v4053
    %v4055 = vadd.f32 %v4054, 1.0
    %v4056 = vrcp.pop %v4055
    %v4057 = vmul.f32 1.0, %v4056
    %v4058 = vadd.f32 %v2038, %v3978
    %v4059 = vxor.u32 %v4058, 2147483648
    %v4060 = vmul.f32 %v4059, 1.442695
    %v4061 = vpow.pop %v4060
    %v4062 = vadd.f32 %v4061, 1.0
    %v4063 = vrcp.pop %v4062
    %v4064 = vmul.f32 1.0, %v4063
    %v4065 = vmul.f32 %v4057, %v4048
    %v4066 = vadd.f32 %v2156, %v4065
    %v4067 = vtanh.pop %v4066
    %v4068 = vsub.f32 1.0, %v4064
    %v4069 = vmul.f32 %v4068, %v4067
    %v4070 = vmul.f32 %v4064, %v3836
    %v4071 = vadd.f32 %v4069, %v4070
    %4072 = vst.msk [vmem:[#allocation2 + $0x38] sm:$0xff] %vm362, %v4071
    %v4073 = vld [vmem:[#allocation2] sm:$0xff]
    %v4074 = vld [vmem:[#allocation2 + $0x8] sm:$0xff]
    %v4075 = vld [vmem:[#allocation2 + $0x10] sm:$0xff]
    %v4076 = vld [vmem:[#allocation2 + $0x18] sm:$0xff]
    %v4077 = vld [vmem:[#allocation2 + $0x20] sm:$0xff]
    %v4078 = vld [vmem:[#allocation2 + $0x28] sm:$0xff]
    %v4079 = vld [vmem:[#allocation2 + $0x30] sm:$0xff]
    %v4080 = vld [vmem:[#allocation2 + $0x38] sm:$0xff]
    %v4081 = vld [vmem:[#allocation13] sm:$0xff]
    %v4082 = vld [vmem:[#allocation13 + $0x8] sm:$0xff]
    %v4083 = vld [vmem:[#allocation13 + $0x10] sm:$0xff]
    %v4084 = vld [vmem:[#allocation13 + $0x18] sm:$0xff]
    %v4085 = vld [vmem:[#allocation14] sm:$0x1]
    %v4087 = vlaneseq
    %v4088 = vshrl.u32 %v4087, 7
    %v4089 = vsub.s32 0, %v4088
    %v4090 = vrot.slane %v4085, %v4089
    %v4093 = vsel %vm362, %v4073, 0
    %v4096 = vsel %vm362, %v4074, 0
    %v4099 = vsel %vm362, %v4075, 0
    %v4102 = vsel %vm362, %v4076, 0
    %v4105 = vsel %vm362, %v4077, 0
    %v4108 = vsel %vm362, %v4078, 0
    %v4111 = vsel %vm362, %v4079, 0
    %v4114 = vsel %vm362, %v4080, 0
    %4116 = vmatprep.subr.mxu0 0.0
    %4117 = vmatpush1.msra.mxu0 0.0
    %4118 = vmatprep.subr.mxu0 0.0
    %4119 = vmatpush1.msra.mxu0 0.0
    %4120 = vmatprep.subr.mxu0 0.0
    %4121 = vmatpush1.msra.mxu0 0.0
    %4122 = vmatprep.subr.mxu0 0.0
    %4123 = vmatpush1.msra.mxu0 0.0
    %4124 = vmatprep.subr.mxu0 0.0
    %4125 = vmatpush1.msra.mxu0 0.0
    %4126 = vmatprep.subr.mxu0 0.0
    %4127 = vmatpush1.msra.mxu0 0.0
    %4128 = vmatprep.subr.mxu0 0.0
    %4129 = vmatpush1.msra.mxu0 0.0
    %4130 = vmatprep.subr.mxu0 0.0
    %4131 = vmatpush1.msra.mxu0 0.0
    %4132 = vmatprep.subr.mxu0 0.0
    %4133 = vmatpush1.msra.mxu0 0.0
    %4134 = vmatprep.subr.mxu0 0.0
    %4135 = vmatpush1.msra.mxu0 0.0
    %4136 = vmatprep.subr.mxu0 0.0
    %4137 = vmatpush1.msra.mxu0 0.0
    %4138 = vmatprep.subr.mxu0 0.0
    %4139 = vmatpush1.msra.mxu0 0.0
    %4140 = vmatprep.subr.mxu0 0.0
    %4141 = vmatpush1.msra.mxu0 %v4084
    %4142 = vmatprep.subr.mxu0 0.0
    %4143 = vmatpush1.msra.mxu0 %v4083
    %4144 = vmatprep.subr.mxu0 0.0
    %4145 = vmatpush1.msra.mxu0 %v4082
    %4146 = vmatprep.subr.mxu0 0.0
    %4147 = vmatpush1.msra.mxu0 %v4081
    %4148 = vmatprep.subr.mxu0 0.0
    %4149 = vmatpush2.msra.mxu0 0.0
    %4150 = vmatprep.subr.mxu0 0.0
    %4151 = vmatpush2.msra.mxu0 0.0
    %4152 = vmatprep.subr.mxu0 0.0
    %4153 = vmatpush2.msra.mxu0 0.0
    %4154 = vmatprep.subr.mxu0 0.0
    %4155 = vmatpush2.msra.mxu0 0.0
    %4156 = vmatprep.subr.mxu0 0.0
    %4157 = vmatpush2.msra.mxu0 0.0
    %4158 = vmatprep.subr.mxu0 0.0
    %4159 = vmatpush2.msra.mxu0 0.0
    %4160 = vmatprep.subr.mxu0 0.0
    %4161 = vmatpush2.msra.mxu0 0.0
    %4162 = vmatprep.subr.mxu0 0.0
    %4163 = vmatpush2.msra.mxu0 0.0
    %4164 = vmatprep.subr.mxu0 0.0
    %4165 = vmatpush2.msra.mxu0 0.0
    %4166 = vmatprep.subr.mxu0 0.0
    %4167 = vmatpush2.msra.mxu0 0.0
    %4168 = vmatprep.subr.mxu0 0.0
    %4169 = vmatpush2.msra.mxu0 0.0
    %4170 = vmatprep.subr.mxu0 0.0
    %4171 = vmatpush2.msra.mxu0 0.0
    %4172 = vmatprep.subr.mxu0 0.0
    %4173 = vmatpush2.msra.mxu0 0.0
    %4174 = vmatprep.subr.mxu0 0.0
    %4175 = vmatpush2.msra.mxu0 0.0
    %4176 = vmatprep.subr.mxu0 0.0
    %4177 = vmatpush2.msra.mxu0 0.0
    %4178 = vmatprep.subr.mxu0 0.0
    %4179 = vmatpush2.msra.mxu0 0.0
    %4180 = vmatprep.mubr.f32.mxu0 0.0
    %4181 = vmatmul.mubr.f32.gmra.mxu0 %v4093
    %v4182 = vpop.f32.mrf.mxu0
    %v4183 = vadd.f32 %v4090, %v4182
    %v4184 = vpop.f32.mrf.mxu0
    %4185 = vmatprep.mubr.f32.mxu0 0.0
    %4186 = vmatmul.mubr.f32.gmra.mxu0 %v4096
    %v4187 = vpop.f32.mrf.mxu0
    %v4188 = vadd.f32 %v4090, %v4187
    %v4189 = vpop.f32.mrf.mxu0
    %4190 = vmatprep.mubr.f32.mxu0 0.0
    %4191 = vmatmul.mubr.f32.gmra.mxu0 %v4099
    %v4192 = vpop.f32.mrf.mxu0
    %v4193 = vadd.f32 %v4090, %v4192
    %v4194 = vpop.f32.mrf.mxu0
    %4195 = vmatprep.mubr.f32.mxu0 0.0
    %4196 = vmatmul.mubr.f32.gmra.mxu0 %v4102
    %v4197 = vpop.f32.mrf.mxu0
    %v4198 = vadd.f32 %v4090, %v4197
    %v4199 = vpop.f32.mrf.mxu0
    %4200 = vmatprep.mubr.f32.mxu0 0.0
    %4201 = vmatmul.mubr.f32.gmra.mxu0 %v4105
    %v4202 = vpop.f32.mrf.mxu0
    %v4203 = vadd.f32 %v4090, %v4202
    %v4204 = vpop.f32.mrf.mxu0
    %4205 = vmatprep.mubr.f32.mxu0 0.0
    %4206 = vmatmul.mubr.f32.gmra.mxu0 %v4108
    %v4207 = vpop.f32.mrf.mxu0
    %v4208 = vadd.f32 %v4090, %v4207
    %v4209 = vpop.f32.mrf.mxu0
    %4210 = vmatprep.mubr.f32.mxu0 0.0
    %4211 = vmatmul.mubr.f32.gmra.mxu0 %v4111
    %v4212 = vpop.f32.mrf.mxu0
    %v4213 = vadd.f32 %v4090, %v4212
    %v4214 = vpop.f32.mrf.mxu0
    %4215 = vmatprep.mubr.f32.mxu0 0.0
    %4216 = vmatmul.mubr.f32.gmra.mxu0 %v4114
    %v4217 = vpop.f32.mrf.mxu0
    %v4218 = vadd.f32 %v4090, %v4217
    %v4219 = vpop.f32.mrf.mxu0
    %4220 = vdwg.mxu0
    %4221 = vst [vmem:[%s22] sm:$0xff] %v4183
    %4222 = vst [vmem:[%s22 + $0x8] sm:$0xff] %v4188
    %4223 = vst [vmem:[%s22 + $0x10] sm:$0xff] %v4193
    %4224 = vst [vmem:[%s22 + $0x18] sm:$0xff] %v4198
    %4225 = vst [vmem:[%s22 + $0x20] sm:$0xff] %v4203
    %4226 = vst [vmem:[%s22 + $0x28] sm:$0xff] %v4208
    %4227 = vst [vmem:[%s22 + $0x30] sm:$0xff] %v4213
    %4228 = vst [vmem:[%s22 + $0x38] sm:$0xff] %v4218
    // Predicated region
    $region122: #{_lambda_.1} parent=1 // pred_check
      _
    $region123: #{_lambda_.1} parent=1 // pred_check_branch
      %4230 = sbr.rel (0) target = $region125
    $region124: #{_lambda_.1} parent=1 // pred_region
      _
    $region125: #{_lambda_.1} parent=1 // pred_fallthru
      _
    // Predicated region
    $region126: #{_lambda_.1} parent=1 // pred_check
      _
    $region127: #{_lambda_.1} parent=1 // pred_check_branch
      %4232 = sbr.rel (0) target = $region129
    $region128: #{_lambda_.1} parent=1 // pred_region
      _
    $region129: #{_lambda_.1} parent=1 // pred_fallthru
      _
    // Predicated region
    $region130: #{_lambda_.1} parent=1 // pred_check
      _
    $region131: #{_lambda_.1} parent=1 // pred_check_branch
      %4234 = sbr.rel (0) target = $region133
    $region132: #{_lambda_.1} parent=1 // pred_region
      _
    $region133: #{_lambda_.1} parent=1 // pred_fallthru
      _
    // Predicated region
    $region134: #{_lambda_.1} parent=1 // pred_check
      _
    $region135: #{_lambda_.1} parent=1 // pred_check_branch
      %4236 = sbr.rel (0) target = $region137
    $region136: #{_lambda_.1} parent=1 // pred_region
      _
    $region137: #{_lambda_.1} parent=1 // pred_fallthru
      _
    %4237 = vsyncpa [#allocation4], 1
    %4238 = vsyncpa [#allocation6], 1
    %4239 = vsyncpa [#allocation9], 1
    %4240 = vsyncpa [#allocation12], 1
    %4241 = vsyncpa [#allocation15], 1

</llo_original>
